<compile_context>
chip_gen: v7x
topology: tpu7x:2x2x1
jax: 0.10.0
libtpu: 0.0.40
codegen_flags: <defaults>
</compile_context>

<pallas_src>
import jax
import jax.numpy as jnp
from jax import lax
from jax.experimental import pallas as pl
from jax.experimental.pallas import tpu as pltpu


def _accumulate(acc_ref, x):
    """Accumulate sum(x) into a (1, 8, 128) f32 accumulator ref.

    When the trailing dims of x are vreg-aligned, the reduction is done with
    plain vreg adds (VPU only) into lane-dense (8, 128) partials; the single
    cross-lane reduction happens once in the wrapper.  Otherwise fall back to
    a scalar reduce placed at element (0, 0).
    """
    x = x.astype(jnp.float32)
    while x.ndim > 2:                       # fold the batch-block axis (vreg adds)
        x = jnp.sum(x, axis=0)
    r, c = x.shape
    if r % 8 == 0 and c % 128 == 0:
        part = jnp.zeros((8, 128), jnp.float32)
        for i in range(r // 8):
            for j in range(c // 128):
                part = part + x[i * 8:(i + 1) * 8, j * 128:(j + 1) * 128]
    else:
        row = lax.broadcasted_iota(jnp.int32, (8, 128), 0)
        col = lax.broadcasted_iota(jnp.int32, (8, 128), 1)
        part = jnp.where((row == 0) & (col == 0), jnp.sum(x), 0.0)
    acc_ref[...] += part[None]


def _simmim_loss_kernel(pred_q_ref, tgt_q_ref, tgt_k_ref, sim_out_ref, l1_out_ref):
    qi = pl.program_id(1)
    ki = pl.program_id(2)

    # Outputs are lane-dense (1, 8, 128) partial-sum accumulators, resident
    # across the (qi, ki) reduction axes (their block index depends only on
    # the parallel batch-block axis).
    @pl.when((qi == 0) & (ki == 0))
    def _init():
        sim_out_ref[...] = jnp.zeros_like(sim_out_ref)
        l1_out_ref[...] = jnp.zeros_like(l1_out_ref)

    pq = pred_q_ref[...]        # (Bt, TQ, D)  query rows of pred
    tq = tgt_q_ref[...]         # (Bt, TQ, D)  query rows of target
    tk = tgt_k_ref[...]         # (Bt, TK, D)  key   rows of target
    tq_sz = tq.shape[1]

    # Elementwise math in f32; matmul operands keep the input dtype.
    pq32 = pq.astype(jnp.float32)
    tq32 = tq.astype(jnp.float32)
    tk32 = tk.astype(jnp.float32)
    sq_pq = jnp.sum(pq32 * pq32, axis=-1, keepdims=True)      # (Bt, TQ, 1)
    sq_tq = jnp.sum(tq32 * tq32, axis=-1, keepdims=True)      # (Bt, TQ, 1)
    sq_tk = jnp.sum(tk32 * tk32, axis=-1)[:, None, :]         # (Bt, 1, TK)

    # Cross terms on the MXU: contraction on the last dim of BOTH operands
    # (no transpose).  The two matmuls share the RHS (tk); fuse them into one
    # MXU call by stacking [t_q; p_q] when the split offset is 8-aligned.
    dn = (((2,), (2,)), ((0,), (0,)))
    if tq_sz % 8 == 0:
        lhs = jnp.concatenate([tq, pq], axis=1)               # (Bt, 2*TQ, D)
        cross = lax.dot_general(lhs, tk, dn,
                                preferred_element_type=jnp.float32)
        tt_cross = cross[:, :tq_sz, :]                        # (Bt, TQ, TK)
        pt_cross = cross[:, tq_sz:, :]                        # (Bt, TQ, TK)
    else:
        tt_cross = lax.dot_general(tq, tk, dn,
                                   preferred_element_type=jnp.float32)
        pt_cross = lax.dot_general(pq, tk, dn,
                                   preferred_element_type=jnp.float32)

    # cdist (p=2) via the norm expansion; clamp tiny negative rounding to 0.
    d_tt = jnp.sqrt(jnp.maximum(sq_tq + sq_tk - 2.0 * tt_cross, 0.0))
    d_pt = jnp.sqrt(jnp.maximum(sq_pq + sq_tk - 2.0 * pt_cross, 0.0))

    _accumulate(sim_out_ref, jnp.abs(d_tt - d_pt))

    # F.l1_loss(pred, target) term, fused (rows already in VMEM).  It only
    # depends on the q panel, so add it once per q panel.
    @pl.when(ki == 0)
    def _l1():
        _accumulate(l1_out_ref, jnp.abs(pq32 - tq32))


def _pick_tile(n, max_tile):
    if n <= max_tile:
        return n
    for t in (256, 128, 64, 32, 16, 8):
        if t <= max_tile and n % t == 0:
            return t
    return n  # fallback: full-N panels (see TODO at top of file)


def _simmim_loss_sums(pred, target, *, max_tile=256, batch_block=1):
    """Returns (sum |cdist(t,t)-cdist(p,t)|, sum |p - t|) over the whole batch."""
    assert pred.shape == target.shape and pred.ndim == 3
    B, N, D = pred.shape
    Bt = batch_block
    assert B % Bt == 0, "batch must be divisible by batch_block"
    # 256-wide tiles match the v6e/v7x MXU; use max_tile=128 on v5e.
    TQ = TK = _pick_tile(N, max_tile)
    grid = (B // Bt, N // TQ, N // TK)

    sim_part, l1_part = pl.pallas_call(
        _simmim_loss_kernel,
        out_shape=(
            jax.ShapeDtypeStruct((B // Bt, 8, 128), jnp.float32),
            jax.ShapeDtypeStruct((B // Bt, 8, 128), jnp.float32),
        ),
        grid_spec=pltpu.PrefetchScalarGridSpec(
            num_scalar_prefetch=0,
            grid=grid,
            in_specs=[
                pl.BlockSpec((Bt, TQ, D), lambda b, qi, ki: (b, qi, 0)),  # pred q-rows
                pl.BlockSpec((Bt, TQ, D), lambda b, qi, ki: (b, qi, 0)),  # target q-rows
                pl.BlockSpec((Bt, TK, D), lambda b, qi, ki: (b, ki, 0)),  # target k-rows
            ],
            out_specs=[
                pl.BlockSpec((1, 8, 128), lambda b, qi, ki: (b, 0, 0)),
                pl.BlockSpec((1, 8, 128), lambda b, qi, ki: (b, 0, 0)),
            ],
        ),
        compiler_params=pltpu.CompilerParams(
            dimension_semantics=("parallel", "arbitrary", "arbitrary")),
    )(pred, target, target)

    return jnp.sum(sim_part), jnp.sum(l1_part)


def self_similarity_loss2(pred, target, weight=0.05, **kw):
    """Pallas-backed SelfSimilarityLoss2.forward(pred, target)."""
    B, N, _ = pred.shape
    sim_sum, _ = _simmim_loss_sums(pred, target, **kw)
    # F.l1_loss(cdist(t,t), cdist(p,t)) = mean over B*N*N, then /N, then *weight.
    return weight * sim_sum / jnp.float32(B * N * N) / jnp.float32(N)


def simmim_recon_loss(pred_pixel_values, masked_patches, sim_weight=0.05, **kw):
    """The `sim_loss != 0` reconstruction-loss branch of SimMIM.forward."""
    B, N, D = pred_pixel_values.shape
    sim_sum, l1_sum = _simmim_loss_sums(pred_pixel_values, masked_patches, **kw)
    sim_loss = sim_weight * sim_sum / jnp.float32(B * N * N) / jnp.float32(N)
    l1_loss = l1_sum / jnp.float32(B * N * D)
    num_masked = N
    return (sim_loss + l1_loss) / jnp.float32(num_masked)


# ----------------------------- pure-JAX reference -----------------------------

def _cdist_ref(x, y):
    diff = x[:, :, None, :] - y[:, None, :, :]
    return jnp.sqrt(jnp.sum(diff * diff, axis=-1))


def _sim_loss_ref(pred, target, weight=0.05):
    pred = pred.astype(jnp.float32)
    target = target.astype(jnp.float32)
    d_tt = _cdist_ref(target, target)
    d_pt = _cdist_ref(pred, target)
    return weight * jnp.mean(jnp.abs(d_tt - d_pt)) / target.shape[1]


def _recon_loss_ref(pred, target, sim_weight=0.05):
    sim = _sim_loss_ref(pred, target, sim_weight)
    l1 = jnp.mean(jnp.abs(pred.astype(jnp.float32) - target.astype(jnp.float32)))
    return (sim + l1) / target.shape[1]


if __name__ == "__main__":
    key = jax.random.PRNGKey(0)
    k1, k2 = jax.random.split(key)
    # Shapes implied by SimMIM.forward: pred_pixel_values / masked_patches are
    # (batch, num_masked, patch_size**2 * channels).  Small stand-in:
    # batch=4, num_masked=256, 4x4 patches over 3 channels -> 48 pixel values.
    B, N, D = 4, 256, 48
    pred = jax.random.normal(k1, (B, N, D), dtype=jnp.float32)
    target = jax.random.normal(k2, (B, N, D), dtype=jnp.float32)

    # max_tile=128 / batch_block=2 so the tiled (2, 2, 2) grid path is exercised.
    loss = simmim_recon_loss(pred, target, sim_weight=0.05,
                             max_tile=128, batch_block=2)
    jax.block_until_ready(loss)
    ref = _recon_loss_ref(pred, target, sim_weight=0.05)
    assert jnp.allclose(loss, ref, rtol=2e-3, atol=1e-6), (loss, ref)

    # Standalone SelfSimilarityLoss2 check (looser tol: cdist in the kernel
    # uses the matmul norm-expansion, the reference uses explicit differences).
    sim_only = self_similarity_loss2(pred, target, weight=0.05,
                                     max_tile=128, batch_block=2)
    jax.block_until_ready(sim_only)
    sim_ref = _sim_loss_ref(pred, target, weight=0.05)
    assert jnp.allclose(sim_only, sim_ref, rtol=2e-2, atol=1e-7), (sim_only, sim_ref)

    print("KERNEL_OK")
</pallas_src>

<mosaic_0001>
module attributes {stable_mosaic.version = 11 : i64} {
  func.func @_simmim_loss_kernel(%arg0: i32, %arg1: i32, %arg2: i32, %arg3: memref<2x128x48xf32, #tpu.memory_space<vmem>>, %arg4: memref<2x128x48xf32, #tpu.memory_space<vmem>>, %arg5: memref<2x128x48xf32, #tpu.memory_space<vmem>>, %arg6: memref<1x8x128xf32, #tpu.memory_space<vmem>>, %arg7: memref<1x8x128xf32, #tpu.memory_space<vmem>>) attributes {dimension_semantics = [#tpu.dimension_semantics<parallel>, #tpu.dimension_semantics<arbitrary>, #tpu.dimension_semantics<arbitrary>], iteration_bounds = array<i64: 2, 2, 2>, scalar_prefetch = 0 : i64, scratch_operands = 0 : i64, tpu.core_type = #tpu.core_type<tc>, window_params = [{transform_indices = @transform_0, window_bounds = array<i64: 2, 128, 48>}, {transform_indices = @transform_1, window_bounds = array<i64: 2, 128, 48>}, {transform_indices = @transform_2, window_bounds = array<i64: 2, 128, 48>}, {transform_indices = @transform_3, window_bounds = array<i64: 1, 8, 128>}, {transform_indices = @transform_4, window_bounds = array<i64: 1, 8, 128>}]} {
    %c0_i32 = arith.constant 0 : i32
    %0 = arith.cmpi eq, %arg1, %c0_i32 : i32
    %c0_i32_0 = arith.constant 0 : i32
    %1 = arith.cmpi eq, %arg2, %c0_i32_0 : i32
    %2 = arith.andi %0, %1 : i1
    %3 = arith.extui %2 : i1 to i32
    %c0_i32_1 = arith.constant 0 : i32
    %4 = arith.cmpi ne, %3, %c0_i32_1 : i32
    scf.if %4 {
      %cst_27 = arith.constant 0.000000e+00 : f32
      %82 = vector.broadcast %cst_27 : f32 to vector<1x8x128xf32>
      %c0_28 = arith.constant 0 : index
      %c0_29 = arith.constant 0 : index
      %c0_30 = arith.constant 0 : index
      %83 = vector.load %arg6[%c0_28, %c0_29, %c0_30] : memref<1x8x128xf32, #tpu.memory_space<vmem>>, vector<1x8x128xf32>
      tpu.vector_store %arg6[%c0_28, %c0_29, %c0_30], %82 {strides = array<i32>} : memref<1x8x128xf32, #tpu.memory_space<vmem>>, vector<1x8x128xf32>,
      %cst_31 = arith.constant 0.000000e+00 : f32
      %84 = vector.broadcast %cst_31 : f32 to vector<1x8x128xf32>
      %c0_32 = arith.constant 0 : index
      %c0_33 = arith.constant 0 : index
      %c0_34 = arith.constant 0 : index
      %85 = vector.load %arg7[%c0_32, %c0_33, %c0_34] : memref<1x8x128xf32, #tpu.memory_space<vmem>>, vector<1x8x128xf32>
      tpu.vector_store %arg7[%c0_32, %c0_33, %c0_34], %84 {strides = array<i32>} : memref<1x8x128xf32, #tpu.memory_space<vmem>>, vector<1x8x128xf32>,
    } else {
    }
    %c0 = arith.constant 0 : index
    %c0_2 = arith.constant 0 : index
    %c0_3 = arith.constant 0 : index
    %5 = vector.load %arg3[%c0, %c0_2, %c0_3] : memref<2x128x48xf32, #tpu.memory_space<vmem>>, vector<2x128x48xf32>
    %c0_4 = arith.constant 0 : index
    %c0_5 = arith.constant 0 : index
    %c0_6 = arith.constant 0 : index
    %6 = vector.load %arg4[%c0_4, %c0_5, %c0_6] : memref<2x128x48xf32, #tpu.memory_space<vmem>>, vector<2x128x48xf32>
    %c0_7 = arith.constant 0 : index
    %c0_8 = arith.constant 0 : index
    %c0_9 = arith.constant 0 : index
    %7 = vector.load %arg5[%c0_7, %c0_8, %c0_9] : memref<2x128x48xf32, #tpu.memory_space<vmem>>, vector<2x128x48xf32>
    %8 = arith.mulf %5, %5 : vector<2x128x48xf32>
    %cst = arith.constant dense<0.000000e+00> : vector<2x128xf32>
    %9 = vector.multi_reduction <add>, %8, %cst [2] : vector<2x128x48xf32> to vector<2x128xf32>
    %10 = vector.shape_cast %9 : vector<2x128xf32> to vector<2x128x1xf32>
    %11 = arith.mulf %6, %6 : vector<2x128x48xf32>
    %cst_10 = arith.constant dense<0.000000e+00> : vector<2x128xf32>
    %12 = vector.multi_reduction <add>, %11, %cst_10 [2] : vector<2x128x48xf32> to vector<2x128xf32>
    %13 = vector.shape_cast %12 : vector<2x128xf32> to vector<2x128x1xf32>
    %14 = arith.mulf %7, %7 : vector<2x128x48xf32>
    %cst_11 = arith.constant dense<0.000000e+00> : vector<2x128xf32>
    %15 = vector.multi_reduction <add>, %14, %cst_11 [2] : vector<2x128x48xf32> to vector<2x128xf32>
    %16 = vector.shape_cast %15 : vector<2x128xf32> to vector<2x1x128xf32>
    %17 = tpu.concatenate %6, %5 in 1 : vector<2x128x48xf32>, vector<2x128x48xf32> -> vector<2x256x48xf32>
    %cst_12 = arith.constant dense<0.000000e+00> : vector<2x256x128xf32>
    %18 = tpu.matmul %17, %7, %cst_12 {dimension_numbers = #tpu.dot_dimension_numbers<[2], [2], [1], [1], [0, 0, 0, 1, 1, 1], [0], [0]>} : vector<2x256x48xf32>, vector<2x128x48xf32>, vector<2x256x128xf32> -> vector<2x256x128xf32>
    %19 = vector.extract_strided_slice %18 {offsets = [0, 0, 0], sizes = [2, 128, 128], strides = [1, 1, 1]} : vector<2x256x128xf32> to vector<2x128x128xf32>
    %20 = vector.extract_strided_slice %18 {offsets = [0, 128, 0], sizes = [2, 128, 128], strides = [1, 1, 1]} : vector<2x256x128xf32> to vector<2x128x128xf32>
    %21 = vector.broadcast %13 : vector<2x128x1xf32> to vector<2x128x128xf32>
    %22 = vector.broadcast %16 : vector<2x1x128xf32> to vector<2x128x128xf32>
    %23 = arith.addf %21, %22 : vector<2x128x128xf32>
    %cst_13 = arith.constant 2.000000e+00 : f32
    %24 = vector.broadcast %cst_13 : f32 to vector<2x128x128xf32>
    %25 = arith.mulf %24, %19 : vector<2x128x128xf32>
    %26 = arith.subf %23, %25 : vector<2x128x128xf32>
    %cst_14 = arith.constant 0.000000e+00 : f32
    %27 = vector.broadcast %cst_14 : f32 to vector<2x128x128xf32>
    %28 = arith.maximumf %26, %27 : vector<2x128x128xf32>
    %29 = math.sqrt %28 : vector<2x128x128xf32>
    %30 = vector.broadcast %10 : vector<2x128x1xf32> to vector<2x128x128xf32>
    %31 = vector.broadcast %16 : vector<2x1x128xf32> to vector<2x128x128xf32>
    %32 = arith.addf %30, %31 : vector<2x128x128xf32>
    %cst_15 = arith.constant 2.000000e+00 : f32
    %33 = vector.broadcast %cst_15 : f32 to vector<2x128x128xf32>
    %34 = arith.mulf %33, %20 : vector<2x128x128xf32>
    %35 = arith.subf %32, %34 : vector<2x128x128xf32>
    %cst_16 = arith.constant 0.000000e+00 : f32
    %36 = vector.broadcast %cst_16 : f32 to vector<2x128x128xf32>
    %37 = arith.maximumf %35, %36 : vector<2x128x128xf32>
    %38 = math.sqrt %37 : vector<2x128x128xf32>
    %39 = arith.subf %29, %38 : vector<2x128x128xf32>
    %40 = math.absf %39 : vector<2x128x128xf32>
    %cst_17 = arith.constant dense<0.000000e+00> : vector<128x128xf32>
    %41 = vector.multi_reduction <add>, %40, %cst_17 [0] : vector<2x128x128xf32> to vector<128x128xf32>
    %cst_18 = arith.constant 0.000000e+00 : f32
    %42 = vector.broadcast %cst_18 : f32 to vector<8x128xf32>
    %43 = vector.extract_strided_slice %41 {offsets = [0, 0], sizes = [8, 128], strides = [1, 1]} : vector<128x128xf32> to vector<8x128xf32>
    %44 = arith.addf %42, %43 : vector<8x128xf32>
    %45 = vector.extract_strided_slice %41 {offsets = [8, 0], sizes = [8, 128], strides = [1, 1]} : vector<128x128xf32> to vector<8x128xf32>
    %46 = arith.addf %44, %45 : vector<8x128xf32>
    %47 = vector.extract_strided_slice %41 {offsets = [16, 0], sizes = [8, 128], strides = [1, 1]} : vector<128x128xf32> to vector<8x128xf32>
    %48 = arith.addf %46, %47 : vector<8x128xf32>
    %49 = vector.extract_strided_slice %41 {offsets = [24, 0], sizes = [8, 128], strides = [1, 1]} : vector<128x128xf32> to vector<8x128xf32>
    %50 = arith.addf %48, %49 : vector<8x128xf32>
    %51 = vector.extract_strided_slice %41 {offsets = [32, 0], sizes = [8, 128], strides = [1, 1]} : vector<128x128xf32> to vector<8x128xf32>
    %52 = arith.addf %50, %51 : vector<8x128xf32>
    %53 = vector.extract_strided_slice %41 {offsets = [40, 0], sizes = [8, 128], strides = [1, 1]} : vector<128x128xf32> to vector<8x128xf32>
    %54 = arith.addf %52, %53 : vector<8x128xf32>
    %55 = vector.extract_strided_slice %41 {offsets = [48, 0], sizes = [8, 128], strides = [1, 1]} : vector<128x128xf32> to vector<8x128xf32>
    %56 = arith.addf %54, %55 : vector<8x128xf32>
    %57 = vector.extract_strided_slice %41 {offsets = [56, 0], sizes = [8, 128], strides = [1, 1]} : vector<128x128xf32> to vector<8x128xf32>
    %58 = arith.addf %56, %57 : vector<8x128xf32>
    %59 = vector.extract_strided_slice %41 {offsets = [64, 0], sizes = [8, 128], strides = [1, 1]} : vector<128x128xf32> to vector<8x128xf32>
    %60 = arith.addf %58, %59 : vector<8x128xf32>
    %61 = vector.extract_strided_slice %41 {offsets = [72, 0], sizes = [8, 128], strides = [1, 1]} : vector<128x128xf32> to vector<8x128xf32>
    %62 = arith.addf %60, %61 : vector<8x128xf32>
    %63 = vector.extract_strided_slice %41 {offsets = [80, 0], sizes = [8, 128], strides = [1, 1]} : vector<128x128xf32> to vector<8x128xf32>
    %64 = arith.addf %62, %63 : vector<8x128xf32>
    %65 = vector.extract_strided_slice %41 {offsets = [88, 0], sizes = [8, 128], strides = [1, 1]} : vector<128x128xf32> to vector<8x128xf32>
    %66 = arith.addf %64, %65 : vector<8x128xf32>
    %67 = vector.extract_strided_slice %41 {offsets = [96, 0], sizes = [8, 128], strides = [1, 1]} : vector<128x128xf32> to vector<8x128xf32>
    %68 = arith.addf %66, %67 : vector<8x128xf32>
    %69 = vector.extract_strided_slice %41 {offsets = [104, 0], sizes = [8, 128], strides = [1, 1]} : vector<128x128xf32> to vector<8x128xf32>
    %70 = arith.addf %68, %69 : vector<8x128xf32>
    %71 = vector.extract_strided_slice %41 {offsets = [112, 0], sizes = [8, 128], strides = [1, 1]} : vector<128x128xf32> to vector<8x128xf32>
    %72 = arith.addf %70, %71 : vector<8x128xf32>
    %73 = vector.extract_strided_slice %41 {offsets = [120, 0], sizes = [8, 128], strides = [1, 1]} : vector<128x128xf32> to vector<8x128xf32>
    %74 = arith.addf %72, %73 : vector<8x128xf32>
    %c0_19 = arith.constant 0 : index
    %c0_20 = arith.constant 0 : index
    %c0_21 = arith.constant 0 : index
    %75 = vector.load %arg6[%c0_19, %c0_20, %c0_21] : memref<1x8x128xf32, #tpu.memory_space<vmem>>, vector<1x8x128xf32>
    %76 = vector.shape_cast %74 : vector<8x128xf32> to vector<1x8x128xf32>
    %77 = arith.addf %75, %76 : vector<1x8x128xf32>
    %c0_22 = arith.constant 0 : index
    %c0_23 = arith.constant 0 : index
    %c0_24 = arith.constant 0 : index
    %78 = vector.load %arg6[%c0_22, %c0_23, %c0_24] : memref<1x8x128xf32, #tpu.memory_space<vmem>>, vector<1x8x128xf32>
    tpu.vector_store %arg6[%c0_22, %c0_23, %c0_24], %77 {strides = array<i32>} : memref<1x8x128xf32, #tpu.memory_space<vmem>>, vector<1x8x128xf32>,
    %c0_i32_25 = arith.constant 0 : i32
    %79 = arith.cmpi eq, %arg2, %c0_i32_25 : i32
    %80 = arith.extui %79 : i1 to i32
    %c0_i32_26 = arith.constant 0 : i32
    %81 = arith.cmpi ne, %80, %c0_i32_26 : i32
    scf.if %81 {
      %82 = arith.subf %5, %6 : vector<2x128x48xf32>
      %83 = math.absf %82 : vector<2x128x48xf32>
      %cst_27 = arith.constant dense<0.000000e+00> : vector<128x48xf32>
      %84 = vector.multi_reduction <add>, %83, %cst_27 [0] : vector<2x128x48xf32> to vector<128x48xf32>
      %85 = tpu.iota {dimensions = array<i32: 0>} : vector<8x128xi32>
      %86 = tpu.iota {dimensions = array<i32: 1>} : vector<8x128xi32>
      %c0_i32_28 = arith.constant 0 : i32
      %87 = vector.broadcast %c0_i32_28 : i32 to vector<8x128xi32>
      %88 = arith.cmpi eq, %85, %87 : vector<8x128xi32>
      %c0_i32_29 = arith.constant 0 : i32
      %89 = vector.broadcast %c0_i32_29 : i32 to vector<8x128xi32>
      %90 = arith.cmpi eq, %86, %89 : vector<8x128xi32>
      %91 = arith.andi %88, %90 : vector<8x128xi1>
      %92 = vector.shape_cast %84 : vector<128x48xf32> to vector<1x128x48xf32>
      %cst_30 = arith.constant dense<0.000000e+00> : vector<1xf32>
      %93 = vector.multi_reduction <add>, %92, %cst_30 [1, 2] : vector<1x128x48xf32> to vector<1xf32>
      %94 = vector.shape_cast %93 : vector<1xf32> to vector<1x1x1xf32>
      %95 = vector.extract %94[0, 0, 0] : f32 from vector<1x1x1xf32>
      %cst_31 = arith.constant 0.000000e+00 : f32
      %96 = vector.broadcast %95 : f32 to vector<8x128xf32>
      %97 = vector.broadcast %cst_31 : f32 to vector<8x128xf32>
      %98 = arith.select %91, %96, %97 : vector<8x128xi1>, vector<8x128xf32>
      %c0_32 = arith.constant 0 : index
      %c0_33 = arith.constant 0 : index
      %c0_34 = arith.constant 0 : index
      %99 = vector.load %arg7[%c0_32, %c0_33, %c0_34] : memref<1x8x128xf32, #tpu.memory_space<vmem>>, vector<1x8x128xf32>
      %100 = vector.shape_cast %98 : vector<8x128xf32> to vector<1x8x128xf32>
      %101 = arith.addf %99, %100 : vector<1x8x128xf32>
      %c0_35 = arith.constant 0 : index
      %c0_36 = arith.constant 0 : index
      %c0_37 = arith.constant 0 : index
      %102 = vector.load %arg7[%c0_35, %c0_36, %c0_37] : memref<1x8x128xf32, #tpu.memory_space<vmem>>, vector<1x8x128xf32>
      tpu.vector_store %arg7[%c0_35, %c0_36, %c0_37], %101 {strides = array<i32>} : memref<1x8x128xf32, #tpu.memory_space<vmem>>, vector<1x8x128xf32>,
    } else {
    }
    return
  }
  func.func @transform_0(%arg0: i32, %arg1: i32, %arg2: i32) -> (i32, i32, i32) {
    %c0_i32 = arith.constant 0 : i32
    %c0_i32_0 = arith.constant 0 : i32
    return %arg0, %arg1, %c0_i32 : i32, i32, i32
  }
  func.func @transform_1(%arg0: i32, %arg1: i32, %arg2: i32) -> (i32, i32, i32) {
    %c0_i32 = arith.constant 0 : i32
    %c0_i32_0 = arith.constant 0 : i32
    return %arg0, %arg1, %c0_i32 : i32, i32, i32
  }
  func.func @transform_2(%arg0: i32, %arg1: i32, %arg2: i32) -> (i32, i32, i32) {
    %c0_i32 = arith.constant 0 : i32
    %c0_i32_0 = arith.constant 0 : i32
    return %arg0, %arg2, %c0_i32 : i32, i32, i32
  }
  func.func @transform_3(%arg0: i32, %arg1: i32, %arg2: i32) -> (i32, i32, i32) {
    %c0_i32 = arith.constant 0 : i32
    %c0_i32_0 = arith.constant 0 : i32
    %c0_i32_1 = arith.constant 0 : i32
    return %arg0, %c0_i32, %c0_i32_0 : i32, i32, i32
  }
  func.func @transform_4(%arg0: i32, %arg1: i32, %arg2: i32) -> (i32, i32, i32) {
    %c0_i32 = arith.constant 0 : i32
    %c0_i32_0 = arith.constant 0 : i32
    %c0_i32_1 = arith.constant 0 : i32
    return %arg0, %c0_i32, %c0_i32_0 : i32, i32, i32
  }
}

</mosaic_0001>

<llo_original>
// kernel: tpu_custom_call.1
$region0: #{tpu_custom_call.1}
  #allocation0 [shape = 'u32[]', space=smem, size = 0x4, offset = 0x4, fixed_abs, tag = 'smem constant byte address 0x4 - core index']
  #allocation1 [shape = 'u32[144,128]{1,0:T(1,128)}', space=vmem, size = 0x12000, scoped, tag = 'internal scratch']
  %s0 = inlined_call_operand.vmem [shape: f32[4,256,48], index: 0, kind: input, shape index: {}]
  %s1 = inlined_call_operand.vmem [shape: f32[4,256,48], index: 1, kind: input, shape index: {}]
  %s2 = inlined_call_operand.vmem [shape: f32[4,256,48], index: 2, kind: input, shape index: {}]
  %s3 = inlined_call_operand.hbm [shape: f32[2,8,128], index: 3, kind: output, shape index: {0}]
  %s4 = inlined_call_operand.hbm [shape: f32[2,8,128], index: 4, kind: output, shape index: {1}]
  %5 = xla_tuple %s3, %s4
  %s6 = sld [smem:[#allocation0]]
  $region175: #{tpu_custom_call.1} parent=0
    _
  %s8 = ssub.s32 1, %s6
  %s9 = scalar_select 0, %s8, %s6
  $region1: #{tpu_custom_call.1} parent=0
    #allocation2 [shape = 'u8[262144]{0}', space=vmem, size = 0x40000, scoped, tag = 'input window, operand 0']
    #allocation3 [shape = 'u8[262144]{0}', space=vmem, size = 0x40000, scoped, tag = 'input window, operand 1']
    #allocation4 [shape = 'u8[262144]{0}', space=vmem, size = 0x40000, scoped, tag = 'input window, operand 2']
    #allocation5 [shape = 'u8[8192]{0}', space=vmem, size = 0x2000, scoped, tag = 'output window, operand 0']
    #allocation6 [shape = 's32[2]{0}', space=sflag, size = 0x8, scoped, tag = 'scoped memory for tpu_custom_call.1']
    #allocation7 [shape = 'u8[8192]{0}', space=vmem, size = 0x2000, scoped, tag = 'output window, operand 1']
    #allocation8 [shape = 's32[2]{0}', space=sflag, size = 0x8, scoped, tag = 'scoped memory for tpu_custom_call.1']
    %10 = vsyncpa [#allocation6], 0
    %s11 = scalar_lea.sflag [#allocation6], 1
    %12 = vsyncpa %s11, 0
    %13 = vsyncpa [#allocation8], 0
    %s14 = scalar_lea.sflag [#allocation8], 1
    %15 = vsyncpa %s14, 0
    loop: start=0, step=1, limit=10
    $region2: #{tpu_custom_call.1} parent=1 // loop_pre_header
      _
    $region3: #{tpu_custom_call.1} parent=1 // loop_header
      %s17 = sphi 0, %s21
      %p18 = scmp.ge.s32.totalorder %s17, 10
      %s24 = sphi 0, %s43
      %s25 = sphi 0, %s39
      %s26 = sphi 0, %s35
      %s27 = sphi 0, %s24
      %s28 = sphi 0, %s25
      %s29 = sphi 0, %s26
      %s30 = sphi 0, %s27
      %s31 = sphi 0, %s28
      %s32 = sphi 0, %s29
      %s48 = sphi 0, %s50
      %s51 = sphi 0, %s48
      %s52 = sphi 0, %s51
      %s68 = sphi 0, %s52
      %s76 = sphi 0, %s78
      %s79 = sphi 0, %s76
      %s80 = sphi 0, %s79
      %s96 = sphi 0, %s80
      %s104 = sphi 0, %s106
      %s107 = sphi 0, %s104
      %s108 = sphi 0, %s107
      %s124 = sphi 0, %s108
      %s130 = sphi 0, %s132
      %s133 = sphi 0, %s130
      %s134 = sphi 0, %s133
      %s150 = sphi 0, %s134
      %s156 = sphi 0, %s158
      %s159 = sphi 0, %s156
      %s160 = sphi 0, %s159
      %s176 = sphi 0, %s160
    $region4: #{tpu_custom_call.1} parent=1 // loop_header_branch
      %20 = sbr.rel (%p18) target = $region8
    $region5: #{tpu_custom_call.1} parent=1 // loop_body
      %s22 = ssub.s32 %s17, 1
      %s23 = ssub.s32 %s17, 2
      %s33 = sadd.s32 1, %s26
      %p34 = scmp.ge.s32.totalorder %s33, 2
      %s35 = scalar_select %p34, 0, %s33
      %s36 = sadd.s32 1, %s25
      %s37 = scalar_select %p34, %s36, %s25
      %p38 = scmp.ge.s32.totalorder %s37, 2
      %s39 = scalar_select %p38, 0, %s37
      %s40 = sadd.s32 1, %s24
      %s41 = scalar_select %p38, %s40, %s24
      %p42 = scmp.ge.s32.totalorder %s41, 2
      %s43 = scalar_select %p42, 0, %s41
      %s44 = ssub.s32 %s24, %s43
      %s45 = ssub.s32 %s25, %s39
      %s46 = sor.u32 %s44, %s45
      %p47 = scmp.eq.s32.totalorder %s46, 0
      %s49 = sadd.s32 %s48, 1
      %s50 = scalar_select %p47, %s48, %s49
      %p53 = pneg %p47
      %p54 = scmp.eq.s32.totalorder %s17, 7
      %p55 = por %p53, %p54
      %p56 = scmp.ne.s32.totalorder %s48, %s51
      %p57 = scmp.eq.s32.totalorder %s17, 0
      %p58 = por %p56, %p57
      %p59 = scmp.ne.s32.totalorder %s48, %s51
      %p60 = scmp.eq.s32.totalorder %s22, 7
      %p61 = por %p59, %p60
      %p62 = scmp.ne.s32.totalorder %s51, %s52
      %p63 = scmp.eq.s32.totalorder %s22, 0
      %p64 = por %p62, %p63
      %p65 = scmp.ne.s32.totalorder %s51, %s52
      %p66 = scmp.eq.s32.totalorder %s23, 7
      %p67 = por %p65, %p66
      %p69 = scmp.ne.s32.totalorder %s52, %s68
      %p70 = scmp.eq.s32.totalorder %s23, 0
      %p71 = por %p69, %p70
      %s72 = ssub.s32 %s24, %s43
      %s73 = ssub.s32 %s25, %s39
      %s74 = sor.u32 %s72, %s73
      %p75 = scmp.eq.s32.totalorder %s74, 0
      %s77 = sadd.s32 %s76, 1
      %s78 = scalar_select %p75, %s76, %s77
      %p81 = pneg %p75
      %p82 = scmp.eq.s32.totalorder %s17, 7
      %p83 = por %p81, %p82
      %p84 = scmp.ne.s32.totalorder %s76, %s79
      %p85 = scmp.eq.s32.totalorder %s17, 0
      %p86 = por %p84, %p85
      %p87 = scmp.ne.s32.totalorder %s76, %s79
      %p88 = scmp.eq.s32.totalorder %s22, 7
      %p89 = por %p87, %p88
      %p90 = scmp.ne.s32.totalorder %s79, %s80
      %p91 = scmp.eq.s32.totalorder %s22, 0
      %p92 = por %p90, %p91
      %p93 = scmp.ne.s32.totalorder %s79, %s80
      %p94 = scmp.eq.s32.totalorder %s23, 7
      %p95 = por %p93, %p94
      %p97 = scmp.ne.s32.totalorder %s80, %s96
      %p98 = scmp.eq.s32.totalorder %s23, 0
      %p99 = por %p97, %p98
      %s100 = ssub.s32 %s24, %s43
      %s101 = ssub.s32 %s26, %s35
      %s102 = sor.u32 %s100, %s101
      %p103 = scmp.eq.s32.totalorder %s102, 0
      %s105 = sadd.s32 %s104, 1
      %s106 = scalar_select %p103, %s104, %s105
      %p109 = pneg %p103
      %p110 = scmp.eq.s32.totalorder %s17, 7
      %p111 = por %p109, %p110
      %p112 = scmp.ne.s32.totalorder %s104, %s107
      %p113 = scmp.eq.s32.totalorder %s17, 0
      %p114 = por %p112, %p113
      %p115 = scmp.ne.s32.totalorder %s104, %s107
      %p116 = scmp.eq.s32.totalorder %s22, 7
      %p117 = por %p115, %p116
      %p118 = scmp.ne.s32.totalorder %s107, %s108
      %p119 = scmp.eq.s32.totalorder %s22, 0
      %p120 = por %p118, %p119
      %p121 = scmp.ne.s32.totalorder %s107, %s108
      %p122 = scmp.eq.s32.totalorder %s23, 7
      %p123 = por %p121, %p122
      %p125 = scmp.ne.s32.totalorder %s108, %s124
      %p126 = scmp.eq.s32.totalorder %s23, 0
      %p127 = por %p125, %p126
      %s128 = ssub.s32 %s24, %s43
      %p129 = scmp.eq.s32.totalorder %s128, 0
      %s131 = sadd.s32 %s130, 1
      %s132 = scalar_select %p129, %s130, %s131
      %p135 = pneg %p129
      %p136 = scmp.eq.s32.totalorder %s17, 7
      %p137 = por %p135, %p136
      %p138 = scmp.ne.s32.totalorder %s130, %s133
      %p139 = scmp.eq.s32.totalorder %s17, 0
      %p140 = por %p138, %p139
      %p141 = scmp.ne.s32.totalorder %s130, %s133
      %p142 = scmp.eq.s32.totalorder %s22, 7
      %p143 = por %p141, %p142
      %p144 = scmp.ne.s32.totalorder %s133, %s134
      %p145 = scmp.eq.s32.totalorder %s22, 0
      %p146 = por %p144, %p145
      %p147 = scmp.ne.s32.totalorder %s133, %s134
      %p148 = scmp.eq.s32.totalorder %s23, 7
      %p149 = por %p147, %p148
      %p151 = scmp.ne.s32.totalorder %s134, %s150
      %p152 = scmp.eq.s32.totalorder %s23, 0
      %p153 = por %p151, %p152
      %s154 = ssub.s32 %s24, %s43
      %p155 = scmp.eq.s32.totalorder %s154, 0
      %s157 = sadd.s32 %s156, 1
      %s158 = scalar_select %p155, %s156, %s157
      %p161 = pneg %p155
      %p162 = scmp.eq.s32.totalorder %s17, 7
      %p163 = por %p161, %p162
      %p164 = scmp.ne.s32.totalorder %s156, %s159
      %p165 = scmp.eq.s32.totalorder %s17, 0
      %p166 = por %p164, %p165
      %p167 = scmp.ne.s32.totalorder %s156, %s159
      %p168 = scmp.eq.s32.totalorder %s22, 7
      %p169 = por %p167, %p168
      %p170 = scmp.ne.s32.totalorder %s159, %s160
      %p171 = scmp.eq.s32.totalorder %s22, 0
      %p172 = por %p170, %p171
      %p173 = scmp.ne.s32.totalorder %s159, %s160
      %p174 = scmp.eq.s32.totalorder %s23, 7
      %p175 = por %p173, %p174
      %p177 = scmp.ne.s32.totalorder %s160, %s176
      %p178 = scmp.eq.s32.totalorder %s23, 0
      %p179 = por %p177, %p178
      %p180 = scmp.le.s32.totalorder 1, %s17
      %p181 = scmp.lt.s32.totalorder %s17, 9
      %p182 = pnand %p180, %p181
      %p183 = pneg %p182
      // Predicated region
      $region9: #{tpu_custom_call.1} parent=5 // pred_check
        _
      $region10: #{tpu_custom_call.1} parent=5 // pred_check_branch
        %185 = sbr.rel (%p182) target = $region12
      $region11: #{tpu_custom_call.1} parent=5 // pred_region
        %s186 = ssub.s32 %s17, 1
      $region12: #{tpu_custom_call.1} parent=5 // pred_fallthru
        _
      %p187 = scmp.lt.s32.totalorder %s17, 8
      // Predicated region
      $region13: #{tpu_custom_call.1} parent=5 // pred_check
        %p188 = pneg %p187
      $region14: #{tpu_custom_call.1} parent=5 // pred_check_branch
        %190 = sbr.rel (%p188) target = $region16
      $region15: #{tpu_custom_call.1} parent=5 // pred_region
        // Predicated region
        $region17: #{tpu_custom_call.1} parent=15 // pred_check
          %p191 = pneg %p58
        $region18: #{tpu_custom_call.1} parent=15 // pred_check_branch
          %193 = sbr.rel (%p191) target = $region20
        $region19: #{tpu_custom_call.1} parent=15 // pred_region
          %s194 = sand.u32 %s48, 1
          %s195 = sand.u32 %s48, 1
          %s196 = smul.addr %s195, 256
          %s197 = scalar_lea.vmem [#allocation2], %s196
          %s198 = smul.u32 2, %s24
          %s199 = smul.u32 16, %s25
          %s200 = smul.addr %s198, 32
          %s201 = sadd.s32 %s199, %s200
          %s202 = smul.addr %s201, 8
          %s203 = scalar_lea.vmem %s0, %s202
          // Predicated region
          $region21: #{tpu_custom_call.1} parent=19 // pred_check
            _
          $region22: #{tpu_custom_call.1} parent=19 // pred_check_branch
            %205 = sbr.rel (0) target = $region24
          $region23: #{tpu_custom_call.1} parent=19 // pred_region
            // Predicated region
            $region25: #{tpu_custom_call.1} parent=23 // pred_check
              _
            $region26: #{tpu_custom_call.1} parent=23 // pred_check_branch
              %207 = sbr.rel (0) target = $region28
            $region27: #{tpu_custom_call.1} parent=23 // pred_region
              // Predicated region
              $region40: #{tpu_custom_call.1} parent=27 // pred_check
                _
              $region41: #{tpu_custom_call.1} parent=27 // pred_check_branch
                %284 = sbr.rel (0) target = $region43
              $region42: #{tpu_custom_call.1} parent=27 // pred_region
                loop: start=0, step=1, limit=1
                $region44: #{tpu_custom_call.1} parent=42 // loop_pre_header
                  _
                $region45: #{tpu_custom_call.1} parent=42 // loop_header
                  %s286 = sphi 0, %s290
                  %p287 = scmp.ge.s32.totalorder %s286, 1
                  %s291 = sphi %s203, %s203
                  %s292 = sphi %s197, %s197
                $region46: #{tpu_custom_call.1} parent=42 // loop_header_branch
                  %289 = sbr.rel (%p287) target = $region50
                $region47: #{tpu_custom_call.1} parent=42 // loop_body
                  %v293 = vld [vmem:[%s291] sm:$0xff]
                  %294 = vst [vmem:[%s292] sm:$0xff] %v293
                  %v295 = vld [vmem:[%s291 + $0x8] sm:$0xff]
                  %296 = vst [vmem:[%s292 + $0x8] sm:$0xff] %v295
                  %v297 = vld [vmem:[%s291 + $0x10] sm:$0xff]
                  %298 = vst [vmem:[%s292 + $0x10] sm:$0xff] %v297
                  %v299 = vld [vmem:[%s291 + $0x18] sm:$0xff]
                  %300 = vst [vmem:[%s292 + $0x18] sm:$0xff] %v299
                  %v301 = vld [vmem:[%s291 + $0x20] sm:$0xff]
                  %302 = vst [vmem:[%s292 + $0x20] sm:$0xff] %v301
                  %v303 = vld [vmem:[%s291 + $0x28] sm:$0xff]
                  %304 = vst [vmem:[%s292 + $0x28] sm:$0xff] %v303
                  %v305 = vld [vmem:[%s291 + $0x30] sm:$0xff]
                  %306 = vst [vmem:[%s292 + $0x30] sm:$0xff] %v305
                  %v307 = vld [vmem:[%s291 + $0x38] sm:$0xff]
                  %308 = vst [vmem:[%s292 + $0x38] sm:$0xff] %v307
                  %v309 = vld [vmem:[%s291 + $0x40] sm:$0xff]
                  %310 = vst [vmem:[%s292 + $0x40] sm:$0xff] %v309
                  %v311 = vld [vmem:[%s291 + $0x48] sm:$0xff]
                  %312 = vst [vmem:[%s292 + $0x48] sm:$0xff] %v311
                  %v313 = vld [vmem:[%s291 + $0x50] sm:$0xff]
                  %314 = vst [vmem:[%s292 + $0x50] sm:$0xff] %v313
                  %v315 = vld [vmem:[%s291 + $0x58] sm:$0xff]
                  %316 = vst [vmem:[%s292 + $0x58] sm:$0xff] %v315
                  %v317 = vld [vmem:[%s291 + $0x60] sm:$0xff]
                  %318 = vst [vmem:[%s292 + $0x60] sm:$0xff] %v317
                  %v319 = vld [vmem:[%s291 + $0x68] sm:$0xff]
                  %320 = vst [vmem:[%s292 + $0x68] sm:$0xff] %v319
                  %v321 = vld [vmem:[%s291 + $0x70] sm:$0xff]
                  %322 = vst [vmem:[%s292 + $0x70] sm:$0xff] %v321
                  %v323 = vld [vmem:[%s291 + $0x78] sm:$0xff]
                  %324 = vst [vmem:[%s292 + $0x78] sm:$0xff] %v323
                  %v325 = vld [vmem:[%s291 + $0x100] sm:$0xff]
                  %326 = vst [vmem:[%s292 + $0x80] sm:$0xff] %v325
                  %v327 = vld [vmem:[%s291 + $0x108] sm:$0xff]
                  %328 = vst [vmem:[%s292 + $0x88] sm:$0xff] %v327
                  %v329 = vld [vmem:[%s291 + $0x110] sm:$0xff]
                  %330 = vst [vmem:[%s292 + $0x90] sm:$0xff] %v329
                  %v331 = vld [vmem:[%s291 + $0x118] sm:$0xff]
                  %332 = vst [vmem:[%s292 + $0x98] sm:$0xff] %v331
                  %v333 = vld [vmem:[%s291 + $0x120] sm:$0xff]
                  %334 = vst [vmem:[%s292 + $0xa0] sm:$0xff] %v333
                  %v335 = vld [vmem:[%s291 + $0x128] sm:$0xff]
                  %336 = vst [vmem:[%s292 + $0xa8] sm:$0xff] %v335
                  %v337 = vld [vmem:[%s291 + $0x130] sm:$0xff]
                  %338 = vst [vmem:[%s292 + $0xb0] sm:$0xff] %v337
                  %v339 = vld [vmem:[%s291 + $0x138] sm:$0xff]
                  %340 = vst [vmem:[%s292 + $0xb8] sm:$0xff] %v339
                  %v341 = vld [vmem:[%s291 + $0x140] sm:$0xff]
                  %342 = vst [vmem:[%s292 + $0xc0] sm:$0xff] %v341
                  %v343 = vld [vmem:[%s291 + $0x148] sm:$0xff]
                  %344 = vst [vmem:[%s292 + $0xc8] sm:$0xff] %v343
                  %v345 = vld [vmem:[%s291 + $0x150] sm:$0xff]
                  %346 = vst [vmem:[%s292 + $0xd0] sm:$0xff] %v345
                  %v347 = vld [vmem:[%s291 + $0x158] sm:$0xff]
                  %348 = vst [vmem:[%s292 + $0xd8] sm:$0xff] %v347
                  %v349 = vld [vmem:[%s291 + $0x160] sm:$0xff]
                  %350 = vst [vmem:[%s292 + $0xe0] sm:$0xff] %v349
                  %v351 = vld [vmem:[%s291 + $0x168] sm:$0xff]
                  %352 = vst [vmem:[%s292 + $0xe8] sm:$0xff] %v351
                  %v353 = vld [vmem:[%s291 + $0x170] sm:$0xff]
                  %354 = vst [vmem:[%s292 + $0xf0] sm:$0xff] %v353
                  %v355 = vld [vmem:[%s291 + $0x178] sm:$0xff]
                  %356 = vst [vmem:[%s292 + $0xf8] sm:$0xff] %v355
                $region48: #{tpu_custom_call.1} parent=42 // loop_footer
                  %s290 = sadd.s32 1, %s286
                $region49: #{tpu_custom_call.1} parent=42 // loop_footer_branch
                  %285 = sbr.rel target = $region45
                $region50: #{tpu_custom_call.1} parent=42 // loop_exit
                  _
              $region43: #{tpu_custom_call.1} parent=27 // pred_fallthru
                _
              // Predicated region
              $region51: #{tpu_custom_call.1} parent=27 // pred_check
                _
              $region52: #{tpu_custom_call.1} parent=27 // pred_check_branch
                %358 = sbr.rel target = $region54
              $region53: #{tpu_custom_call.1} parent=27 // pred_region
                _
              $region54: #{tpu_custom_call.1} parent=27 // pred_fallthru
                _
            $region28: #{tpu_custom_call.1} parent=23 // pred_fallthru
              _
            // Predicated region
            $region29: #{tpu_custom_call.1} parent=23 // pred_check
              _
            $region30: #{tpu_custom_call.1} parent=23 // pred_check_branch
              %209 = sbr.rel target = $region32
            $region31: #{tpu_custom_call.1} parent=23 // pred_region
              loop: start=0, step=1, limit=1
              $region33: #{tpu_custom_call.1} parent=31 // loop_pre_header
                _
              $region34: #{tpu_custom_call.1} parent=31 // loop_header
                %s212 = sphi 0, %s216
                %p213 = scmp.ge.s32.totalorder %s212, 1
                %s217 = sphi %s203, %s203
                %s218 = sphi %s197, %s197
              $region35: #{tpu_custom_call.1} parent=31 // loop_header_branch
                %215 = sbr.rel (%p213) target = $region39
              $region36: #{tpu_custom_call.1} parent=31 // loop_body
                %v219 = vld [vmem:[%s217] sm:$0xff]
                %220 = vst [vmem:[%s218] sm:$0xff] %v219
                %v221 = vld [vmem:[%s217 + $0x8] sm:$0xff]
                %222 = vst [vmem:[%s218 + $0x8] sm:$0xff] %v221
                %v223 = vld [vmem:[%s217 + $0x10] sm:$0xff]
                %224 = vst [vmem:[%s218 + $0x10] sm:$0xff] %v223
                %v225 = vld [vmem:[%s217 + $0x18] sm:$0xff]
                %226 = vst [vmem:[%s218 + $0x18] sm:$0xff] %v225
                %v227 = vld [vmem:[%s217 + $0x20] sm:$0xff]
                %228 = vst [vmem:[%s218 + $0x20] sm:$0xff] %v227
                %v229 = vld [vmem:[%s217 + $0x28] sm:$0xff]
                %230 = vst [vmem:[%s218 + $0x28] sm:$0xff] %v229
                %v231 = vld [vmem:[%s217 + $0x30] sm:$0xff]
                %232 = vst [vmem:[%s218 + $0x30] sm:$0xff] %v231
                %v233 = vld [vmem:[%s217 + $0x38] sm:$0xff]
                %234 = vst [vmem:[%s218 + $0x38] sm:$0xff] %v233
                %v235 = vld [vmem:[%s217 + $0x40] sm:$0xff]
                %236 = vst [vmem:[%s218 + $0x40] sm:$0xff] %v235
                %v237 = vld [vmem:[%s217 + $0x48] sm:$0xff]
                %238 = vst [vmem:[%s218 + $0x48] sm:$0xff] %v237
                %v239 = vld [vmem:[%s217 + $0x50] sm:$0xff]
                %240 = vst [vmem:[%s218 + $0x50] sm:$0xff] %v239
                %v241 = vld [vmem:[%s217 + $0x58] sm:$0xff]
                %242 = vst [vmem:[%s218 + $0x58] sm:$0xff] %v241
                %v243 = vld [vmem:[%s217 + $0x60] sm:$0xff]
                %244 = vst [vmem:[%s218 + $0x60] sm:$0xff] %v243
                %v245 = vld [vmem:[%s217 + $0x68] sm:$0xff]
                %246 = vst [vmem:[%s218 + $0x68] sm:$0xff] %v245
                %v247 = vld [vmem:[%s217 + $0x70] sm:$0xff]
                %248 = vst [vmem:[%s218 + $0x70] sm:$0xff] %v247
                %v249 = vld [vmem:[%s217 + $0x78] sm:$0xff]
                %250 = vst [vmem:[%s218 + $0x78] sm:$0xff] %v249
                %v251 = vld [vmem:[%s217 + $0x100] sm:$0xff]
                %252 = vst [vmem:[%s218 + $0x80] sm:$0xff] %v251
                %v253 = vld [vmem:[%s217 + $0x108] sm:$0xff]
                %254 = vst [vmem:[%s218 + $0x88] sm:$0xff] %v253
                %v255 = vld [vmem:[%s217 + $0x110] sm:$0xff]
                %256 = vst [vmem:[%s218 + $0x90] sm:$0xff] %v255
                %v257 = vld [vmem:[%s217 + $0x118] sm:$0xff]
                %258 = vst [vmem:[%s218 + $0x98] sm:$0xff] %v257
                %v259 = vld [vmem:[%s217 + $0x120] sm:$0xff]
                %260 = vst [vmem:[%s218 + $0xa0] sm:$0xff] %v259
                %v261 = vld [vmem:[%s217 + $0x128] sm:$0xff]
                %262 = vst [vmem:[%s218 + $0xa8] sm:$0xff] %v261
                %v263 = vld [vmem:[%s217 + $0x130] sm:$0xff]
                %264 = vst [vmem:[%s218 + $0xb0] sm:$0xff] %v263
                %v265 = vld [vmem:[%s217 + $0x138] sm:$0xff]
                %266 = vst [vmem:[%s218 + $0xb8] sm:$0xff] %v265
                %v267 = vld [vmem:[%s217 + $0x140] sm:$0xff]
                %268 = vst [vmem:[%s218 + $0xc0] sm:$0xff] %v267
                %v269 = vld [vmem:[%s217 + $0x148] sm:$0xff]
                %270 = vst [vmem:[%s218 + $0xc8] sm:$0xff] %v269
                %v271 = vld [vmem:[%s217 + $0x150] sm:$0xff]
                %272 = vst [vmem:[%s218 + $0xd0] sm:$0xff] %v271
                %v273 = vld [vmem:[%s217 + $0x158] sm:$0xff]
                %274 = vst [vmem:[%s218 + $0xd8] sm:$0xff] %v273
                %v275 = vld [vmem:[%s217 + $0x160] sm:$0xff]
                %276 = vst [vmem:[%s218 + $0xe0] sm:$0xff] %v275
                %v277 = vld [vmem:[%s217 + $0x168] sm:$0xff]
                %278 = vst [vmem:[%s218 + $0xe8] sm:$0xff] %v277
                %v279 = vld [vmem:[%s217 + $0x170] sm:$0xff]
                %280 = vst [vmem:[%s218 + $0xf0] sm:$0xff] %v279
                %v281 = vld [vmem:[%s217 + $0x178] sm:$0xff]
                %282 = vst [vmem:[%s218 + $0xf8] sm:$0xff] %v281
              $region37: #{tpu_custom_call.1} parent=31 // loop_footer
                %s216 = sadd.s32 1, %s212
              $region38: #{tpu_custom_call.1} parent=31 // loop_footer_branch
                %211 = sbr.rel target = $region34
              $region39: #{tpu_custom_call.1} parent=31 // loop_exit
                _
            $region32: #{tpu_custom_call.1} parent=23 // pred_fallthru
              _
          $region24: #{tpu_custom_call.1} parent=19 // pred_fallthru
            _
          %359 = vnop
        $region20: #{tpu_custom_call.1} parent=15 // pred_fallthru
          _
        // Predicated region
        $region55: #{tpu_custom_call.1} parent=15 // pred_check
          %p360 = pneg %p86
        $region56: #{tpu_custom_call.1} parent=15 // pred_check_branch
          %362 = sbr.rel (%p360) target = $region58
        $region57: #{tpu_custom_call.1} parent=15 // pred_region
          %s363 = sand.u32 %s76, 1
          %s364 = sand.u32 %s76, 1
          %s365 = smul.addr %s364, 256
          %s366 = scalar_lea.vmem [#allocation3], %s365
          %s367 = smul.u32 2, %s24
          %s368 = smul.u32 16, %s25
          %s369 = smul.addr %s367, 32
          %s370 = sadd.s32 %s368, %s369
          %s371 = smul.addr %s370, 8
          %s372 = scalar_lea.vmem %s1, %s371
          // Predicated region
          $region59: #{tpu_custom_call.1} parent=57 // pred_check
            _
          $region60: #{tpu_custom_call.1} parent=57 // pred_check_branch
            %374 = sbr.rel (0) target = $region62
          $region61: #{tpu_custom_call.1} parent=57 // pred_region
            // Predicated region
            $region63: #{tpu_custom_call.1} parent=61 // pred_check
              _
            $region64: #{tpu_custom_call.1} parent=61 // pred_check_branch
              %376 = sbr.rel (0) target = $region66
            $region65: #{tpu_custom_call.1} parent=61 // pred_region
              // Predicated region
              $region78: #{tpu_custom_call.1} parent=65 // pred_check
                _
              $region79: #{tpu_custom_call.1} parent=65 // pred_check_branch
                %453 = sbr.rel (0) target = $region81
              $region80: #{tpu_custom_call.1} parent=65 // pred_region
                loop: start=0, step=1, limit=1
                $region82: #{tpu_custom_call.1} parent=80 // loop_pre_header
                  _
                $region83: #{tpu_custom_call.1} parent=80 // loop_header
                  %s455 = sphi 0, %s459
                  %p456 = scmp.ge.s32.totalorder %s455, 1
                  %s460 = sphi %s372, %s372
                  %s461 = sphi %s366, %s366
                $region84: #{tpu_custom_call.1} parent=80 // loop_header_branch
                  %458 = sbr.rel (%p456) target = $region88
                $region85: #{tpu_custom_call.1} parent=80 // loop_body
                  %v462 = vld [vmem:[%s460] sm:$0xff]
                  %463 = vst [vmem:[%s461] sm:$0xff] %v462
                  %v464 = vld [vmem:[%s460 + $0x8] sm:$0xff]
                  %465 = vst [vmem:[%s461 + $0x8] sm:$0xff] %v464
                  %v466 = vld [vmem:[%s460 + $0x10] sm:$0xff]
                  %467 = vst [vmem:[%s461 + $0x10] sm:$0xff] %v466
                  %v468 = vld [vmem:[%s460 + $0x18] sm:$0xff]
                  %469 = vst [vmem:[%s461 + $0x18] sm:$0xff] %v468
                  %v470 = vld [vmem:[%s460 + $0x20] sm:$0xff]
                  %471 = vst [vmem:[%s461 + $0x20] sm:$0xff] %v470
                  %v472 = vld [vmem:[%s460 + $0x28] sm:$0xff]
                  %473 = vst [vmem:[%s461 + $0x28] sm:$0xff] %v472
                  %v474 = vld [vmem:[%s460 + $0x30] sm:$0xff]
                  %475 = vst [vmem:[%s461 + $0x30] sm:$0xff] %v474
                  %v476 = vld [vmem:[%s460 + $0x38] sm:$0xff]
                  %477 = vst [vmem:[%s461 + $0x38] sm:$0xff] %v476
                  %v478 = vld [vmem:[%s460 + $0x40] sm:$0xff]
                  %479 = vst [vmem:[%s461 + $0x40] sm:$0xff] %v478
                  %v480 = vld [vmem:[%s460 + $0x48] sm:$0xff]
                  %481 = vst [vmem:[%s461 + $0x48] sm:$0xff] %v480
                  %v482 = vld [vmem:[%s460 + $0x50] sm:$0xff]
                  %483 = vst [vmem:[%s461 + $0x50] sm:$0xff] %v482
                  %v484 = vld [vmem:[%s460 + $0x58] sm:$0xff]
                  %485 = vst [vmem:[%s461 + $0x58] sm:$0xff] %v484
                  %v486 = vld [vmem:[%s460 + $0x60] sm:$0xff]
                  %487 = vst [vmem:[%s461 + $0x60] sm:$0xff] %v486
                  %v488 = vld [vmem:[%s460 + $0x68] sm:$0xff]
                  %489 = vst [vmem:[%s461 + $0x68] sm:$0xff] %v488
                  %v490 = vld [vmem:[%s460 + $0x70] sm:$0xff]
                  %491 = vst [vmem:[%s461 + $0x70] sm:$0xff] %v490
                  %v492 = vld [vmem:[%s460 + $0x78] sm:$0xff]
                  %493 = vst [vmem:[%s461 + $0x78] sm:$0xff] %v492
                  %v494 = vld [vmem:[%s460 + $0x100] sm:$0xff]
                  %495 = vst [vmem:[%s461 + $0x80] sm:$0xff] %v494
                  %v496 = vld [vmem:[%s460 + $0x108] sm:$0xff]
                  %497 = vst [vmem:[%s461 + $0x88] sm:$0xff] %v496
                  %v498 = vld [vmem:[%s460 + $0x110] sm:$0xff]
                  %499 = vst [vmem:[%s461 + $0x90] sm:$0xff] %v498
                  %v500 = vld [vmem:[%s460 + $0x118] sm:$0xff]
                  %501 = vst [vmem:[%s461 + $0x98] sm:$0xff] %v500
                  %v502 = vld [vmem:[%s460 + $0x120] sm:$0xff]
                  %503 = vst [vmem:[%s461 + $0xa0] sm:$0xff] %v502
                  %v504 = vld [vmem:[%s460 + $0x128] sm:$0xff]
                  %505 = vst [vmem:[%s461 + $0xa8] sm:$0xff] %v504
                  %v506 = vld [vmem:[%s460 + $0x130] sm:$0xff]
                  %507 = vst [vmem:[%s461 + $0xb0] sm:$0xff] %v506
                  %v508 = vld [vmem:[%s460 + $0x138] sm:$0xff]
                  %509 = vst [vmem:[%s461 + $0xb8] sm:$0xff] %v508
                  %v510 = vld [vmem:[%s460 + $0x140] sm:$0xff]
                  %511 = vst [vmem:[%s461 + $0xc0] sm:$0xff] %v510
                  %v512 = vld [vmem:[%s460 + $0x148] sm:$0xff]
                  %513 = vst [vmem:[%s461 + $0xc8] sm:$0xff] %v512
                  %v514 = vld [vmem:[%s460 + $0x150] sm:$0xff]
                  %515 = vst [vmem:[%s461 + $0xd0] sm:$0xff] %v514
                  %v516 = vld [vmem:[%s460 + $0x158] sm:$0xff]
                  %517 = vst [vmem:[%s461 + $0xd8] sm:$0xff] %v516
                  %v518 = vld [vmem:[%s460 + $0x160] sm:$0xff]
                  %519 = vst [vmem:[%s461 + $0xe0] sm:$0xff] %v518
                  %v520 = vld [vmem:[%s460 + $0x168] sm:$0xff]
                  %521 = vst [vmem:[%s461 + $0xe8] sm:$0xff] %v520
                  %v522 = vld [vmem:[%s460 + $0x170] sm:$0xff]
                  %523 = vst [vmem:[%s461 + $0xf0] sm:$0xff] %v522
                  %v524 = vld [vmem:[%s460 + $0x178] sm:$0xff]
                  %525 = vst [vmem:[%s461 + $0xf8] sm:$0xff] %v524
                $region86: #{tpu_custom_call.1} parent=80 // loop_footer
                  %s459 = sadd.s32 1, %s455
                $region87: #{tpu_custom_call.1} parent=80 // loop_footer_branch
                  %454 = sbr.rel target = $region83
                $region88: #{tpu_custom_call.1} parent=80 // loop_exit
                  _
              $region81: #{tpu_custom_call.1} parent=65 // pred_fallthru
                _
              // Predicated region
              $region89: #{tpu_custom_call.1} parent=65 // pred_check
                _
              $region90: #{tpu_custom_call.1} parent=65 // pred_check_branch
                %527 = sbr.rel target = $region92
              $region91: #{tpu_custom_call.1} parent=65 // pred_region
                _
              $region92: #{tpu_custom_call.1} parent=65 // pred_fallthru
                _
            $region66: #{tpu_custom_call.1} parent=61 // pred_fallthru
              _
            // Predicated region
            $region67: #{tpu_custom_call.1} parent=61 // pred_check
              _
            $region68: #{tpu_custom_call.1} parent=61 // pred_check_branch
              %378 = sbr.rel target = $region70
            $region69: #{tpu_custom_call.1} parent=61 // pred_region
              loop: start=0, step=1, limit=1
              $region71: #{tpu_custom_call.1} parent=69 // loop_pre_header
                _
              $region72: #{tpu_custom_call.1} parent=69 // loop_header
                %s381 = sphi 0, %s385
                %p382 = scmp.ge.s32.totalorder %s381, 1
                %s386 = sphi %s372, %s372
                %s387 = sphi %s366, %s366
              $region73: #{tpu_custom_call.1} parent=69 // loop_header_branch
                %384 = sbr.rel (%p382) target = $region77
              $region74: #{tpu_custom_call.1} parent=69 // loop_body
                %v388 = vld [vmem:[%s386] sm:$0xff]
                %389 = vst [vmem:[%s387] sm:$0xff] %v388
                %v390 = vld [vmem:[%s386 + $0x8] sm:$0xff]
                %391 = vst [vmem:[%s387 + $0x8] sm:$0xff] %v390
                %v392 = vld [vmem:[%s386 + $0x10] sm:$0xff]
                %393 = vst [vmem:[%s387 + $0x10] sm:$0xff] %v392
                %v394 = vld [vmem:[%s386 + $0x18] sm:$0xff]
                %395 = vst [vmem:[%s387 + $0x18] sm:$0xff] %v394
                %v396 = vld [vmem:[%s386 + $0x20] sm:$0xff]
                %397 = vst [vmem:[%s387 + $0x20] sm:$0xff] %v396
                %v398 = vld [vmem:[%s386 + $0x28] sm:$0xff]
                %399 = vst [vmem:[%s387 + $0x28] sm:$0xff] %v398
                %v400 = vld [vmem:[%s386 + $0x30] sm:$0xff]
                %401 = vst [vmem:[%s387 + $0x30] sm:$0xff] %v400
                %v402 = vld [vmem:[%s386 + $0x38] sm:$0xff]
                %403 = vst [vmem:[%s387 + $0x38] sm:$0xff] %v402
                %v404 = vld [vmem:[%s386 + $0x40] sm:$0xff]
                %405 = vst [vmem:[%s387 + $0x40] sm:$0xff] %v404
                %v406 = vld [vmem:[%s386 + $0x48] sm:$0xff]
                %407 = vst [vmem:[%s387 + $0x48] sm:$0xff] %v406
                %v408 = vld [vmem:[%s386 + $0x50] sm:$0xff]
                %409 = vst [vmem:[%s387 + $0x50] sm:$0xff] %v408
                %v410 = vld [vmem:[%s386 + $0x58] sm:$0xff]
                %411 = vst [vmem:[%s387 + $0x58] sm:$0xff] %v410
                %v412 = vld [vmem:[%s386 + $0x60] sm:$0xff]
                %413 = vst [vmem:[%s387 + $0x60] sm:$0xff] %v412
                %v414 = vld [vmem:[%s386 + $0x68] sm:$0xff]
                %415 = vst [vmem:[%s387 + $0x68] sm:$0xff] %v414
                %v416 = vld [vmem:[%s386 + $0x70] sm:$0xff]
                %417 = vst [vmem:[%s387 + $0x70] sm:$0xff] %v416
                %v418 = vld [vmem:[%s386 + $0x78] sm:$0xff]
                %419 = vst [vmem:[%s387 + $0x78] sm:$0xff] %v418
                %v420 = vld [vmem:[%s386 + $0x100] sm:$0xff]
                %421 = vst [vmem:[%s387 + $0x80] sm:$0xff] %v420
                %v422 = vld [vmem:[%s386 + $0x108] sm:$0xff]
                %423 = vst [vmem:[%s387 + $0x88] sm:$0xff] %v422
                %v424 = vld [vmem:[%s386 + $0x110] sm:$0xff]
                %425 = vst [vmem:[%s387 + $0x90] sm:$0xff] %v424
                %v426 = vld [vmem:[%s386 + $0x118] sm:$0xff]
                %427 = vst [vmem:[%s387 + $0x98] sm:$0xff] %v426
                %v428 = vld [vmem:[%s386 + $0x120] sm:$0xff]
                %429 = vst [vmem:[%s387 + $0xa0] sm:$0xff] %v428
                %v430 = vld [vmem:[%s386 + $0x128] sm:$0xff]
                %431 = vst [vmem:[%s387 + $0xa8] sm:$0xff] %v430
                %v432 = vld [vmem:[%s386 + $0x130] sm:$0xff]
                %433 = vst [vmem:[%s387 + $0xb0] sm:$0xff] %v432
                %v434 = vld [vmem:[%s386 + $0x138] sm:$0xff]
                %435 = vst [vmem:[%s387 + $0xb8] sm:$0xff] %v434
                %v436 = vld [vmem:[%s386 + $0x140] sm:$0xff]
                %437 = vst [vmem:[%s387 + $0xc0] sm:$0xff] %v436
                %v438 = vld [vmem:[%s386 + $0x148] sm:$0xff]
                %439 = vst [vmem:[%s387 + $0xc8] sm:$0xff] %v438
                %v440 = vld [vmem:[%s386 + $0x150] sm:$0xff]
                %441 = vst [vmem:[%s387 + $0xd0] sm:$0xff] %v440
                %v442 = vld [vmem:[%s386 + $0x158] sm:$0xff]
                %443 = vst [vmem:[%s387 + $0xd8] sm:$0xff] %v442
                %v444 = vld [vmem:[%s386 + $0x160] sm:$0xff]
                %445 = vst [vmem:[%s387 + $0xe0] sm:$0xff] %v444
                %v446 = vld [vmem:[%s386 + $0x168] sm:$0xff]
                %447 = vst [vmem:[%s387 + $0xe8] sm:$0xff] %v446
                %v448 = vld [vmem:[%s386 + $0x170] sm:$0xff]
                %449 = vst [vmem:[%s387 + $0xf0] sm:$0xff] %v448
                %v450 = vld [vmem:[%s386 + $0x178] sm:$0xff]
                %451 = vst [vmem:[%s387 + $0xf8] sm:$0xff] %v450
              $region75: #{tpu_custom_call.1} parent=69 // loop_footer
                %s385 = sadd.s32 1, %s381
              $region76: #{tpu_custom_call.1} parent=69 // loop_footer_branch
                %380 = sbr.rel target = $region72
              $region77: #{tpu_custom_call.1} parent=69 // loop_exit
                _
            $region70: #{tpu_custom_call.1} parent=61 // pred_fallthru
              _
          $region62: #{tpu_custom_call.1} parent=57 // pred_fallthru
            _
          %528 = vnop
        $region58: #{tpu_custom_call.1} parent=15 // pred_fallthru
          _
        // Predicated region
        $region93: #{tpu_custom_call.1} parent=15 // pred_check
          %p529 = pneg %p114
        $region94: #{tpu_custom_call.1} parent=15 // pred_check_branch
          %531 = sbr.rel (%p529) target = $region96
        $region95: #{tpu_custom_call.1} parent=15 // pred_region
          %s532 = sand.u32 %s104, 1
          %s533 = sand.u32 %s104, 1
          %s534 = smul.addr %s533, 256
          %s535 = scalar_lea.vmem [#allocation4], %s534
          %s536 = smul.u32 2, %s24
          %s537 = smul.u32 16, %s26
          %s538 = smul.addr %s536, 32
          %s539 = sadd.s32 %s537, %s538
          %s540 = smul.addr %s539, 8
          %s541 = scalar_lea.vmem %s2, %s540
          // Predicated region
          $region97: #{tpu_custom_call.1} parent=95 // pred_check
            _
          $region98: #{tpu_custom_call.1} parent=95 // pred_check_branch
            %543 = sbr.rel (0) target = $region100
          $region99: #{tpu_custom_call.1} parent=95 // pred_region
            // Predicated region
            $region101: #{tpu_custom_call.1} parent=99 // pred_check
              _
            $region102: #{tpu_custom_call.1} parent=99 // pred_check_branch
              %545 = sbr.rel (0) target = $region104
            $region103: #{tpu_custom_call.1} parent=99 // pred_region
              // Predicated region
              $region116: #{tpu_custom_call.1} parent=103 // pred_check
                _
              $region117: #{tpu_custom_call.1} parent=103 // pred_check_branch
                %622 = sbr.rel (0) target = $region119
              $region118: #{tpu_custom_call.1} parent=103 // pred_region
                loop: start=0, step=1, limit=1
                $region120: #{tpu_custom_call.1} parent=118 // loop_pre_header
                  _
                $region121: #{tpu_custom_call.1} parent=118 // loop_header
                  %s624 = sphi 0, %s628
                  %p625 = scmp.ge.s32.totalorder %s624, 1
                  %s629 = sphi %s541, %s541
                  %s630 = sphi %s535, %s535
                $region122: #{tpu_custom_call.1} parent=118 // loop_header_branch
                  %627 = sbr.rel (%p625) target = $region126
                $region123: #{tpu_custom_call.1} parent=118 // loop_body
                  %v631 = vld [vmem:[%s629] sm:$0xff]
                  %632 = vst [vmem:[%s630] sm:$0xff] %v631
                  %v633 = vld [vmem:[%s629 + $0x8] sm:$0xff]
                  %634 = vst [vmem:[%s630 + $0x8] sm:$0xff] %v633
                  %v635 = vld [vmem:[%s629 + $0x10] sm:$0xff]
                  %636 = vst [vmem:[%s630 + $0x10] sm:$0xff] %v635
                  %v637 = vld [vmem:[%s629 + $0x18] sm:$0xff]
                  %638 = vst [vmem:[%s630 + $0x18] sm:$0xff] %v637
                  %v639 = vld [vmem:[%s629 + $0x20] sm:$0xff]
                  %640 = vst [vmem:[%s630 + $0x20] sm:$0xff] %v639
                  %v641 = vld [vmem:[%s629 + $0x28] sm:$0xff]
                  %642 = vst [vmem:[%s630 + $0x28] sm:$0xff] %v641
                  %v643 = vld [vmem:[%s629 + $0x30] sm:$0xff]
                  %644 = vst [vmem:[%s630 + $0x30] sm:$0xff] %v643
                  %v645 = vld [vmem:[%s629 + $0x38] sm:$0xff]
                  %646 = vst [vmem:[%s630 + $0x38] sm:$0xff] %v645
                  %v647 = vld [vmem:[%s629 + $0x40] sm:$0xff]
                  %648 = vst [vmem:[%s630 + $0x40] sm:$0xff] %v647
                  %v649 = vld [vmem:[%s629 + $0x48] sm:$0xff]
                  %650 = vst [vmem:[%s630 + $0x48] sm:$0xff] %v649
                  %v651 = vld [vmem:[%s629 + $0x50] sm:$0xff]
                  %652 = vst [vmem:[%s630 + $0x50] sm:$0xff] %v651
                  %v653 = vld [vmem:[%s629 + $0x58] sm:$0xff]
                  %654 = vst [vmem:[%s630 + $0x58] sm:$0xff] %v653
                  %v655 = vld [vmem:[%s629 + $0x60] sm:$0xff]
                  %656 = vst [vmem:[%s630 + $0x60] sm:$0xff] %v655
                  %v657 = vld [vmem:[%s629 + $0x68] sm:$0xff]
                  %658 = vst [vmem:[%s630 + $0x68] sm:$0xff] %v657
                  %v659 = vld [vmem:[%s629 + $0x70] sm:$0xff]
                  %660 = vst [vmem:[%s630 + $0x70] sm:$0xff] %v659
                  %v661 = vld [vmem:[%s629 + $0x78] sm:$0xff]
                  %662 = vst [vmem:[%s630 + $0x78] sm:$0xff] %v661
                  %v663 = vld [vmem:[%s629 + $0x100] sm:$0xff]
                  %664 = vst [vmem:[%s630 + $0x80] sm:$0xff] %v663
                  %v665 = vld [vmem:[%s629 + $0x108] sm:$0xff]
                  %666 = vst [vmem:[%s630 + $0x88] sm:$0xff] %v665
                  %v667 = vld [vmem:[%s629 + $0x110] sm:$0xff]
                  %668 = vst [vmem:[%s630 + $0x90] sm:$0xff] %v667
                  %v669 = vld [vmem:[%s629 + $0x118] sm:$0xff]
                  %670 = vst [vmem:[%s630 + $0x98] sm:$0xff] %v669
                  %v671 = vld [vmem:[%s629 + $0x120] sm:$0xff]
                  %672 = vst [vmem:[%s630 + $0xa0] sm:$0xff] %v671
                  %v673 = vld [vmem:[%s629 + $0x128] sm:$0xff]
                  %674 = vst [vmem:[%s630 + $0xa8] sm:$0xff] %v673
                  %v675 = vld [vmem:[%s629 + $0x130] sm:$0xff]
                  %676 = vst [vmem:[%s630 + $0xb0] sm:$0xff] %v675
                  %v677 = vld [vmem:[%s629 + $0x138] sm:$0xff]
                  %678 = vst [vmem:[%s630 + $0xb8] sm:$0xff] %v677
                  %v679 = vld [vmem:[%s629 + $0x140] sm:$0xff]
                  %680 = vst [vmem:[%s630 + $0xc0] sm:$0xff] %v679
                  %v681 = vld [vmem:[%s629 + $0x148] sm:$0xff]
                  %682 = vst [vmem:[%s630 + $0xc8] sm:$0xff] %v681
                  %v683 = vld [vmem:[%s629 + $0x150] sm:$0xff]
                  %684 = vst [vmem:[%s630 + $0xd0] sm:$0xff] %v683
                  %v685 = vld [vmem:[%s629 + $0x158] sm:$0xff]
                  %686 = vst [vmem:[%s630 + $0xd8] sm:$0xff] %v685
                  %v687 = vld [vmem:[%s629 + $0x160] sm:$0xff]
                  %688 = vst [vmem:[%s630 + $0xe0] sm:$0xff] %v687
                  %v689 = vld [vmem:[%s629 + $0x168] sm:$0xff]
                  %690 = vst [vmem:[%s630 + $0xe8] sm:$0xff] %v689
                  %v691 = vld [vmem:[%s629 + $0x170] sm:$0xff]
                  %692 = vst [vmem:[%s630 + $0xf0] sm:$0xff] %v691
                  %v693 = vld [vmem:[%s629 + $0x178] sm:$0xff]
                  %694 = vst [vmem:[%s630 + $0xf8] sm:$0xff] %v693
                $region124: #{tpu_custom_call.1} parent=118 // loop_footer
                  %s628 = sadd.s32 1, %s624
                $region125: #{tpu_custom_call.1} parent=118 // loop_footer_branch
                  %623 = sbr.rel target = $region121
                $region126: #{tpu_custom_call.1} parent=118 // loop_exit
                  _
              $region119: #{tpu_custom_call.1} parent=103 // pred_fallthru
                _
              // Predicated region
              $region127: #{tpu_custom_call.1} parent=103 // pred_check
                _
              $region128: #{tpu_custom_call.1} parent=103 // pred_check_branch
                %696 = sbr.rel target = $region130
              $region129: #{tpu_custom_call.1} parent=103 // pred_region
                _
              $region130: #{tpu_custom_call.1} parent=103 // pred_fallthru
                _
            $region104: #{tpu_custom_call.1} parent=99 // pred_fallthru
              _
            // Predicated region
            $region105: #{tpu_custom_call.1} parent=99 // pred_check
              _
            $region106: #{tpu_custom_call.1} parent=99 // pred_check_branch
              %547 = sbr.rel target = $region108
            $region107: #{tpu_custom_call.1} parent=99 // pred_region
              loop: start=0, step=1, limit=1
              $region109: #{tpu_custom_call.1} parent=107 // loop_pre_header
                _
              $region110: #{tpu_custom_call.1} parent=107 // loop_header
                %s550 = sphi 0, %s554
                %p551 = scmp.ge.s32.totalorder %s550, 1
                %s555 = sphi %s541, %s541
                %s556 = sphi %s535, %s535
              $region111: #{tpu_custom_call.1} parent=107 // loop_header_branch
                %553 = sbr.rel (%p551) target = $region115
              $region112: #{tpu_custom_call.1} parent=107 // loop_body
                %v557 = vld [vmem:[%s555] sm:$0xff]
                %558 = vst [vmem:[%s556] sm:$0xff] %v557
                %v559 = vld [vmem:[%s555 + $0x8] sm:$0xff]
                %560 = vst [vmem:[%s556 + $0x8] sm:$0xff] %v559
                %v561 = vld [vmem:[%s555 + $0x10] sm:$0xff]
                %562 = vst [vmem:[%s556 + $0x10] sm:$0xff] %v561
                %v563 = vld [vmem:[%s555 + $0x18] sm:$0xff]
                %564 = vst [vmem:[%s556 + $0x18] sm:$0xff] %v563
                %v565 = vld [vmem:[%s555 + $0x20] sm:$0xff]
                %566 = vst [vmem:[%s556 + $0x20] sm:$0xff] %v565
                %v567 = vld [vmem:[%s555 + $0x28] sm:$0xff]
                %568 = vst [vmem:[%s556 + $0x28] sm:$0xff] %v567
                %v569 = vld [vmem:[%s555 + $0x30] sm:$0xff]
                %570 = vst [vmem:[%s556 + $0x30] sm:$0xff] %v569
                %v571 = vld [vmem:[%s555 + $0x38] sm:$0xff]
                %572 = vst [vmem:[%s556 + $0x38] sm:$0xff] %v571
                %v573 = vld [vmem:[%s555 + $0x40] sm:$0xff]
                %574 = vst [vmem:[%s556 + $0x40] sm:$0xff] %v573
                %v575 = vld [vmem:[%s555 + $0x48] sm:$0xff]
                %576 = vst [vmem:[%s556 + $0x48] sm:$0xff] %v575
                %v577 = vld [vmem:[%s555 + $0x50] sm:$0xff]
                %578 = vst [vmem:[%s556 + $0x50] sm:$0xff] %v577
                %v579 = vld [vmem:[%s555 + $0x58] sm:$0xff]
                %580 = vst [vmem:[%s556 + $0x58] sm:$0xff] %v579
                %v581 = vld [vmem:[%s555 + $0x60] sm:$0xff]
                %582 = vst [vmem:[%s556 + $0x60] sm:$0xff] %v581
                %v583 = vld [vmem:[%s555 + $0x68] sm:$0xff]
                %584 = vst [vmem:[%s556 + $0x68] sm:$0xff] %v583
                %v585 = vld [vmem:[%s555 + $0x70] sm:$0xff]
                %586 = vst [vmem:[%s556 + $0x70] sm:$0xff] %v585
                %v587 = vld [vmem:[%s555 + $0x78] sm:$0xff]
                %588 = vst [vmem:[%s556 + $0x78] sm:$0xff] %v587
                %v589 = vld [vmem:[%s555 + $0x100] sm:$0xff]
                %590 = vst [vmem:[%s556 + $0x80] sm:$0xff] %v589
                %v591 = vld [vmem:[%s555 + $0x108] sm:$0xff]
                %592 = vst [vmem:[%s556 + $0x88] sm:$0xff] %v591
                %v593 = vld [vmem:[%s555 + $0x110] sm:$0xff]
                %594 = vst [vmem:[%s556 + $0x90] sm:$0xff] %v593
                %v595 = vld [vmem:[%s555 + $0x118] sm:$0xff]
                %596 = vst [vmem:[%s556 + $0x98] sm:$0xff] %v595
                %v597 = vld [vmem:[%s555 + $0x120] sm:$0xff]
                %598 = vst [vmem:[%s556 + $0xa0] sm:$0xff] %v597
                %v599 = vld [vmem:[%s555 + $0x128] sm:$0xff]
                %600 = vst [vmem:[%s556 + $0xa8] sm:$0xff] %v599
                %v601 = vld [vmem:[%s555 + $0x130] sm:$0xff]
                %602 = vst [vmem:[%s556 + $0xb0] sm:$0xff] %v601
                %v603 = vld [vmem:[%s555 + $0x138] sm:$0xff]
                %604 = vst [vmem:[%s556 + $0xb8] sm:$0xff] %v603
                %v605 = vld [vmem:[%s555 + $0x140] sm:$0xff]
                %606 = vst [vmem:[%s556 + $0xc0] sm:$0xff] %v605
                %v607 = vld [vmem:[%s555 + $0x148] sm:$0xff]
                %608 = vst [vmem:[%s556 + $0xc8] sm:$0xff] %v607
                %v609 = vld [vmem:[%s555 + $0x150] sm:$0xff]
                %610 = vst [vmem:[%s556 + $0xd0] sm:$0xff] %v609
                %v611 = vld [vmem:[%s555 + $0x158] sm:$0xff]
                %612 = vst [vmem:[%s556 + $0xd8] sm:$0xff] %v611
                %v613 = vld [vmem:[%s555 + $0x160] sm:$0xff]
                %614 = vst [vmem:[%s556 + $0xe0] sm:$0xff] %v613
                %v615 = vld [vmem:[%s555 + $0x168] sm:$0xff]
                %616 = vst [vmem:[%s556 + $0xe8] sm:$0xff] %v615
                %v617 = vld [vmem:[%s555 + $0x170] sm:$0xff]
                %618 = vst [vmem:[%s556 + $0xf0] sm:$0xff] %v617
                %v619 = vld [vmem:[%s555 + $0x178] sm:$0xff]
                %620 = vst [vmem:[%s556 + $0xf8] sm:$0xff] %v619
              $region113: #{tpu_custom_call.1} parent=107 // loop_footer
                %s554 = sadd.s32 1, %s550
              $region114: #{tpu_custom_call.1} parent=107 // loop_footer_branch
                %549 = sbr.rel target = $region110
              $region115: #{tpu_custom_call.1} parent=107 // loop_exit
                _
            $region108: #{tpu_custom_call.1} parent=99 // pred_fallthru
              _
          $region100: #{tpu_custom_call.1} parent=95 // pred_fallthru
            _
          %697 = vnop
        $region96: #{tpu_custom_call.1} parent=15 // pred_fallthru
          _
      $region16: #{tpu_custom_call.1} parent=5 // pred_fallthru
        _
      %p698 = scmp.le.s32.totalorder 1, %s17
      %p699 = scmp.lt.s32.totalorder %s17, 9
      %p700 = pnand %p698, %p699
      %p701 = pneg %p700
      // Predicated region
      $region131: #{tpu_custom_call.1} parent=5 // pred_check
        _
      $region132: #{tpu_custom_call.1} parent=5 // pred_check_branch
        %703 = sbr.rel (%p700) target = $region134
      $region133: #{tpu_custom_call.1} parent=5 // pred_region
        %s704 = ssub.s32 %s17, 1
        %s705 = sand.u32 %s51, 1
        %s706 = sand.u32 %s51, 1
        %s707 = smul.addr %s706, 256
        %s708 = scalar_lea.vmem [#allocation2], %s707
        // Predicated region
        $region135: #{tpu_custom_call.1} parent=133 // pred_check
          %p709 = pneg %p64
        $region136: #{tpu_custom_call.1} parent=133 // pred_check_branch
          %711 = sbr.rel (%p709) target = $region138
        $region137: #{tpu_custom_call.1} parent=133 // pred_region
          _
        $region138: #{tpu_custom_call.1} parent=133 // pred_fallthru
          _
        %s712 = sand.u32 %s79, 1
        %s713 = sand.u32 %s79, 1
        %s714 = smul.addr %s713, 256
        %s715 = scalar_lea.vmem [#allocation3], %s714
        // Predicated region
        $region139: #{tpu_custom_call.1} parent=133 // pred_check
          %p716 = pneg %p92
        $region140: #{tpu_custom_call.1} parent=133 // pred_check_branch
          %718 = sbr.rel (%p716) target = $region142
        $region141: #{tpu_custom_call.1} parent=133 // pred_region
          _
        $region142: #{tpu_custom_call.1} parent=133 // pred_fallthru
          _
        %s719 = sand.u32 %s107, 1
        %s720 = sand.u32 %s107, 1
        %s721 = smul.addr %s720, 256
        %s722 = scalar_lea.vmem [#allocation4], %s721
        // Predicated region
        $region143: #{tpu_custom_call.1} parent=133 // pred_check
          %p723 = pneg %p120
        $region144: #{tpu_custom_call.1} parent=133 // pred_check_branch
          %725 = sbr.rel (%p723) target = $region146
        $region145: #{tpu_custom_call.1} parent=133 // pred_region
          _
        $region146: #{tpu_custom_call.1} parent=133 // pred_fallthru
          _
        %s726 = sand.u32 %s51, 1
        %s727 = sand.u32 %s51, 1
        %s728 = smul.addr %s727, 256
        %s729 = scalar_lea.vmem [#allocation2], %s728
        %p730 = pneg %p64
        %p731 = pneg %p61
        %s732 = sand.u32 %s79, 1
        %s733 = sand.u32 %s79, 1
        %s734 = smul.addr %s733, 256
        %s735 = scalar_lea.vmem [#allocation3], %s734
        %p736 = pneg %p92
        %p737 = pneg %p89
        %s738 = sand.u32 %s107, 1
        %s739 = sand.u32 %s107, 1
        %s740 = smul.addr %s739, 256
        %s741 = scalar_lea.vmem [#allocation4], %s740
        %p742 = pneg %p120
        %p743 = pneg %p117
        %p744 = pneg %p146
        %p745 = pneg %p143
        %s746 = sand.u32 %s133, 1
        %s747 = scalar_lea.sflag [#allocation6], %s746
        %s748 = sand.u32 %s133, 1
        %s749 = smul.addr %s748, 8
        %s750 = scalar_lea.vmem [#allocation5], %s749
        %p751 = pneg %p172
        %p752 = pneg %p169
        %s753 = sand.u32 %s159, 1
        %s754 = scalar_lea.sflag [#allocation8], %s753
        %s755 = sand.u32 %s159, 1
        %s756 = smul.addr %s755, 8
        %s757 = scalar_lea.vmem [#allocation7], %s756
        %s758 = smul.u32 2, %s27
        %s759 = smul.u32 16, %s28
        %s760 = smul.u32 2, %s27
        %s761 = smul.u32 16, %s28
        %s762 = smul.u32 2, %s27
        %s763 = smul.u32 16, %s29
        %p764 = scmp.eq.s32.totalorder %s28, 0
        %p765 = scmp.eq.s32.totalorder %s29, 0
        %p766 = pnand %p764, %p765
        %p767 = pneg %p766
        // Predicated region
        $region147: #{tpu_custom_call.1} parent=133 // pred_check
          _
        $region148: #{tpu_custom_call.1} parent=133 // pred_check_branch
          %769 = sbr.rel (%p766) target = $region150
        $region149: #{tpu_custom_call.1} parent=133 // pred_region
          %770 = vst [vmem:[%s750] sm:$0xff] 0.0
          %771 = vst [vmem:[%s757] sm:$0xff] 0.0
        $region150: #{tpu_custom_call.1} parent=133 // pred_fallthru
          _
        %v772 = vld [vmem:[%s708] sm:$0xff]
        %v773 = vld [vmem:[%s708 + $0x8] sm:$0xff]
        %v774 = vld [vmem:[%s708 + $0x10] sm:$0xff]
        %v775 = vld [vmem:[%s708 + $0x18] sm:$0xff]
        %v776 = vld [vmem:[%s708 + $0x20] sm:$0xff]
        %v777 = vld [vmem:[%s708 + $0x28] sm:$0xff]
        %v778 = vld [vmem:[%s708 + $0x30] sm:$0xff]
        %v779 = vld [vmem:[%s708 + $0x38] sm:$0xff]
        %v780 = vld [vmem:[%s708 + $0x40] sm:$0xff]
        %v781 = vld [vmem:[%s708 + $0x48] sm:$0xff]
        %v782 = vld [vmem:[%s708 + $0x50] sm:$0xff]
        %v783 = vld [vmem:[%s708 + $0x58] sm:$0xff]
        %v784 = vld [vmem:[%s708 + $0x60] sm:$0xff]
        %v785 = vld [vmem:[%s708 + $0x68] sm:$0xff]
        %v786 = vld [vmem:[%s708 + $0x70] sm:$0xff]
        %v787 = vld [vmem:[%s708 + $0x78] sm:$0xff]
        %v788 = vld [vmem:[%s708 + $0x80] sm:$0xff]
        %v789 = vld [vmem:[%s708 + $0x88] sm:$0xff]
        %v790 = vld [vmem:[%s708 + $0x90] sm:$0xff]
        %v791 = vld [vmem:[%s708 + $0x98] sm:$0xff]
        %v792 = vld [vmem:[%s708 + $0xa0] sm:$0xff]
        %v793 = vld [vmem:[%s708 + $0xa8] sm:$0xff]
        %v794 = vld [vmem:[%s708 + $0xb0] sm:$0xff]
        %v795 = vld [vmem:[%s708 + $0xb8] sm:$0xff]
        %v796 = vld [vmem:[%s708 + $0xc0] sm:$0xff]
        %v797 = vld [vmem:[%s708 + $0xc8] sm:$0xff]
        %v798 = vld [vmem:[%s708 + $0xd0] sm:$0xff]
        %v799 = vld [vmem:[%s708 + $0xd8] sm:$0xff]
        %v800 = vld [vmem:[%s708 + $0xe0] sm:$0xff]
        %v801 = vld [vmem:[%s708 + $0xe8] sm:$0xff]
        %v802 = vld [vmem:[%s708 + $0xf0] sm:$0xff]
        %v803 = vld [vmem:[%s708 + $0xf8] sm:$0xff]
        %v804 = vld [vmem:[%s715] sm:$0xff]
        %v805 = vld [vmem:[%s715 + $0x8] sm:$0xff]
        %v806 = vld [vmem:[%s715 + $0x10] sm:$0xff]
        %v807 = vld [vmem:[%s715 + $0x18] sm:$0xff]
        %v808 = vld [vmem:[%s715 + $0x20] sm:$0xff]
        %v809 = vld [vmem:[%s715 + $0x28] sm:$0xff]
        %v810 = vld [vmem:[%s715 + $0x30] sm:$0xff]
        %v811 = vld [vmem:[%s715 + $0x38] sm:$0xff]
        %v812 = vld [vmem:[%s715 + $0x40] sm:$0xff]
        %v813 = vld [vmem:[%s715 + $0x48] sm:$0xff]
        %v814 = vld [vmem:[%s715 + $0x50] sm:$0xff]
        %v815 = vld [vmem:[%s715 + $0x58] sm:$0xff]
        %v816 = vld [vmem:[%s715 + $0x60] sm:$0xff]
        %v817 = vld [vmem:[%s715 + $0x68] sm:$0xff]
        %v818 = vld [vmem:[%s715 + $0x70] sm:$0xff]
        %v819 = vld [vmem:[%s715 + $0x78] sm:$0xff]
        %v820 = vld [vmem:[%s715 + $0x80] sm:$0xff]
        %v821 = vld [vmem:[%s715 + $0x88] sm:$0xff]
        %v822 = vld [vmem:[%s715 + $0x90] sm:$0xff]
        %v823 = vld [vmem:[%s715 + $0x98] sm:$0xff]
        %v824 = vld [vmem:[%s715 + $0xa0] sm:$0xff]
        %v825 = vld [vmem:[%s715 + $0xa8] sm:$0xff]
        %v826 = vld [vmem:[%s715 + $0xb0] sm:$0xff]
        %v827 = vld [vmem:[%s715 + $0xb8] sm:$0xff]
        %v828 = vld [vmem:[%s715 + $0xc0] sm:$0xff]
        %v829 = vld [vmem:[%s715 + $0xc8] sm:$0xff]
        %v830 = vld [vmem:[%s715 + $0xd0] sm:$0xff]
        %v831 = vld [vmem:[%s715 + $0xd8] sm:$0xff]
        %v832 = vld [vmem:[%s715 + $0xe0] sm:$0xff]
        %v833 = vld [vmem:[%s715 + $0xe8] sm:$0xff]
        %v834 = vld [vmem:[%s715 + $0xf0] sm:$0xff]
        %v835 = vld [vmem:[%s715 + $0xf8] sm:$0xff]
        %v836 = vld [vmem:[%s722] sm:$0xff]
        %v837 = vld [vmem:[%s722 + $0x8] sm:$0xff]
        %v838 = vld [vmem:[%s722 + $0x10] sm:$0xff]
        %v839 = vld [vmem:[%s722 + $0x18] sm:$0xff]
        %v840 = vld [vmem:[%s722 + $0x20] sm:$0xff]
        %v841 = vld [vmem:[%s722 + $0x28] sm:$0xff]
        %v842 = vld [vmem:[%s722 + $0x30] sm:$0xff]
        %v843 = vld [vmem:[%s722 + $0x38] sm:$0xff]
        %v844 = vld [vmem:[%s722 + $0x40] sm:$0xff]
        %v845 = vld [vmem:[%s722 + $0x48] sm:$0xff]
        %v846 = vld [vmem:[%s722 + $0x50] sm:$0xff]
        %v847 = vld [vmem:[%s722 + $0x58] sm:$0xff]
        %v848 = vld [vmem:[%s722 + $0x60] sm:$0xff]
        %v849 = vld [vmem:[%s722 + $0x68] sm:$0xff]
        %v850 = vld [vmem:[%s722 + $0x70] sm:$0xff]
        %v851 = vld [vmem:[%s722 + $0x78] sm:$0xff]
        %v852 = vld [vmem:[%s722 + $0x80] sm:$0xff]
        %v853 = vld [vmem:[%s722 + $0x88] sm:$0xff]
        %v854 = vld [vmem:[%s722 + $0x90] sm:$0xff]
        %v855 = vld [vmem:[%s722 + $0x98] sm:$0xff]
        %v856 = vld [vmem:[%s722 + $0xa0] sm:$0xff]
        %v857 = vld [vmem:[%s722 + $0xa8] sm:$0xff]
        %v858 = vld [vmem:[%s722 + $0xb0] sm:$0xff]
        %v859 = vld [vmem:[%s722 + $0xb8] sm:$0xff]
        %v860 = vld [vmem:[%s722 + $0xc0] sm:$0xff]
        %v861 = vld [vmem:[%s722 + $0xc8] sm:$0xff]
        %v862 = vld [vmem:[%s722 + $0xd0] sm:$0xff]
        %v863 = vld [vmem:[%s722 + $0xd8] sm:$0xff]
        %v864 = vld [vmem:[%s722 + $0xe0] sm:$0xff]
        %v865 = vld [vmem:[%s722 + $0xe8] sm:$0xff]
        %v866 = vld [vmem:[%s722 + $0xf0] sm:$0xff]
        %v867 = vld [vmem:[%s722 + $0xf8] sm:$0xff]
        %v868 = vmul.f32 %v772, %v772
        %v869 = vmul.f32 %v773, %v773
        %v870 = vmul.f32 %v774, %v774
        %v871 = vmul.f32 %v775, %v775
        %v872 = vmul.f32 %v776, %v776
        %v873 = vmul.f32 %v777, %v777
        %v874 = vmul.f32 %v778, %v778
        %v875 = vmul.f32 %v779, %v779
        %v876 = vmul.f32 %v780, %v780
        %v877 = vmul.f32 %v781, %v781
        %v878 = vmul.f32 %v782, %v782
        %v879 = vmul.f32 %v783, %v783
        %v880 = vmul.f32 %v784, %v784
        %v881 = vmul.f32 %v785, %v785
        %v882 = vmul.f32 %v786, %v786
        %v883 = vmul.f32 %v787, %v787
        %v884 = vmul.f32 %v788, %v788
        %v885 = vmul.f32 %v789, %v789
        %v886 = vmul.f32 %v790, %v790
        %v887 = vmul.f32 %v791, %v791
        %v888 = vmul.f32 %v792, %v792
        %v889 = vmul.f32 %v793, %v793
        %v890 = vmul.f32 %v794, %v794
        %v891 = vmul.f32 %v795, %v795
        %v892 = vmul.f32 %v796, %v796
        %v893 = vmul.f32 %v797, %v797
        %v894 = vmul.f32 %v798, %v798
        %v895 = vmul.f32 %v799, %v799
        %v896 = vmul.f32 %v800, %v800
        %v897 = vmul.f32 %v801, %v801
        %v898 = vmul.f32 %v802, %v802
        %v899 = vmul.f32 %v803, %v803
        %vm900 = vcmask 392192
        %v901 = vsel %vm900, %v868, 0.0
        %902 = vadd.xlane.f32.xlu0 %v901
        %v903 = vpop.xlane.xlu0 %902
        %v904 = vsel %vm900, %v869, 0.0
        %905 = vadd.xlane.f32.xlu0 %v904
        %v906 = vpop.xlane.xlu0 %905
        %v907 = vsel %vm900, %v870, 0.0
        %908 = vadd.xlane.f32.xlu0 %v907
        %v909 = vpop.xlane.xlu0 %908
        %v910 = vsel %vm900, %v871, 0.0
        %911 = vadd.xlane.f32.xlu0 %v910
        %v912 = vpop.xlane.xlu0 %911
        %v913 = vsel %vm900, %v872, 0.0
        %914 = vadd.xlane.f32.xlu0 %v913
        %v915 = vpop.xlane.xlu0 %914
        %v916 = vsel %vm900, %v873, 0.0
        %917 = vadd.xlane.f32.xlu0 %v916
        %v918 = vpop.xlane.xlu0 %917
        %v919 = vsel %vm900, %v874, 0.0
        %920 = vadd.xlane.f32.xlu0 %v919
        %v921 = vpop.xlane.xlu0 %920
        %v922 = vsel %vm900, %v875, 0.0
        %923 = vadd.xlane.f32.xlu0 %v922
        %v924 = vpop.xlane.xlu0 %923
        %v925 = vsel %vm900, %v876, 0.0
        %926 = vadd.xlane.f32.xlu0 %v925
        %v927 = vpop.xlane.xlu0 %926
        %v928 = vsel %vm900, %v877, 0.0
        %929 = vadd.xlane.f32.xlu0 %v928
        %v930 = vpop.xlane.xlu0 %929
        %v931 = vsel %vm900, %v878, 0.0
        %932 = vadd.xlane.f32.xlu0 %v931
        %v933 = vpop.xlane.xlu0 %932
        %v934 = vsel %vm900, %v879, 0.0
        %935 = vadd.xlane.f32.xlu0 %v934
        %v936 = vpop.xlane.xlu0 %935
        %v937 = vsel %vm900, %v880, 0.0
        %938 = vadd.xlane.f32.xlu0 %v937
        %v939 = vpop.xlane.xlu0 %938
        %v940 = vsel %vm900, %v881, 0.0
        %941 = vadd.xlane.f32.xlu0 %v940
        %v942 = vpop.xlane.xlu0 %941
        %v943 = vsel %vm900, %v882, 0.0
        %944 = vadd.xlane.f32.xlu0 %v943
        %v945 = vpop.xlane.xlu0 %944
        %v946 = vsel %vm900, %v883, 0.0
        %947 = vadd.xlane.f32.xlu0 %v946
        %v948 = vpop.xlane.xlu0 %947
        %v949 = vsel %vm900, %v884, 0.0
        %950 = vadd.xlane.f32.xlu0 %v949
        %v951 = vpop.xlane.xlu0 %950
        %v952 = vsel %vm900, %v885, 0.0
        %953 = vadd.xlane.f32.xlu0 %v952
        %v954 = vpop.xlane.xlu0 %953
        %v955 = vsel %vm900, %v886, 0.0
        %956 = vadd.xlane.f32.xlu0 %v955
        %v957 = vpop.xlane.xlu0 %956
        %v958 = vsel %vm900, %v887, 0.0
        %959 = vadd.xlane.f32.xlu0 %v958
        %v960 = vpop.xlane.xlu0 %959
        %v961 = vsel %vm900, %v888, 0.0
        %962 = vadd.xlane.f32.xlu0 %v961
        %v963 = vpop.xlane.xlu0 %962
        %v964 = vsel %vm900, %v889, 0.0
        %965 = vadd.xlane.f32.xlu0 %v964
        %v966 = vpop.xlane.xlu0 %965
        %v967 = vsel %vm900, %v890, 0.0
        %968 = vadd.xlane.f32.xlu0 %v967
        %v969 = vpop.xlane.xlu0 %968
        %v970 = vsel %vm900, %v891, 0.0
        %971 = vadd.xlane.f32.xlu0 %v970
        %v972 = vpop.xlane.xlu0 %971
        %v973 = vsel %vm900, %v892, 0.0
        %974 = vadd.xlane.f32.xlu0 %v973
        %v975 = vpop.xlane.xlu0 %974
        %v976 = vsel %vm900, %v893, 0.0
        %977 = vadd.xlane.f32.xlu0 %v976
        %v978 = vpop.xlane.xlu0 %977
        %v979 = vsel %vm900, %v894, 0.0
        %980 = vadd.xlane.f32.xlu0 %v979
        %v981 = vpop.xlane.xlu0 %980
        %v982 = vsel %vm900, %v895, 0.0
        %983 = vadd.xlane.f32.xlu0 %v982
        %v984 = vpop.xlane.xlu0 %983
        %v985 = vsel %vm900, %v896, 0.0
        %986 = vadd.xlane.f32.xlu0 %v985
        %v987 = vpop.xlane.xlu0 %986
        %v988 = vsel %vm900, %v897, 0.0
        %989 = vadd.xlane.f32.xlu0 %v988
        %v990 = vpop.xlane.xlu0 %989
        %v991 = vsel %vm900, %v898, 0.0
        %992 = vadd.xlane.f32.xlu0 %v991
        %v993 = vpop.xlane.xlu0 %992
        %v994 = vsel %vm900, %v899, 0.0
        %995 = vadd.xlane.f32.xlu0 %v994
        %v996 = vpop.xlane.xlu0 %995
        %v997 = vmul.f32 %v804, %v804
        %v998 = vmul.f32 %v805, %v805
        %v999 = vmul.f32 %v806, %v806
        %v1000 = vmul.f32 %v807, %v807
        %v1001 = vmul.f32 %v808, %v808
        %v1002 = vmul.f32 %v809, %v809
        %v1003 = vmul.f32 %v810, %v810
        %v1004 = vmul.f32 %v811, %v811
        %v1005 = vmul.f32 %v812, %v812
        %v1006 = vmul.f32 %v813, %v813
        %v1007 = vmul.f32 %v814, %v814
        %v1008 = vmul.f32 %v815, %v815
        %v1009 = vmul.f32 %v816, %v816
        %v1010 = vmul.f32 %v817, %v817
        %v1011 = vmul.f32 %v818, %v818
        %v1012 = vmul.f32 %v819, %v819
        %v1013 = vmul.f32 %v820, %v820
        %v1014 = vmul.f32 %v821, %v821
        %v1015 = vmul.f32 %v822, %v822
        %v1016 = vmul.f32 %v823, %v823
        %v1017 = vmul.f32 %v824, %v824
        %v1018 = vmul.f32 %v825, %v825
        %v1019 = vmul.f32 %v826, %v826
        %v1020 = vmul.f32 %v827, %v827
        %v1021 = vmul.f32 %v828, %v828
        %v1022 = vmul.f32 %v829, %v829
        %v1023 = vmul.f32 %v830, %v830
        %v1024 = vmul.f32 %v831, %v831
        %v1025 = vmul.f32 %v832, %v832
        %v1026 = vmul.f32 %v833, %v833
        %v1027 = vmul.f32 %v834, %v834
        %v1028 = vmul.f32 %v835, %v835
        %v1029 = vsel %vm900, %v997, 0.0
        %1030 = vadd.xlane.f32.xlu0 %v1029
        %v1031 = vpop.xlane.xlu0 %1030
        %v1032 = vsel %vm900, %v998, 0.0
        %1033 = vadd.xlane.f32.xlu0 %v1032
        %v1034 = vpop.xlane.xlu0 %1033
        %v1035 = vsel %vm900, %v999, 0.0
        %1036 = vadd.xlane.f32.xlu0 %v1035
        %v1037 = vpop.xlane.xlu0 %1036
        %v1038 = vsel %vm900, %v1000, 0.0
        %1039 = vadd.xlane.f32.xlu0 %v1038
        %v1040 = vpop.xlane.xlu0 %1039
        %v1041 = vsel %vm900, %v1001, 0.0
        %1042 = vadd.xlane.f32.xlu0 %v1041
        %v1043 = vpop.xlane.xlu0 %1042
        %v1044 = vsel %vm900, %v1002, 0.0
        %1045 = vadd.xlane.f32.xlu0 %v1044
        %v1046 = vpop.xlane.xlu0 %1045
        %v1047 = vsel %vm900, %v1003, 0.0
        %1048 = vadd.xlane.f32.xlu0 %v1047
        %v1049 = vpop.xlane.xlu0 %1048
        %v1050 = vsel %vm900, %v1004, 0.0
        %1051 = vadd.xlane.f32.xlu0 %v1050
        %v1052 = vpop.xlane.xlu0 %1051
        %v1053 = vsel %vm900, %v1005, 0.0
        %1054 = vadd.xlane.f32.xlu0 %v1053
        %v1055 = vpop.xlane.xlu0 %1054
        %v1056 = vsel %vm900, %v1006, 0.0
        %1057 = vadd.xlane.f32.xlu0 %v1056
        %v1058 = vpop.xlane.xlu0 %1057
        %v1059 = vsel %vm900, %v1007, 0.0
        %1060 = vadd.xlane.f32.xlu0 %v1059
        %v1061 = vpop.xlane.xlu0 %1060
        %v1062 = vsel %vm900, %v1008, 0.0
        %1063 = vadd.xlane.f32.xlu0 %v1062
        %v1064 = vpop.xlane.xlu0 %1063
        %v1065 = vsel %vm900, %v1009, 0.0
        %1066 = vadd.xlane.f32.xlu0 %v1065
        %v1067 = vpop.xlane.xlu0 %1066
        %v1068 = vsel %vm900, %v1010, 0.0
        %1069 = vadd.xlane.f32.xlu0 %v1068
        %v1070 = vpop.xlane.xlu0 %1069
        %v1071 = vsel %vm900, %v1011, 0.0
        %1072 = vadd.xlane.f32.xlu0 %v1071
        %v1073 = vpop.xlane.xlu0 %1072
        %v1074 = vsel %vm900, %v1012, 0.0
        %1075 = vadd.xlane.f32.xlu0 %v1074
        %v1076 = vpop.xlane.xlu0 %1075
        %v1077 = vsel %vm900, %v1013, 0.0
        %1078 = vadd.xlane.f32.xlu0 %v1077
        %v1079 = vpop.xlane.xlu0 %1078
        %v1080 = vsel %vm900, %v1014, 0.0
        %1081 = vadd.xlane.f32.xlu0 %v1080
        %v1082 = vpop.xlane.xlu0 %1081
        %v1083 = vsel %vm900, %v1015, 0.0
        %1084 = vadd.xlane.f32.xlu0 %v1083
        %v1085 = vpop.xlane.xlu0 %1084
        %v1086 = vsel %vm900, %v1016, 0.0
        %1087 = vadd.xlane.f32.xlu0 %v1086
        %v1088 = vpop.xlane.xlu0 %1087
        %v1089 = vsel %vm900, %v1017, 0.0
        %1090 = vadd.xlane.f32.xlu0 %v1089
        %v1091 = vpop.xlane.xlu0 %1090
        %v1092 = vsel %vm900, %v1018, 0.0
        %1093 = vadd.xlane.f32.xlu0 %v1092
        %v1094 = vpop.xlane.xlu0 %1093
        %v1095 = vsel %vm900, %v1019, 0.0
        %1096 = vadd.xlane.f32.xlu0 %v1095
        %v1097 = vpop.xlane.xlu0 %1096
        %v1098 = vsel %vm900, %v1020, 0.0
        %1099 = vadd.xlane.f32.xlu0 %v1098
        %v1100 = vpop.xlane.xlu0 %1099
        %v1101 = vsel %vm900, %v1021, 0.0
        %1102 = vadd.xlane.f32.xlu0 %v1101
        %v1103 = vpop.xlane.xlu0 %1102
        %v1104 = vsel %vm900, %v1022, 0.0
        %1105 = vadd.xlane.f32.xlu0 %v1104
        %v1106 = vpop.xlane.xlu0 %1105
        %v1107 = vsel %vm900, %v1023, 0.0
        %1108 = vadd.xlane.f32.xlu0 %v1107
        %v1109 = vpop.xlane.xlu0 %1108
        %v1110 = vsel %vm900, %v1024, 0.0
        %1111 = vadd.xlane.f32.xlu0 %v1110
        %v1112 = vpop.xlane.xlu0 %1111
        %v1113 = vsel %vm900, %v1025, 0.0
        %1114 = vadd.xlane.f32.xlu0 %v1113
        %v1115 = vpop.xlane.xlu0 %1114
        %v1116 = vsel %vm900, %v1026, 0.0
        %1117 = vadd.xlane.f32.xlu0 %v1116
        %v1118 = vpop.xlane.xlu0 %1117
        %v1119 = vsel %vm900, %v1027, 0.0
        %1120 = vadd.xlane.f32.xlu0 %v1119
        %v1121 = vpop.xlane.xlu0 %1120
        %v1122 = vsel %vm900, %v1028, 0.0
        %1123 = vadd.xlane.f32.xlu0 %v1122
        %v1124 = vpop.xlane.xlu0 %1123
        %v1125 = vmul.f32 %v836, %v836
        %v1126 = vmul.f32 %v837, %v837
        %v1127 = vmul.f32 %v838, %v838
        %v1128 = vmul.f32 %v839, %v839
        %v1129 = vmul.f32 %v840, %v840
        %v1130 = vmul.f32 %v841, %v841
        %v1131 = vmul.f32 %v842, %v842
        %v1132 = vmul.f32 %v843, %v843
        %v1133 = vmul.f32 %v844, %v844
        %v1134 = vmul.f32 %v845, %v845
        %v1135 = vmul.f32 %v846, %v846
        %v1136 = vmul.f32 %v847, %v847
        %v1137 = vmul.f32 %v848, %v848
        %v1138 = vmul.f32 %v849, %v849
        %v1139 = vmul.f32 %v850, %v850
        %v1140 = vmul.f32 %v851, %v851
        %v1141 = vmul.f32 %v852, %v852
        %v1142 = vmul.f32 %v853, %v853
        %v1143 = vmul.f32 %v854, %v854
        %v1144 = vmul.f32 %v855, %v855
        %v1145 = vmul.f32 %v856, %v856
        %v1146 = vmul.f32 %v857, %v857
        %v1147 = vmul.f32 %v858, %v858
        %v1148 = vmul.f32 %v859, %v859
        %v1149 = vmul.f32 %v860, %v860
        %v1150 = vmul.f32 %v861, %v861
        %v1151 = vmul.f32 %v862, %v862
        %v1152 = vmul.f32 %v863, %v863
        %v1153 = vmul.f32 %v864, %v864
        %v1154 = vmul.f32 %v865, %v865
        %v1155 = vmul.f32 %v866, %v866
        %v1156 = vmul.f32 %v867, %v867
        %v1157 = vsel %vm900, %v1125, 0.0
        %1158 = vadd.xlane.f32.xlu0 %v1157
        %v1159 = vpop.xlane.xlu0 %1158
        %v1160 = vsel %vm900, %v1126, 0.0
        %1161 = vadd.xlane.f32.xlu0 %v1160
        %v1162 = vpop.xlane.xlu0 %1161
        %v1163 = vsel %vm900, %v1127, 0.0
        %1164 = vadd.xlane.f32.xlu0 %v1163
        %v1165 = vpop.xlane.xlu0 %1164
        %v1166 = vsel %vm900, %v1128, 0.0
        %1167 = vadd.xlane.f32.xlu0 %v1166
        %v1168 = vpop.xlane.xlu0 %1167
        %v1169 = vsel %vm900, %v1129, 0.0
        %1170 = vadd.xlane.f32.xlu0 %v1169
        %v1171 = vpop.xlane.xlu0 %1170
        %v1172 = vsel %vm900, %v1130, 0.0
        %1173 = vadd.xlane.f32.xlu0 %v1172
        %v1174 = vpop.xlane.xlu0 %1173
        %v1175 = vsel %vm900, %v1131, 0.0
        %1176 = vadd.xlane.f32.xlu0 %v1175
        %v1177 = vpop.xlane.xlu0 %1176
        %v1178 = vsel %vm900, %v1132, 0.0
        %1179 = vadd.xlane.f32.xlu0 %v1178
        %v1180 = vpop.xlane.xlu0 %1179
        %v1181 = vsel %vm900, %v1133, 0.0
        %1182 = vadd.xlane.f32.xlu0 %v1181
        %v1183 = vpop.xlane.xlu0 %1182
        %v1184 = vsel %vm900, %v1134, 0.0
        %1185 = vadd.xlane.f32.xlu0 %v1184
        %v1186 = vpop.xlane.xlu0 %1185
        %v1187 = vsel %vm900, %v1135, 0.0
        %1188 = vadd.xlane.f32.xlu0 %v1187
        %v1189 = vpop.xlane.xlu0 %1188
        %v1190 = vsel %vm900, %v1136, 0.0
        %1191 = vadd.xlane.f32.xlu0 %v1190
        %v1192 = vpop.xlane.xlu0 %1191
        %v1193 = vsel %vm900, %v1137, 0.0
        %1194 = vadd.xlane.f32.xlu0 %v1193
        %v1195 = vpop.xlane.xlu0 %1194
        %v1196 = vsel %vm900, %v1138, 0.0
        %1197 = vadd.xlane.f32.xlu0 %v1196
        %v1198 = vpop.xlane.xlu0 %1197
        %v1199 = vsel %vm900, %v1139, 0.0
        %1200 = vadd.xlane.f32.xlu0 %v1199
        %v1201 = vpop.xlane.xlu0 %1200
        %v1202 = vsel %vm900, %v1140, 0.0
        %1203 = vadd.xlane.f32.xlu0 %v1202
        %v1204 = vpop.xlane.xlu0 %1203
        %v1205 = vsel %vm900, %v1141, 0.0
        %1206 = vadd.xlane.f32.xlu0 %v1205
        %v1207 = vpop.xlane.xlu0 %1206
        %v1208 = vsel %vm900, %v1142, 0.0
        %1209 = vadd.xlane.f32.xlu0 %v1208
        %v1210 = vpop.xlane.xlu0 %1209
        %v1211 = vsel %vm900, %v1143, 0.0
        %1212 = vadd.xlane.f32.xlu0 %v1211
        %v1213 = vpop.xlane.xlu0 %1212
        %v1214 = vsel %vm900, %v1144, 0.0
        %1215 = vadd.xlane.f32.xlu0 %v1214
        %v1216 = vpop.xlane.xlu0 %1215
        %v1217 = vsel %vm900, %v1145, 0.0
        %1218 = vadd.xlane.f32.xlu0 %v1217
        %v1219 = vpop.xlane.xlu0 %1218
        %v1220 = vsel %vm900, %v1146, 0.0
        %1221 = vadd.xlane.f32.xlu0 %v1220
        %v1222 = vpop.xlane.xlu0 %1221
        %v1223 = vsel %vm900, %v1147, 0.0
        %1224 = vadd.xlane.f32.xlu0 %v1223
        %v1225 = vpop.xlane.xlu0 %1224
        %v1226 = vsel %vm900, %v1148, 0.0
        %1227 = vadd.xlane.f32.xlu0 %v1226
        %v1228 = vpop.xlane.xlu0 %1227
        %v1229 = vsel %vm900, %v1149, 0.0
        %1230 = vadd.xlane.f32.xlu0 %v1229
        %v1231 = vpop.xlane.xlu0 %1230
        %v1232 = vsel %vm900, %v1150, 0.0
        %1233 = vadd.xlane.f32.xlu0 %v1232
        %v1234 = vpop.xlane.xlu0 %1233
        %v1235 = vsel %vm900, %v1151, 0.0
        %1236 = vadd.xlane.f32.xlu0 %v1235
        %v1237 = vpop.xlane.xlu0 %1236
        %v1238 = vsel %vm900, %v1152, 0.0
        %1239 = vadd.xlane.f32.xlu0 %v1238
        %v1240 = vpop.xlane.xlu0 %1239
        %v1241 = vsel %vm900, %v1153, 0.0
        %1242 = vadd.xlane.f32.xlu0 %v1241
        %v1243 = vpop.xlane.xlu0 %1242
        %v1244 = vsel %vm900, %v1154, 0.0
        %1245 = vadd.xlane.f32.xlu0 %v1244
        %v1246 = vpop.xlane.xlu0 %1245
        %v1247 = vsel %vm900, %v1155, 0.0
        %1248 = vadd.xlane.f32.xlu0 %v1247
        %v1249 = vpop.xlane.xlu0 %1248
        %v1250 = vsel %vm900, %v1156, 0.0
        %1251 = vadd.xlane.f32.xlu0 %v1250
        %v1252 = vpop.xlane.xlu0 %1251
        %v1254 = vsel %vm900, %v804, 0
        %v1257 = vsel %vm900, %v805, 0
        %v1260 = vsel %vm900, %v806, 0
        %v1263 = vsel %vm900, %v807, 0
        %v1266 = vsel %vm900, %v808, 0
        %v1269 = vsel %vm900, %v809, 0
        %v1272 = vsel %vm900, %v810, 0
        %v1275 = vsel %vm900, %v811, 0
        %v1278 = vsel %vm900, %v812, 0
        %v1281 = vsel %vm900, %v813, 0
        %v1284 = vsel %vm900, %v814, 0
        %v1287 = vsel %vm900, %v815, 0
        %v1290 = vsel %vm900, %v816, 0
        %v1293 = vsel %vm900, %v817, 0
        %v1296 = vsel %vm900, %v818, 0
        %v1299 = vsel %vm900, %v819, 0
        %v1302 = vsel %vm900, %v772, 0
        %v1305 = vsel %vm900, %v773, 0
        %v1308 = vsel %vm900, %v774, 0
        %v1311 = vsel %vm900, %v775, 0
        %v1314 = vsel %vm900, %v776, 0
        %v1317 = vsel %vm900, %v777, 0
        %v1320 = vsel %vm900, %v778, 0
        %v1323 = vsel %vm900, %v779, 0
        %v1326 = vsel %vm900, %v780, 0
        %v1329 = vsel %vm900, %v781, 0
        %v1332 = vsel %vm900, %v782, 0
        %v1335 = vsel %vm900, %v783, 0
        %v1338 = vsel %vm900, %v784, 0
        %v1341 = vsel %vm900, %v785, 0
        %v1344 = vsel %vm900, %v786, 0
        %v1347 = vsel %vm900, %v787, 0
        %v1350 = vsel %vm900, %v836, 0
        %v1353 = vsel %vm900, %v837, 0
        %v1356 = vsel %vm900, %v838, 0
        %v1359 = vsel %vm900, %v839, 0
        %v1362 = vsel %vm900, %v840, 0
        %v1365 = vsel %vm900, %v841, 0
        %v1368 = vsel %vm900, %v842, 0
        %v1371 = vsel %vm900, %v843, 0
        %v1374 = vsel %vm900, %v844, 0
        %v1377 = vsel %vm900, %v845, 0
        %v1380 = vsel %vm900, %v846, 0
        %v1383 = vsel %vm900, %v847, 0
        %v1386 = vsel %vm900, %v848, 0
        %v1389 = vsel %vm900, %v849, 0
        %v1392 = vsel %vm900, %v850, 0
        %v1395 = vsel %vm900, %v851, 0
        %1397 = vmatprep.subr.mxu0 0.0
        %1398 = vmatpush1.xpose.msra.mxu0 %v1350
        %1399 = vmatprep.subr.mxu0 0.0
        %1400 = vmatpush1.xpose.msra.mxu0 %v1353
        %1401 = vmatprep.subr.mxu0 0.0
        %1402 = vmatpush1.xpose.msra.mxu0 %v1356
        %1403 = vmatprep.subr.mxu0 0.0
        %1404 = vmatpush1.xpose.msra.mxu0 %v1359
        %1405 = vmatprep.subr.mxu0 0.0
        %1406 = vmatpush1.xpose.msra.mxu0 %v1362
        %1407 = vmatprep.subr.mxu0 0.0
        %1408 = vmatpush1.xpose.msra.mxu0 %v1365
        %1409 = vmatprep.subr.mxu0 0.0
        %1410 = vmatpush1.xpose.msra.mxu0 %v1368
        %1411 = vmatprep.subr.mxu0 0.0
        %1412 = vmatpush1.xpose.msra.mxu0 %v1371
        %1413 = vmatprep.subr.mxu0 0.0
        %1414 = vmatpush1.xpose.msra.mxu0 %v1374
        %1415 = vmatprep.subr.mxu0 0.0
        %1416 = vmatpush1.xpose.msra.mxu0 %v1377
        %1417 = vmatprep.subr.mxu0 0.0
        %1418 = vmatpush1.xpose.msra.mxu0 %v1380
        %1419 = vmatprep.subr.mxu0 0.0
        %1420 = vmatpush1.xpose.msra.mxu0 %v1383
        %1421 = vmatprep.subr.mxu0 0.0
        %1422 = vmatpush1.xpose.msra.mxu0 %v1386
        %1423 = vmatprep.subr.mxu0 0.0
        %1424 = vmatpush1.xpose.msra.mxu0 %v1389
        %1425 = vmatprep.subr.mxu0 0.0
        %1426 = vmatpush1.xpose.msra.mxu0 %v1392
        %1427 = vmatprep.subr.mxu0 0.0
        %1428 = vmatpush1.xpose.msra.mxu0 %v1395
        %1429 = vmatprep.subr.mxu0 0.0
        %1430 = vmatpush1.xpose.msra.mxu0 0.0
        %1431 = vmatprep.subr.mxu0 0.0
        %1432 = vmatpush1.xpose.msra.mxu0 0.0
        %1433 = vmatprep.subr.mxu0 0.0
        %1434 = vmatpush1.xpose.msra.mxu0 0.0
        %1435 = vmatprep.subr.mxu0 0.0
        %1436 = vmatpush1.xpose.msra.mxu0 0.0
        %1437 = vmatprep.subr.mxu0 0.0
        %1438 = vmatpush1.xpose.msra.mxu0 0.0
        %1439 = vmatprep.subr.mxu0 0.0
        %1440 = vmatpush1.xpose.msra.mxu0 0.0
        %1441 = vmatprep.subr.mxu0 0.0
        %1442 = vmatpush1.xpose.msra.mxu0 0.0
        %1443 = vmatprep.subr.mxu0 0.0
        %1444 = vmatpush1.xpose.msra.mxu0 0.0
        %1445 = vmatprep.subr.mxu0 0.0
        %1446 = vmatpush1.xpose.msra.mxu0 0.0
        %1447 = vmatprep.subr.mxu0 0.0
        %1448 = vmatpush1.xpose.msra.mxu0 0.0
        %1449 = vmatprep.subr.mxu0 0.0
        %1450 = vmatpush1.xpose.msra.mxu0 0.0
        %1451 = vmatprep.subr.mxu0 0.0
        %1452 = vmatpush1.xpose.msra.mxu0 0.0
        %1453 = vmatprep.subr.mxu0 0.0
        %1454 = vmatpush1.xpose.msra.mxu0 0.0
        %1455 = vmatprep.subr.mxu0 0.0
        %1456 = vmatpush1.xpose.msra.mxu0 0.0
        %1457 = vmatprep.subr.mxu0 0.0
        %1458 = vmatpush1.xpose.msra.mxu0 0.0
        %1459 = vmatprep.subr.mxu0 0.0
        %1460 = vmatpush1.xpose.msra.mxu0 0.0
        %1461 = vmatprep.mubr.f32.mxu0 0.0
        %1462 = vmatmul.mubr.f32.gmra.mrb[0].mxu0 %v1254
        %v1463 = vpop.f32.mrb[0].mxu0
        %v1464 = vadd.f32 0.0, %v1463
        %v1465 = vpop.f32.mrb[0].mxu0
        %1466 = vmatprep.mubr.f32.mxu0 0.0
        %1467 = vmatmul.mubr.f32.gmra.mrb[0].mxu0 %v1257
        %v1468 = vpop.f32.mrb[0].mxu0
        %v1469 = vadd.f32 0.0, %v1468
        %v1470 = vpop.f32.mrb[0].mxu0
        %1471 = vmatprep.mubr.f32.mxu0 0.0
        %1472 = vmatmul.mubr.f32.gmra.mrb[0].mxu0 %v1260
        %v1473 = vpop.f32.mrb[0].mxu0
        %v1474 = vadd.f32 0.0, %v1473
        %v1475 = vpop.f32.mrb[0].mxu0
        %1476 = vmatprep.mubr.f32.mxu0 0.0
        %1477 = vmatmul.mubr.f32.gmra.mrb[0].mxu0 %v1263
        %v1478 = vpop.f32.mrb[0].mxu0
        %v1479 = vadd.f32 0.0, %v1478
        %v1480 = vpop.f32.mrb[0].mxu0
        %1481 = vmatprep.mubr.f32.mxu0 0.0
        %1482 = vmatmul.mubr.f32.gmra.mrb[0].mxu0 %v1266
        %v1483 = vpop.f32.mrb[0].mxu0
        %v1484 = vadd.f32 0.0, %v1483
        %v1485 = vpop.f32.mrb[0].mxu0
        %1486 = vmatprep.mubr.f32.mxu0 0.0
        %1487 = vmatmul.mubr.f32.gmra.mrb[0].mxu0 %v1269
        %v1488 = vpop.f32.mrb[0].mxu0
        %v1489 = vadd.f32 0.0, %v1488
        %v1490 = vpop.f32.mrb[0].mxu0
        %1491 = vmatprep.mubr.f32.mxu0 0.0
        %1492 = vmatmul.mubr.f32.gmra.mrb[0].mxu0 %v1272
        %v1493 = vpop.f32.mrb[0].mxu0
        %v1494 = vadd.f32 0.0, %v1493
        %v1495 = vpop.f32.mrb[0].mxu0
        %1496 = vmatprep.mubr.f32.mxu0 0.0
        %1497 = vmatmul.mubr.f32.gmra.mrb[0].mxu0 %v1275
        %v1498 = vpop.f32.mrb[0].mxu0
        %v1499 = vadd.f32 0.0, %v1498
        %v1500 = vpop.f32.mrb[0].mxu0
        %1501 = vmatprep.mubr.f32.mxu0 0.0
        %1502 = vmatmul.mubr.f32.gmra.mrb[0].mxu0 %v1278
        %v1503 = vpop.f32.mrb[0].mxu0
        %v1504 = vadd.f32 0.0, %v1503
        %v1505 = vpop.f32.mrb[0].mxu0
        %1506 = vmatprep.mubr.f32.mxu0 0.0
        %1507 = vmatmul.mubr.f32.gmra.mrb[0].mxu0 %v1281
        %v1508 = vpop.f32.mrb[0].mxu0
        %v1509 = vadd.f32 0.0, %v1508
        %v1510 = vpop.f32.mrb[0].mxu0
        %1511 = vmatprep.mubr.f32.mxu0 0.0
        %1512 = vmatmul.mubr.f32.gmra.mrb[0].mxu0 %v1284
        %v1513 = vpop.f32.mrb[0].mxu0
        %v1514 = vadd.f32 0.0, %v1513
        %v1515 = vpop.f32.mrb[0].mxu0
        %1516 = vmatprep.mubr.f32.mxu0 0.0
        %1517 = vmatmul.mubr.f32.gmra.mrb[0].mxu0 %v1287
        %v1518 = vpop.f32.mrb[0].mxu0
        %v1519 = vadd.f32 0.0, %v1518
        %v1520 = vpop.f32.mrb[0].mxu0
        %1521 = vmatprep.mubr.f32.mxu0 0.0
        %1522 = vmatmul.mubr.f32.gmra.mrb[0].mxu0 %v1290
        %v1523 = vpop.f32.mrb[0].mxu0
        %v1524 = vadd.f32 0.0, %v1523
        %v1525 = vpop.f32.mrb[0].mxu0
        %1526 = vmatprep.mubr.f32.mxu0 0.0
        %1527 = vmatmul.mubr.f32.gmra.mrb[0].mxu0 %v1293
        %v1528 = vpop.f32.mrb[0].mxu0
        %v1529 = vadd.f32 0.0, %v1528
        %v1530 = vpop.f32.mrb[0].mxu0
        %1531 = vmatprep.mubr.f32.mxu0 0.0
        %1532 = vmatmul.mubr.f32.gmra.mrb[0].mxu0 %v1296
        %v1533 = vpop.f32.mrb[0].mxu0
        %v1534 = vadd.f32 0.0, %v1533
        %v1535 = vpop.f32.mrb[0].mxu0
        %1536 = vmatprep.mubr.f32.mxu0 0.0
        %1537 = vmatmul.mubr.f32.gmra.mrb[0].mxu0 %v1299
        %v1538 = vpop.f32.mrb[0].mxu0
        %v1539 = vadd.f32 0.0, %v1538
        %v1540 = vpop.f32.mrb[0].mxu0
        %1541 = vmatprep.mubr.f32.mxu0 0.0
        %1542 = vmatmul.mubr.f32.gmra.mrb[0].mxu0 %v1302
        %v1543 = vpop.f32.mrb[0].mxu0
        %v1544 = vadd.f32 0.0, %v1543
        %v1545 = vpop.f32.mrb[0].mxu0
        %1546 = vmatprep.mubr.f32.mxu0 0.0
        %1547 = vmatmul.mubr.f32.gmra.mrb[0].mxu0 %v1305
        %v1548 = vpop.f32.mrb[0].mxu0
        %v1549 = vadd.f32 0.0, %v1548
        %v1550 = vpop.f32.mrb[0].mxu0
        %1551 = vmatprep.mubr.f32.mxu0 0.0
        %1552 = vmatmul.mubr.f32.gmra.mrb[0].mxu0 %v1308
        %v1553 = vpop.f32.mrb[0].mxu0
        %v1554 = vadd.f32 0.0, %v1553
        %v1555 = vpop.f32.mrb[0].mxu0
        %1556 = vmatprep.mubr.f32.mxu0 0.0
        %1557 = vmatmul.mubr.f32.gmra.mrb[0].mxu0 %v1311
        %v1558 = vpop.f32.mrb[0].mxu0
        %v1559 = vadd.f32 0.0, %v1558
        %v1560 = vpop.f32.mrb[0].mxu0
        %1561 = vmatprep.mubr.f32.mxu0 0.0
        %1562 = vmatmul.mubr.f32.gmra.mrb[0].mxu0 %v1314
        %v1563 = vpop.f32.mrb[0].mxu0
        %v1564 = vadd.f32 0.0, %v1563
        %v1565 = vpop.f32.mrb[0].mxu0
        %1566 = vmatprep.mubr.f32.mxu0 0.0
        %1567 = vmatmul.mubr.f32.gmra.mrb[0].mxu0 %v1317
        %v1568 = vpop.f32.mrb[0].mxu0
        %v1569 = vadd.f32 0.0, %v1568
        %v1570 = vpop.f32.mrb[0].mxu0
        %1571 = vmatprep.mubr.f32.mxu0 0.0
        %1572 = vmatmul.mubr.f32.gmra.mrb[0].mxu0 %v1320
        %v1573 = vpop.f32.mrb[0].mxu0
        %v1574 = vadd.f32 0.0, %v1573
        %v1575 = vpop.f32.mrb[0].mxu0
        %1576 = vmatprep.mubr.f32.mxu0 0.0
        %1577 = vmatmul.mubr.f32.gmra.mrb[0].mxu0 %v1323
        %v1578 = vpop.f32.mrb[0].mxu0
        %v1579 = vadd.f32 0.0, %v1578
        %v1580 = vpop.f32.mrb[0].mxu0
        %1581 = vmatprep.mubr.f32.mxu0 0.0
        %1582 = vmatmul.mubr.f32.gmra.mrb[0].mxu0 %v1326
        %v1583 = vpop.f32.mrb[0].mxu0
        %v1584 = vadd.f32 0.0, %v1583
        %v1585 = vpop.f32.mrb[0].mxu0
        %1586 = vmatprep.mubr.f32.mxu0 0.0
        %1587 = vmatmul.mubr.f32.gmra.mrb[0].mxu0 %v1329
        %v1588 = vpop.f32.mrb[0].mxu0
        %v1589 = vadd.f32 0.0, %v1588
        %v1590 = vpop.f32.mrb[0].mxu0
        %1591 = vmatprep.mubr.f32.mxu0 0.0
        %1592 = vmatmul.mubr.f32.gmra.mrb[0].mxu0 %v1332
        %v1593 = vpop.f32.mrb[0].mxu0
        %v1594 = vadd.f32 0.0, %v1593
        %v1595 = vpop.f32.mrb[0].mxu0
        %1596 = vmatprep.mubr.f32.mxu0 0.0
        %1597 = vmatmul.mubr.f32.gmra.mrb[0].mxu0 %v1335
        %v1598 = vpop.f32.mrb[0].mxu0
        %v1599 = vadd.f32 0.0, %v1598
        %v1600 = vpop.f32.mrb[0].mxu0
        %1601 = vmatprep.mubr.f32.mxu0 0.0
        %1602 = vmatmul.mubr.f32.gmra.mrb[0].mxu0 %v1338
        %v1603 = vpop.f32.mrb[0].mxu0
        %v1604 = vadd.f32 0.0, %v1603
        %v1605 = vpop.f32.mrb[0].mxu0
        %1606 = vmatprep.mubr.f32.mxu0 0.0
        %1607 = vmatmul.mubr.f32.gmra.mrb[0].mxu0 %v1341
        %v1608 = vpop.f32.mrb[0].mxu0
        %v1609 = vadd.f32 0.0, %v1608
        %v1610 = vpop.f32.mrb[0].mxu0
        %1611 = vmatprep.mubr.f32.mxu0 0.0
        %1612 = vmatmul.mubr.f32.gmra.mrb[0].mxu0 %v1344
        %v1613 = vpop.f32.mrb[0].mxu0
        %v1614 = vadd.f32 0.0, %v1613
        %v1615 = vpop.f32.mrb[0].mxu0
        %1616 = vmatprep.mubr.f32.mxu0 0.0
        %1617 = vmatmul.mubr.f32.gmra.mrb[0].mxu0 %v1347
        %v1618 = vpop.f32.mrb[0].mxu0
        %v1619 = vadd.f32 0.0, %v1618
        %v1620 = vpop.f32.mrb[0].mxu0
        %1621 = vdwg.mxu0
        %v1623 = vsel %vm900, %v820, 0
        %v1626 = vsel %vm900, %v821, 0
        %v1629 = vsel %vm900, %v822, 0
        %v1632 = vsel %vm900, %v823, 0
        %v1635 = vsel %vm900, %v824, 0
        %v1638 = vsel %vm900, %v825, 0
        %v1641 = vsel %vm900, %v826, 0
        %v1644 = vsel %vm900, %v827, 0
        %v1647 = vsel %vm900, %v828, 0
        %v1650 = vsel %vm900, %v829, 0
        %v1653 = vsel %vm900, %v830, 0
        %v1656 = vsel %vm900, %v831, 0
        %v1659 = vsel %vm900, %v832, 0
        %v1662 = vsel %vm900, %v833, 0
        %v1665 = vsel %vm900, %v834, 0
        %v1668 = vsel %vm900, %v835, 0
        %v1671 = vsel %vm900, %v788, 0
        %v1674 = vsel %vm900, %v789, 0
        %v1677 = vsel %vm900, %v790, 0
        %v1680 = vsel %vm900, %v791, 0
        %v1683 = vsel %vm900, %v792, 0
        %v1686 = vsel %vm900, %v793, 0
        %v1689 = vsel %vm900, %v794, 0
        %v1692 = vsel %vm900, %v795, 0
        %v1695 = vsel %vm900, %v796, 0
        %v1698 = vsel %vm900, %v797, 0
        %v1701 = vsel %vm900, %v798, 0
        %v1704 = vsel %vm900, %v799, 0
        %v1707 = vsel %vm900, %v800, 0
        %v1710 = vsel %vm900, %v801, 0
        %v1713 = vsel %vm900, %v802, 0
        %v1716 = vsel %vm900, %v803, 0
        %v1719 = vsel %vm900, %v852, 0
        %v1722 = vsel %vm900, %v853, 0
        %v1725 = vsel %vm900, %v854, 0
        %v1728 = vsel %vm900, %v855, 0
        %v1731 = vsel %vm900, %v856, 0
        %v1734 = vsel %vm900, %v857, 0
        %v1737 = vsel %vm900, %v858, 0
        %v1740 = vsel %vm900, %v859, 0
        %v1743 = vsel %vm900, %v860, 0
        %v1746 = vsel %vm900, %v861, 0
        %v1749 = vsel %vm900, %v862, 0
        %v1752 = vsel %vm900, %v863, 0
        %v1755 = vsel %vm900, %v864, 0
        %v1758 = vsel %vm900, %v865, 0
        %v1761 = vsel %vm900, %v866, 0
        %v1764 = vsel %vm900, %v867, 0
        %1766 = vmatprep.subr.mxu0 0.0
        %1767 = vmatpush1.xpose.msra.mxu0 %v1719
        %1768 = vmatprep.subr.mxu0 0.0
        %1769 = vmatpush1.xpose.msra.mxu0 %v1722
        %1770 = vmatprep.subr.mxu0 0.0
        %1771 = vmatpush1.xpose.msra.mxu0 %v1725
        %1772 = vmatprep.subr.mxu0 0.0
        %1773 = vmatpush1.xpose.msra.mxu0 %v1728
        %1774 = vmatprep.subr.mxu0 0.0
        %1775 = vmatpush1.xpose.msra.mxu0 %v1731
        %1776 = vmatprep.subr.mxu0 0.0
        %1777 = vmatpush1.xpose.msra.mxu0 %v1734
        %1778 = vmatprep.subr.mxu0 0.0
        %1779 = vmatpush1.xpose.msra.mxu0 %v1737
        %1780 = vmatprep.subr.mxu0 0.0
        %1781 = vmatpush1.xpose.msra.mxu0 %v1740
        %1782 = vmatprep.subr.mxu0 0.0
        %1783 = vmatpush1.xpose.msra.mxu0 %v1743
        %1784 = vmatprep.subr.mxu0 0.0
        %1785 = vmatpush1.xpose.msra.mxu0 %v1746
        %1786 = vmatprep.subr.mxu0 0.0
        %1787 = vmatpush1.xpose.msra.mxu0 %v1749
        %1788 = vmatprep.subr.mxu0 0.0
        %1789 = vmatpush1.xpose.msra.mxu0 %v1752
        %1790 = vmatprep.subr.mxu0 0.0
        %1791 = vmatpush1.xpose.msra.mxu0 %v1755
        %1792 = vmatprep.subr.mxu0 0.0
        %1793 = vmatpush1.xpose.msra.mxu0 %v1758
        %1794 = vmatprep.subr.mxu0 0.0
        %1795 = vmatpush1.xpose.msra.mxu0 %v1761
        %1796 = vmatprep.subr.mxu0 0.0
        %1797 = vmatpush1.xpose.msra.mxu0 %v1764
        %1798 = vmatprep.subr.mxu0 0.0
        %1799 = vmatpush1.xpose.msra.mxu0 0.0
        %1800 = vmatprep.subr.mxu0 0.0
        %1801 = vmatpush1.xpose.msra.mxu0 0.0
        %1802 = vmatprep.subr.mxu0 0.0
        %1803 = vmatpush1.xpose.msra.mxu0 0.0
        %1804 = vmatprep.subr.mxu0 0.0
        %1805 = vmatpush1.xpose.msra.mxu0 0.0
        %1806 = vmatprep.subr.mxu0 0.0
        %1807 = vmatpush1.xpose.msra.mxu0 0.0
        %1808 = vmatprep.subr.mxu0 0.0
        %1809 = vmatpush1.xpose.msra.mxu0 0.0
        %1810 = vmatprep.subr.mxu0 0.0
        %1811 = vmatpush1.xpose.msra.mxu0 0.0
        %1812 = vmatprep.subr.mxu0 0.0
        %1813 = vmatpush1.xpose.msra.mxu0 0.0
        %1814 = vmatprep.subr.mxu0 0.0
        %1815 = vmatpush1.xpose.msra.mxu0 0.0
        %1816 = vmatprep.subr.mxu0 0.0
        %1817 = vmatpush1.xpose.msra.mxu0 0.0
        %1818 = vmatprep.subr.mxu0 0.0
        %1819 = vmatpush1.xpose.msra.mxu0 0.0
        %1820 = vmatprep.subr.mxu0 0.0
        %1821 = vmatpush1.xpose.msra.mxu0 0.0
        %1822 = vmatprep.subr.mxu0 0.0
        %1823 = vmatpush1.xpose.msra.mxu0 0.0
        %1824 = vmatprep.subr.mxu0 0.0
        %1825 = vmatpush1.xpose.msra.mxu0 0.0
        %1826 = vmatprep.subr.mxu0 0.0
        %1827 = vmatpush1.xpose.msra.mxu0 0.0
        %1828 = vmatprep.subr.mxu0 0.0
        %1829 = vmatpush1.xpose.msra.mxu0 0.0
        %1830 = vmatprep.mubr.f32.mxu0 0.0
        %1831 = vmatmul.mubr.f32.gmra.mrb[0].mxu0 %v1623
        %v1832 = vpop.f32.mrb[0].mxu0
        %v1833 = vadd.f32 0.0, %v1832
        %v1834 = vpop.f32.mrb[0].mxu0
        %1835 = vmatprep.mubr.f32.mxu0 0.0
        %1836 = vmatmul.mubr.f32.gmra.mrb[0].mxu0 %v1626
        %v1837 = vpop.f32.mrb[0].mxu0
        %v1838 = vadd.f32 0.0, %v1837
        %v1839 = vpop.f32.mrb[0].mxu0
        %1840 = vmatprep.mubr.f32.mxu0 0.0
        %1841 = vmatmul.mubr.f32.gmra.mrb[0].mxu0 %v1629
        %v1842 = vpop.f32.mrb[0].mxu0
        %v1843 = vadd.f32 0.0, %v1842
        %v1844 = vpop.f32.mrb[0].mxu0
        %1845 = vmatprep.mubr.f32.mxu0 0.0
        %1846 = vmatmul.mubr.f32.gmra.mrb[0].mxu0 %v1632
        %v1847 = vpop.f32.mrb[0].mxu0
        %v1848 = vadd.f32 0.0, %v1847
        %v1849 = vpop.f32.mrb[0].mxu0
        %1850 = vmatprep.mubr.f32.mxu0 0.0
        %1851 = vmatmul.mubr.f32.gmra.mrb[0].mxu0 %v1635
        %v1852 = vpop.f32.mrb[0].mxu0
        %v1853 = vadd.f32 0.0, %v1852
        %v1854 = vpop.f32.mrb[0].mxu0
        %1855 = vmatprep.mubr.f32.mxu0 0.0
        %1856 = vmatmul.mubr.f32.gmra.mrb[0].mxu0 %v1638
        %v1857 = vpop.f32.mrb[0].mxu0
        %v1858 = vadd.f32 0.0, %v1857
        %v1859 = vpop.f32.mrb[0].mxu0
        %1860 = vmatprep.mubr.f32.mxu0 0.0
        %1861 = vmatmul.mubr.f32.gmra.mrb[0].mxu0 %v1641
        %v1862 = vpop.f32.mrb[0].mxu0
        %v1863 = vadd.f32 0.0, %v1862
        %v1864 = vpop.f32.mrb[0].mxu0
        %1865 = vmatprep.mubr.f32.mxu0 0.0
        %1866 = vmatmul.mubr.f32.gmra.mrb[0].mxu0 %v1644
        %v1867 = vpop.f32.mrb[0].mxu0
        %v1868 = vadd.f32 0.0, %v1867
        %v1869 = vpop.f32.mrb[0].mxu0
        %1870 = vmatprep.mubr.f32.mxu0 0.0
        %1871 = vmatmul.mubr.f32.gmra.mrb[0].mxu0 %v1647
        %v1872 = vpop.f32.mrb[0].mxu0
        %v1873 = vadd.f32 0.0, %v1872
        %v1874 = vpop.f32.mrb[0].mxu0
        %1875 = vmatprep.mubr.f32.mxu0 0.0
        %1876 = vmatmul.mubr.f32.gmra.mrb[0].mxu0 %v1650
        %v1877 = vpop.f32.mrb[0].mxu0
        %v1878 = vadd.f32 0.0, %v1877
        %v1879 = vpop.f32.mrb[0].mxu0
        %1880 = vmatprep.mubr.f32.mxu0 0.0
        %1881 = vmatmul.mubr.f32.gmra.mrb[0].mxu0 %v1653
        %v1882 = vpop.f32.mrb[0].mxu0
        %v1883 = vadd.f32 0.0, %v1882
        %v1884 = vpop.f32.mrb[0].mxu0
        %1885 = vmatprep.mubr.f32.mxu0 0.0
        %1886 = vmatmul.mubr.f32.gmra.mrb[0].mxu0 %v1656
        %v1887 = vpop.f32.mrb[0].mxu0
        %v1888 = vadd.f32 0.0, %v1887
        %v1889 = vpop.f32.mrb[0].mxu0
        %1890 = vmatprep.mubr.f32.mxu0 0.0
        %1891 = vmatmul.mubr.f32.gmra.mrb[0].mxu0 %v1659
        %v1892 = vpop.f32.mrb[0].mxu0
        %v1893 = vadd.f32 0.0, %v1892
        %v1894 = vpop.f32.mrb[0].mxu0
        %1895 = vmatprep.mubr.f32.mxu0 0.0
        %1896 = vmatmul.mubr.f32.gmra.mrb[0].mxu0 %v1662
        %v1897 = vpop.f32.mrb[0].mxu0
        %v1898 = vadd.f32 0.0, %v1897
        %v1899 = vpop.f32.mrb[0].mxu0
        %1900 = vmatprep.mubr.f32.mxu0 0.0
        %1901 = vmatmul.mubr.f32.gmra.mrb[0].mxu0 %v1665
        %v1902 = vpop.f32.mrb[0].mxu0
        %v1903 = vadd.f32 0.0, %v1902
        %v1904 = vpop.f32.mrb[0].mxu0
        %1905 = vmatprep.mubr.f32.mxu0 0.0
        %1906 = vmatmul.mubr.f32.gmra.mrb[0].mxu0 %v1668
        %v1907 = vpop.f32.mrb[0].mxu0
        %v1908 = vadd.f32 0.0, %v1907
        %v1909 = vpop.f32.mrb[0].mxu0
        %1910 = vmatprep.mubr.f32.mxu0 0.0
        %1911 = vmatmul.mubr.f32.gmra.mrb[0].mxu0 %v1671
        %v1912 = vpop.f32.mrb[0].mxu0
        %v1913 = vadd.f32 0.0, %v1912
        %v1914 = vpop.f32.mrb[0].mxu0
        %1915 = vmatprep.mubr.f32.mxu0 0.0
        %1916 = vmatmul.mubr.f32.gmra.mrb[0].mxu0 %v1674
        %v1917 = vpop.f32.mrb[0].mxu0
        %v1918 = vadd.f32 0.0, %v1917
        %v1919 = vpop.f32.mrb[0].mxu0
        %1920 = vmatprep.mubr.f32.mxu0 0.0
        %1921 = vmatmul.mubr.f32.gmra.mrb[0].mxu0 %v1677
        %v1922 = vpop.f32.mrb[0].mxu0
        %v1923 = vadd.f32 0.0, %v1922
        %v1924 = vpop.f32.mrb[0].mxu0
        %1925 = vmatprep.mubr.f32.mxu0 0.0
        %1926 = vmatmul.mubr.f32.gmra.mrb[0].mxu0 %v1680
        %v1927 = vpop.f32.mrb[0].mxu0
        %v1928 = vadd.f32 0.0, %v1927
        %v1929 = vpop.f32.mrb[0].mxu0
        %1930 = vmatprep.mubr.f32.mxu0 0.0
        %1931 = vmatmul.mubr.f32.gmra.mrb[0].mxu0 %v1683
        %v1932 = vpop.f32.mrb[0].mxu0
        %v1933 = vadd.f32 0.0, %v1932
        %v1934 = vpop.f32.mrb[0].mxu0
        %1935 = vmatprep.mubr.f32.mxu0 0.0
        %1936 = vmatmul.mubr.f32.gmra.mrb[0].mxu0 %v1686
        %v1937 = vpop.f32.mrb[0].mxu0
        %v1938 = vadd.f32 0.0, %v1937
        %v1939 = vpop.f32.mrb[0].mxu0
        %1940 = vmatprep.mubr.f32.mxu0 0.0
        %1941 = vmatmul.mubr.f32.gmra.mrb[0].mxu0 %v1689
        %v1942 = vpop.f32.mrb[0].mxu0
        %v1943 = vadd.f32 0.0, %v1942
        %v1944 = vpop.f32.mrb[0].mxu0
        %1945 = vmatprep.mubr.f32.mxu0 0.0
        %1946 = vmatmul.mubr.f32.gmra.mrb[0].mxu0 %v1692
        %v1947 = vpop.f32.mrb[0].mxu0
        %v1948 = vadd.f32 0.0, %v1947
        %v1949 = vpop.f32.mrb[0].mxu0
        %1950 = vmatprep.mubr.f32.mxu0 0.0
        %1951 = vmatmul.mubr.f32.gmra.mrb[0].mxu0 %v1695
        %v1952 = vpop.f32.mrb[0].mxu0
        %v1953 = vadd.f32 0.0, %v1952
        %v1954 = vpop.f32.mrb[0].mxu0
        %1955 = vmatprep.mubr.f32.mxu0 0.0
        %1956 = vmatmul.mubr.f32.gmra.mrb[0].mxu0 %v1698
        %v1957 = vpop.f32.mrb[0].mxu0
        %v1958 = vadd.f32 0.0, %v1957
        %v1959 = vpop.f32.mrb[0].mxu0
        %1960 = vmatprep.mubr.f32.mxu0 0.0
        %1961 = vmatmul.mubr.f32.gmra.mrb[0].mxu0 %v1701
        %v1962 = vpop.f32.mrb[0].mxu0
        %v1963 = vadd.f32 0.0, %v1962
        %v1964 = vpop.f32.mrb[0].mxu0
        %1965 = vmatprep.mubr.f32.mxu0 0.0
        %1966 = vmatmul.mubr.f32.gmra.mrb[0].mxu0 %v1704
        %v1967 = vpop.f32.mrb[0].mxu0
        %v1968 = vadd.f32 0.0, %v1967
        %v1969 = vpop.f32.mrb[0].mxu0
        %1970 = vmatprep.mubr.f32.mxu0 0.0
        %1971 = vmatmul.mubr.f32.gmra.mrb[0].mxu0 %v1707
        %v1972 = vpop.f32.mrb[0].mxu0
        %v1973 = vadd.f32 0.0, %v1972
        %v1974 = vpop.f32.mrb[0].mxu0
        %1975 = vmatprep.mubr.f32.mxu0 0.0
        %1976 = vmatmul.mubr.f32.gmra.mrb[0].mxu0 %v1710
        %v1977 = vpop.f32.mrb[0].mxu0
        %v1978 = vadd.f32 0.0, %v1977
        %v1979 = vpop.f32.mrb[0].mxu0
        %1980 = vmatprep.mubr.f32.mxu0 0.0
        %1981 = vmatmul.mubr.f32.gmra.mrb[0].mxu0 %v1713
        %v1982 = vpop.f32.mrb[0].mxu0
        %v1983 = vadd.f32 0.0, %v1982
        %v1984 = vpop.f32.mrb[0].mxu0
        %1985 = vmatprep.mubr.f32.mxu0 0.0
        %1986 = vmatmul.mubr.f32.gmra.mrb[0].mxu0 %v1716
        %v1987 = vpop.f32.mrb[0].mxu0
        %v1988 = vadd.f32 0.0, %v1987
        %v1989 = vpop.f32.mrb[0].mxu0
        %1990 = vdwg.mxu0
        %v2023 = vlaneseq
        %v2024 = vand.u32 %v2023, 127
        %v2025 = vlaneseq
        %v2026 = vshrl.u32 %v2025, 7
        %v2027 = vsub.s32 %v2024, %v2026
        %v2028 = vrot.slane %v1159, %v2027
        %v2029 = vadd.s32 %v2024, 4294967288
        %v2030 = vlaneseq
        %v2031 = vshrl.u32 %v2030, 7
        %v2032 = vsub.s32 %v2029, %v2031
        %v2033 = vrot.slane %v1162, %v2032
        %vm2034 = vcmask 130112
        %v2035 = vsel %vm2034, %v2033, %v2028
        %v2036 = vadd.s32 %v2024, 4294967280
        %v2037 = vlaneseq
        %v2038 = vshrl.u32 %v2037, 7
        %v2039 = vsub.s32 %v2036, %v2038
        %v2040 = vrot.slane %v1165, %v2039
        %vm2041 = vcmask 195712
        %v2042 = vsel %vm2041, %v2040, %v2035
        %v2043 = vadd.s32 %v2024, 4294967272
        %v2044 = vlaneseq
        %v2045 = vshrl.u32 %v2044, 7
        %v2046 = vsub.s32 %v2043, %v2045
        %v2047 = vrot.slane %v1168, %v2046
        %vm2048 = vcmask 261312
        %v2049 = vsel %vm2048, %v2047, %v2042
        %v2050 = vadd.s32 %v2024, 4294967264
        %v2051 = vlaneseq
        %v2052 = vshrl.u32 %v2051, 7
        %v2053 = vsub.s32 %v2050, %v2052
        %v2054 = vrot.slane %v1171, %v2053
        %vm2055 = vcmask 326912
        %v2056 = vsel %vm2055, %v2054, %v2049
        %v2057 = vadd.s32 %v2024, 4294967256
        %v2058 = vlaneseq
        %v2059 = vshrl.u32 %v2058, 7
        %v2060 = vsub.s32 %v2057, %v2059
        %v2061 = vrot.slane %v1174, %v2060
        %vm2062 = vcmask 392512
        %v2063 = vsel %vm2062, %v2061, %v2056
        %v2064 = vadd.s32 %v2024, 4294967248
        %v2065 = vlaneseq
        %v2066 = vshrl.u32 %v2065, 7
        %v2067 = vsub.s32 %v2064, %v2066
        %v2068 = vrot.slane %v1177, %v2067
        %vm2069 = vcmask 458112
        %v2070 = vsel %vm2069, %v2068, %v2063
        %v2071 = vadd.s32 %v2024, 4294967240
        %v2072 = vlaneseq
        %v2073 = vshrl.u32 %v2072, 7
        %v2074 = vsub.s32 %v2071, %v2073
        %v2075 = vrot.slane %v1180, %v2074
        %vm2076 = vcmask 523712
        %v2077 = vsel %vm2076, %v2075, %v2070
        %v2078 = vadd.s32 %v2024, 4294967232
        %v2079 = vlaneseq
        %v2080 = vshrl.u32 %v2079, 7
        %v2081 = vsub.s32 %v2078, %v2080
        %v2082 = vrot.slane %v1183, %v2081
        %vm2083 = vcmask 589312
        %v2084 = vsel %vm2083, %v2082, %v2077
        %v2085 = vadd.s32 %v2024, 4294967224
        %v2086 = vlaneseq
        %v2087 = vshrl.u32 %v2086, 7
        %v2088 = vsub.s32 %v2085, %v2087
        %v2089 = vrot.slane %v1186, %v2088
        %vm2090 = vcmask 654912
        %v2091 = vsel %vm2090, %v2089, %v2084
        %v2092 = vadd.s32 %v2024, 4294967216
        %v2093 = vlaneseq
        %v2094 = vshrl.u32 %v2093, 7
        %v2095 = vsub.s32 %v2092, %v2094
        %v2096 = vrot.slane %v1189, %v2095
        %vm2097 = vcmask 720512
        %v2098 = vsel %vm2097, %v2096, %v2091
        %v2099 = vadd.s32 %v2024, 4294967208
        %v2100 = vlaneseq
        %v2101 = vshrl.u32 %v2100, 7
        %v2102 = vsub.s32 %v2099, %v2101
        %v2103 = vrot.slane %v1192, %v2102
        %vm2104 = vcmask 786112
        %v2105 = vsel %vm2104, %v2103, %v2098
        %v2106 = vadd.s32 %v2024, 4294967200
        %v2107 = vlaneseq
        %v2108 = vshrl.u32 %v2107, 7
        %v2109 = vsub.s32 %v2106, %v2108
        %v2110 = vrot.slane %v1195, %v2109
        %vm2111 = vcmask 851712
        %v2112 = vsel %vm2111, %v2110, %v2105
        %v2113 = vadd.s32 %v2024, 4294967192
        %v2114 = vlaneseq
        %v2115 = vshrl.u32 %v2114, 7
        %v2116 = vsub.s32 %v2113, %v2115
        %v2117 = vrot.slane %v1198, %v2116
        %vm2118 = vcmask 917312
        %v2119 = vsel %vm2118, %v2117, %v2112
        %v2120 = vadd.s32 %v2024, 4294967184
        %v2121 = vlaneseq
        %v2122 = vshrl.u32 %v2121, 7
        %v2123 = vsub.s32 %v2120, %v2122
        %v2124 = vrot.slane %v1201, %v2123
        %vm2125 = vcmask 982912
        %v2126 = vsel %vm2125, %v2124, %v2119
        %v2127 = vadd.s32 %v2024, 4294967176
        %v2128 = vlaneseq
        %v2129 = vshrl.u32 %v2128, 7
        %v2130 = vsub.s32 %v2127, %v2129
        %v2131 = vrot.slane %v1204, %v2130
        %vm2132 = vcmask 1048512
        %v2133 = vsel %vm2132, %v2131, %v2126
        %v2134 = vlaneseq
        %v2135 = vshrl.u32 %v2134, 7
        %v2136 = vsub.s32 %v2024, %v2135
        %v2137 = vrot.slane %v1207, %v2136
        %v2138 = vlaneseq
        %v2139 = vshrl.u32 %v2138, 7
        %v2140 = vsub.s32 %v2029, %v2139
        %v2141 = vrot.slane %v1210, %v2140
        %v2142 = vsel %vm2034, %v2141, %v2137
        %v2143 = vlaneseq
        %v2144 = vshrl.u32 %v2143, 7
        %v2145 = vsub.s32 %v2036, %v2144
        %v2146 = vrot.slane %v1213, %v2145
        %v2147 = vsel %vm2041, %v2146, %v2142
        %v2148 = vlaneseq
        %v2149 = vshrl.u32 %v2148, 7
        %v2150 = vsub.s32 %v2043, %v2149
        %v2151 = vrot.slane %v1216, %v2150
        %v2152 = vsel %vm2048, %v2151, %v2147
        %v2153 = vlaneseq
        %v2154 = vshrl.u32 %v2153, 7
        %v2155 = vsub.s32 %v2050, %v2154
        %v2156 = vrot.slane %v1219, %v2155
        %v2157 = vsel %vm2055, %v2156, %v2152
        %v2158 = vlaneseq
        %v2159 = vshrl.u32 %v2158, 7
        %v2160 = vsub.s32 %v2057, %v2159
        %v2161 = vrot.slane %v1222, %v2160
        %v2162 = vsel %vm2062, %v2161, %v2157
        %v2163 = vlaneseq
        %v2164 = vshrl.u32 %v2163, 7
        %v2165 = vsub.s32 %v2064, %v2164
        %v2166 = vrot.slane %v1225, %v2165
        %v2167 = vsel %vm2069, %v2166, %v2162
        %v2168 = vlaneseq
        %v2169 = vshrl.u32 %v2168, 7
        %v2170 = vsub.s32 %v2071, %v2169
        %v2171 = vrot.slane %v1228, %v2170
        %v2172 = vsel %vm2076, %v2171, %v2167
        %v2173 = vlaneseq
        %v2174 = vshrl.u32 %v2173, 7
        %v2175 = vsub.s32 %v2078, %v2174
        %v2176 = vrot.slane %v1231, %v2175
        %v2177 = vsel %vm2083, %v2176, %v2172
        %v2178 = vlaneseq
        %v2179 = vshrl.u32 %v2178, 7
        %v2180 = vsub.s32 %v2085, %v2179
        %v2181 = vrot.slane %v1234, %v2180
        %v2182 = vsel %vm2090, %v2181, %v2177
        %v2183 = vlaneseq
        %v2184 = vshrl.u32 %v2183, 7
        %v2185 = vsub.s32 %v2092, %v2184
        %v2186 = vrot.slane %v1237, %v2185
        %v2187 = vsel %vm2097, %v2186, %v2182
        %v2188 = vlaneseq
        %v2189 = vshrl.u32 %v2188, 7
        %v2190 = vsub.s32 %v2099, %v2189
        %v2191 = vrot.slane %v1240, %v2190
        %v2192 = vsel %vm2104, %v2191, %v2187
        %v2193 = vlaneseq
        %v2194 = vshrl.u32 %v2193, 7
        %v2195 = vsub.s32 %v2106, %v2194
        %v2196 = vrot.slane %v1243, %v2195
        %v2197 = vsel %vm2111, %v2196, %v2192
        %v2198 = vlaneseq
        %v2199 = vshrl.u32 %v2198, 7
        %v2200 = vsub.s32 %v2113, %v2199
        %v2201 = vrot.slane %v1246, %v2200
        %v2202 = vsel %vm2118, %v2201, %v2197
        %v2203 = vlaneseq
        %v2204 = vshrl.u32 %v2203, 7
        %v2205 = vsub.s32 %v2120, %v2204
        %v2206 = vrot.slane %v1249, %v2205
        %v2207 = vsel %vm2125, %v2206, %v2202
        %v2208 = vlaneseq
        %v2209 = vshrl.u32 %v2208, 7
        %v2210 = vsub.s32 %v2127, %v2209
        %v2211 = vrot.slane %v1252, %v2210
        %v2212 = vsel %vm2132, %v2211, %v2207
        %vm2213 = vcmask 1042434
        %v2214 = vsel %vm2213, %v2133, %v2133
        %vm2215 = vcmask 1043459
        %v2216 = vsel %vm2215, %v2133, %v2214
        %vm2217 = vcmask 1044484
        %v2218 = vsel %vm2217, %v2133, %v2216
        %vm2219 = vcmask 1045509
        %v2220 = vsel %vm2219, %v2133, %v2218
        %vm2221 = vcmask 1046534
        %v2222 = vsel %vm2221, %v2133, %v2220
        %vm2223 = vcmask 1047559
        %v2224 = vsel %vm2223, %v2133, %v2222
        %v2225 = vsel %vm2213, %v2212, %v2212
        %v2226 = vsel %vm2215, %v2212, %v2225
        %v2227 = vsel %vm2217, %v2212, %v2226
        %v2228 = vsel %vm2219, %v2212, %v2227
        %v2229 = vsel %vm2221, %v2212, %v2228
        %v2230 = vsel %vm2223, %v2212, %v2229
        %v2233 = vadd.f32 %v1031, %v2224
        %v2234 = vadd.f32 %v1034, %v2224
        %v2235 = vadd.f32 %v1037, %v2224
        %v2236 = vadd.f32 %v1040, %v2224
        %v2237 = vadd.f32 %v1043, %v2224
        %v2238 = vadd.f32 %v1046, %v2224
        %v2239 = vadd.f32 %v1049, %v2224
        %v2240 = vadd.f32 %v1052, %v2224
        %v2241 = vadd.f32 %v1055, %v2224
        %v2242 = vadd.f32 %v1058, %v2224
        %v2243 = vadd.f32 %v1061, %v2224
        %v2244 = vadd.f32 %v1064, %v2224
        %v2245 = vadd.f32 %v1067, %v2224
        %v2246 = vadd.f32 %v1070, %v2224
        %v2247 = vadd.f32 %v1073, %v2224
        %v2248 = vadd.f32 %v1076, %v2224
        %v2249 = vadd.f32 %v1079, %v2230
        %v2250 = vadd.f32 %v1082, %v2230
        %v2251 = vadd.f32 %v1085, %v2230
        %v2252 = vadd.f32 %v1088, %v2230
        %v2253 = vadd.f32 %v1091, %v2230
        %v2254 = vadd.f32 %v1094, %v2230
        %v2255 = vadd.f32 %v1097, %v2230
        %v2256 = vadd.f32 %v1100, %v2230
        %v2257 = vadd.f32 %v1103, %v2230
        %v2258 = vadd.f32 %v1106, %v2230
        %v2259 = vadd.f32 %v1109, %v2230
        %v2260 = vadd.f32 %v1112, %v2230
        %v2261 = vadd.f32 %v1115, %v2230
        %v2262 = vadd.f32 %v1118, %v2230
        %v2263 = vadd.f32 %v1121, %v2230
        %v2264 = vadd.f32 %v1124, %v2230
        %v2265 = vmul.f32 %v1464, 2.0
        %v2266 = vmul.f32 %v1469, 2.0
        %v2267 = vmul.f32 %v1474, 2.0
        %v2268 = vmul.f32 %v1479, 2.0
        %v2269 = vmul.f32 %v1484, 2.0
        %v2270 = vmul.f32 %v1489, 2.0
        %v2271 = vmul.f32 %v1494, 2.0
        %v2272 = vmul.f32 %v1499, 2.0
        %v2273 = vmul.f32 %v1504, 2.0
        %v2274 = vmul.f32 %v1509, 2.0
        %v2275 = vmul.f32 %v1514, 2.0
        %v2276 = vmul.f32 %v1519, 2.0
        %v2277 = vmul.f32 %v1524, 2.0
        %v2278 = vmul.f32 %v1529, 2.0
        %v2279 = vmul.f32 %v1534, 2.0
        %v2280 = vmul.f32 %v1539, 2.0
        %v2281 = vmul.f32 %v1833, 2.0
        %v2282 = vmul.f32 %v1838, 2.0
        %v2283 = vmul.f32 %v1843, 2.0
        %v2284 = vmul.f32 %v1848, 2.0
        %v2285 = vmul.f32 %v1853, 2.0
        %v2286 = vmul.f32 %v1858, 2.0
        %v2287 = vmul.f32 %v1863, 2.0
        %v2288 = vmul.f32 %v1868, 2.0
        %v2289 = vmul.f32 %v1873, 2.0
        %v2290 = vmul.f32 %v1878, 2.0
        %v2291 = vmul.f32 %v1883, 2.0
        %v2292 = vmul.f32 %v1888, 2.0
        %v2293 = vmul.f32 %v1893, 2.0
        %v2294 = vmul.f32 %v1898, 2.0
        %v2295 = vmul.f32 %v1903, 2.0
        %v2296 = vmul.f32 %v1908, 2.0
        %v2297 = vsub.f32 %v2233, %v2265
        %v2298 = vsub.f32 %v2234, %v2266
        %v2299 = vsub.f32 %v2235, %v2267
        %v2300 = vsub.f32 %v2236, %v2268
        %v2301 = vsub.f32 %v2237, %v2269
        %v2302 = vsub.f32 %v2238, %v2270
        %v2303 = vsub.f32 %v2239, %v2271
        %v2304 = vsub.f32 %v2240, %v2272
        %v2305 = vsub.f32 %v2241, %v2273
        %v2306 = vsub.f32 %v2242, %v2274
        %v2307 = vsub.f32 %v2243, %v2275
        %v2308 = vsub.f32 %v2244, %v2276
        %v2309 = vsub.f32 %v2245, %v2277
        %v2310 = vsub.f32 %v2246, %v2278
        %v2311 = vsub.f32 %v2247, %v2279
        %v2312 = vsub.f32 %v2248, %v2280
        %v2313 = vsub.f32 %v2249, %v2281
        %v2314 = vsub.f32 %v2250, %v2282
        %v2315 = vsub.f32 %v2251, %v2283
        %v2316 = vsub.f32 %v2252, %v2284
        %v2317 = vsub.f32 %v2253, %v2285
        %v2318 = vsub.f32 %v2254, %v2286
        %v2319 = vsub.f32 %v2255, %v2287
        %v2320 = vsub.f32 %v2256, %v2288
        %v2321 = vsub.f32 %v2257, %v2289
        %v2322 = vsub.f32 %v2258, %v2290
        %v2323 = vsub.f32 %v2259, %v2291
        %v2324 = vsub.f32 %v2260, %v2292
        %v2325 = vsub.f32 %v2261, %v2293
        %v2326 = vsub.f32 %v2262, %v2294
        %v2327 = vsub.f32 %v2263, %v2295
        %v2328 = vsub.f32 %v2264, %v2296
        %v2329 = vmax.f32 %v2297, 0.0
        %v2330 = vmax.f32 %v2298, 0.0
        %v2331 = vmax.f32 %v2299, 0.0
        %v2332 = vmax.f32 %v2300, 0.0
        %v2333 = vmax.f32 %v2301, 0.0
        %v2334 = vmax.f32 %v2302, 0.0
        %v2335 = vmax.f32 %v2303, 0.0
        %v2336 = vmax.f32 %v2304, 0.0
        %v2337 = vmax.f32 %v2305, 0.0
        %v2338 = vmax.f32 %v2306, 0.0
        %v2339 = vmax.f32 %v2307, 0.0
        %v2340 = vmax.f32 %v2308, 0.0
        %v2341 = vmax.f32 %v2309, 0.0
        %v2342 = vmax.f32 %v2310, 0.0
        %v2343 = vmax.f32 %v2311, 0.0
        %v2344 = vmax.f32 %v2312, 0.0
        %v2345 = vmax.f32 %v2313, 0.0
        %v2346 = vmax.f32 %v2314, 0.0
        %v2347 = vmax.f32 %v2315, 0.0
        %v2348 = vmax.f32 %v2316, 0.0
        %v2349 = vmax.f32 %v2317, 0.0
        %v2350 = vmax.f32 %v2318, 0.0
        %v2351 = vmax.f32 %v2319, 0.0
        %v2352 = vmax.f32 %v2320, 0.0
        %v2353 = vmax.f32 %v2321, 0.0
        %v2354 = vmax.f32 %v2322, 0.0
        %v2355 = vmax.f32 %v2323, 0.0
        %v2356 = vmax.f32 %v2324, 0.0
        %v2357 = vmax.f32 %v2325, 0.0
        %v2358 = vmax.f32 %v2326, 0.0
        %v2359 = vmax.f32 %v2327, 0.0
        %v2360 = vmax.f32 %v2328, 0.0
        %v2361 = vrsqrt.pop %v2329
        %v2362 = vmul.f32 %v2329, %v2361
        %vm2363 = vcmp.eq.f32.partialorder %v2329, inf
        %v2364 = vsel %vm2363, %v2329, %v2362
        %vm2365 = vcmp.eq.f32.partialorder %v2329, 0.0
        %v2366 = vand.u32 %v2329, 2147483648
        %v2367 = vsel %vm2365, %v2366, %v2364
        %v2368 = vrsqrt.pop %v2330
        %v2369 = vmul.f32 %v2330, %v2368
        %vm2370 = vcmp.eq.f32.partialorder %v2330, inf
        %v2371 = vsel %vm2370, %v2330, %v2369
        %vm2372 = vcmp.eq.f32.partialorder %v2330, 0.0
        %v2373 = vand.u32 %v2330, 2147483648
        %v2374 = vsel %vm2372, %v2373, %v2371
        %v2375 = vrsqrt.pop %v2331
        %v2376 = vmul.f32 %v2331, %v2375
        %vm2377 = vcmp.eq.f32.partialorder %v2331, inf
        %v2378 = vsel %vm2377, %v2331, %v2376
        %vm2379 = vcmp.eq.f32.partialorder %v2331, 0.0
        %v2380 = vand.u32 %v2331, 2147483648
        %v2381 = vsel %vm2379, %v2380, %v2378
        %v2382 = vrsqrt.pop %v2332
        %v2383 = vmul.f32 %v2332, %v2382
        %vm2384 = vcmp.eq.f32.partialorder %v2332, inf
        %v2385 = vsel %vm2384, %v2332, %v2383
        %vm2386 = vcmp.eq.f32.partialorder %v2332, 0.0
        %v2387 = vand.u32 %v2332, 2147483648
        %v2388 = vsel %vm2386, %v2387, %v2385
        %v2389 = vrsqrt.pop %v2333
        %v2390 = vmul.f32 %v2333, %v2389
        %vm2391 = vcmp.eq.f32.partialorder %v2333, inf
        %v2392 = vsel %vm2391, %v2333, %v2390
        %vm2393 = vcmp.eq.f32.partialorder %v2333, 0.0
        %v2394 = vand.u32 %v2333, 2147483648
        %v2395 = vsel %vm2393, %v2394, %v2392
        %v2396 = vrsqrt.pop %v2334
        %v2397 = vmul.f32 %v2334, %v2396
        %vm2398 = vcmp.eq.f32.partialorder %v2334, inf
        %v2399 = vsel %vm2398, %v2334, %v2397
        %vm2400 = vcmp.eq.f32.partialorder %v2334, 0.0
        %v2401 = vand.u32 %v2334, 2147483648
        %v2402 = vsel %vm2400, %v2401, %v2399
        %v2403 = vrsqrt.pop %v2335
        %v2404 = vmul.f32 %v2335, %v2403
        %vm2405 = vcmp.eq.f32.partialorder %v2335, inf
        %v2406 = vsel %vm2405, %v2335, %v2404
        %vm2407 = vcmp.eq.f32.partialorder %v2335, 0.0
        %v2408 = vand.u32 %v2335, 2147483648
        %v2409 = vsel %vm2407, %v2408, %v2406
        %v2410 = vrsqrt.pop %v2336
        %v2411 = vmul.f32 %v2336, %v2410
        %vm2412 = vcmp.eq.f32.partialorder %v2336, inf
        %v2413 = vsel %vm2412, %v2336, %v2411
        %vm2414 = vcmp.eq.f32.partialorder %v2336, 0.0
        %v2415 = vand.u32 %v2336, 2147483648
        %v2416 = vsel %vm2414, %v2415, %v2413
        %v2417 = vrsqrt.pop %v2337
        %v2418 = vmul.f32 %v2337, %v2417
        %vm2419 = vcmp.eq.f32.partialorder %v2337, inf
        %v2420 = vsel %vm2419, %v2337, %v2418
        %vm2421 = vcmp.eq.f32.partialorder %v2337, 0.0
        %v2422 = vand.u32 %v2337, 2147483648
        %v2423 = vsel %vm2421, %v2422, %v2420
        %v2424 = vrsqrt.pop %v2338
        %v2425 = vmul.f32 %v2338, %v2424
        %vm2426 = vcmp.eq.f32.partialorder %v2338, inf
        %v2427 = vsel %vm2426, %v2338, %v2425
        %vm2428 = vcmp.eq.f32.partialorder %v2338, 0.0
        %v2429 = vand.u32 %v2338, 2147483648
        %v2430 = vsel %vm2428, %v2429, %v2427
        %v2431 = vrsqrt.pop %v2339
        %v2432 = vmul.f32 %v2339, %v2431
        %vm2433 = vcmp.eq.f32.partialorder %v2339, inf
        %v2434 = vsel %vm2433, %v2339, %v2432
        %vm2435 = vcmp.eq.f32.partialorder %v2339, 0.0
        %v2436 = vand.u32 %v2339, 2147483648
        %v2437 = vsel %vm2435, %v2436, %v2434
        %v2438 = vrsqrt.pop %v2340
        %v2439 = vmul.f32 %v2340, %v2438
        %vm2440 = vcmp.eq.f32.partialorder %v2340, inf
        %v2441 = vsel %vm2440, %v2340, %v2439
        %vm2442 = vcmp.eq.f32.partialorder %v2340, 0.0
        %v2443 = vand.u32 %v2340, 2147483648
        %v2444 = vsel %vm2442, %v2443, %v2441
        %v2445 = vrsqrt.pop %v2341
        %v2446 = vmul.f32 %v2341, %v2445
        %vm2447 = vcmp.eq.f32.partialorder %v2341, inf
        %v2448 = vsel %vm2447, %v2341, %v2446
        %vm2449 = vcmp.eq.f32.partialorder %v2341, 0.0
        %v2450 = vand.u32 %v2341, 2147483648
        %v2451 = vsel %vm2449, %v2450, %v2448
        %v2452 = vrsqrt.pop %v2342
        %v2453 = vmul.f32 %v2342, %v2452
        %vm2454 = vcmp.eq.f32.partialorder %v2342, inf
        %v2455 = vsel %vm2454, %v2342, %v2453
        %vm2456 = vcmp.eq.f32.partialorder %v2342, 0.0
        %v2457 = vand.u32 %v2342, 2147483648
        %v2458 = vsel %vm2456, %v2457, %v2455
        %v2459 = vrsqrt.pop %v2343
        %v2460 = vmul.f32 %v2343, %v2459
        %vm2461 = vcmp.eq.f32.partialorder %v2343, inf
        %v2462 = vsel %vm2461, %v2343, %v2460
        %vm2463 = vcmp.eq.f32.partialorder %v2343, 0.0
        %v2464 = vand.u32 %v2343, 2147483648
        %v2465 = vsel %vm2463, %v2464, %v2462
        %v2466 = vrsqrt.pop %v2344
        %v2467 = vmul.f32 %v2344, %v2466
        %vm2468 = vcmp.eq.f32.partialorder %v2344, inf
        %v2469 = vsel %vm2468, %v2344, %v2467
        %vm2470 = vcmp.eq.f32.partialorder %v2344, 0.0
        %v2471 = vand.u32 %v2344, 2147483648
        %v2472 = vsel %vm2470, %v2471, %v2469
        %v2473 = vrsqrt.pop %v2345
        %v2474 = vmul.f32 %v2345, %v2473
        %vm2475 = vcmp.eq.f32.partialorder %v2345, inf
        %v2476 = vsel %vm2475, %v2345, %v2474
        %vm2477 = vcmp.eq.f32.partialorder %v2345, 0.0
        %v2478 = vand.u32 %v2345, 2147483648
        %v2479 = vsel %vm2477, %v2478, %v2476
        %v2480 = vrsqrt.pop %v2346
        %v2481 = vmul.f32 %v2346, %v2480
        %vm2482 = vcmp.eq.f32.partialorder %v2346, inf
        %v2483 = vsel %vm2482, %v2346, %v2481
        %vm2484 = vcmp.eq.f32.partialorder %v2346, 0.0
        %v2485 = vand.u32 %v2346, 2147483648
        %v2486 = vsel %vm2484, %v2485, %v2483
        %v2487 = vrsqrt.pop %v2347
        %v2488 = vmul.f32 %v2347, %v2487
        %vm2489 = vcmp.eq.f32.partialorder %v2347, inf
        %v2490 = vsel %vm2489, %v2347, %v2488
        %vm2491 = vcmp.eq.f32.partialorder %v2347, 0.0
        %v2492 = vand.u32 %v2347, 2147483648
        %v2493 = vsel %vm2491, %v2492, %v2490
        %v2494 = vrsqrt.pop %v2348
        %v2495 = vmul.f32 %v2348, %v2494
        %vm2496 = vcmp.eq.f32.partialorder %v2348, inf
        %v2497 = vsel %vm2496, %v2348, %v2495
        %vm2498 = vcmp.eq.f32.partialorder %v2348, 0.0
        %v2499 = vand.u32 %v2348, 2147483648
        %v2500 = vsel %vm2498, %v2499, %v2497
        %v2501 = vrsqrt.pop %v2349
        %v2502 = vmul.f32 %v2349, %v2501
        %vm2503 = vcmp.eq.f32.partialorder %v2349, inf
        %v2504 = vsel %vm2503, %v2349, %v2502
        %vm2505 = vcmp.eq.f32.partialorder %v2349, 0.0
        %v2506 = vand.u32 %v2349, 2147483648
        %v2507 = vsel %vm2505, %v2506, %v2504
        %v2508 = vrsqrt.pop %v2350
        %v2509 = vmul.f32 %v2350, %v2508
        %vm2510 = vcmp.eq.f32.partialorder %v2350, inf
        %v2511 = vsel %vm2510, %v2350, %v2509
        %vm2512 = vcmp.eq.f32.partialorder %v2350, 0.0
        %v2513 = vand.u32 %v2350, 2147483648
        %v2514 = vsel %vm2512, %v2513, %v2511
        %v2515 = vrsqrt.pop %v2351
        %v2516 = vmul.f32 %v2351, %v2515
        %vm2517 = vcmp.eq.f32.partialorder %v2351, inf
        %v2518 = vsel %vm2517, %v2351, %v2516
        %vm2519 = vcmp.eq.f32.partialorder %v2351, 0.0
        %v2520 = vand.u32 %v2351, 2147483648
        %v2521 = vsel %vm2519, %v2520, %v2518
        %v2522 = vrsqrt.pop %v2352
        %v2523 = vmul.f32 %v2352, %v2522
        %vm2524 = vcmp.eq.f32.partialorder %v2352, inf
        %v2525 = vsel %vm2524, %v2352, %v2523
        %vm2526 = vcmp.eq.f32.partialorder %v2352, 0.0
        %v2527 = vand.u32 %v2352, 2147483648
        %v2528 = vsel %vm2526, %v2527, %v2525
        %v2529 = vrsqrt.pop %v2353
        %v2530 = vmul.f32 %v2353, %v2529
        %vm2531 = vcmp.eq.f32.partialorder %v2353, inf
        %v2532 = vsel %vm2531, %v2353, %v2530
        %vm2533 = vcmp.eq.f32.partialorder %v2353, 0.0
        %v2534 = vand.u32 %v2353, 2147483648
        %v2535 = vsel %vm2533, %v2534, %v2532
        %v2536 = vrsqrt.pop %v2354
        %v2537 = vmul.f32 %v2354, %v2536
        %vm2538 = vcmp.eq.f32.partialorder %v2354, inf
        %v2539 = vsel %vm2538, %v2354, %v2537
        %vm2540 = vcmp.eq.f32.partialorder %v2354, 0.0
        %v2541 = vand.u32 %v2354, 2147483648
        %v2542 = vsel %vm2540, %v2541, %v2539
        %v2543 = vrsqrt.pop %v2355
        %v2544 = vmul.f32 %v2355, %v2543
        %vm2545 = vcmp.eq.f32.partialorder %v2355, inf
        %v2546 = vsel %vm2545, %v2355, %v2544
        %vm2547 = vcmp.eq.f32.partialorder %v2355, 0.0
        %v2548 = vand.u32 %v2355, 2147483648
        %v2549 = vsel %vm2547, %v2548, %v2546
        %v2550 = vrsqrt.pop %v2356
        %v2551 = vmul.f32 %v2356, %v2550
        %vm2552 = vcmp.eq.f32.partialorder %v2356, inf
        %v2553 = vsel %vm2552, %v2356, %v2551
        %vm2554 = vcmp.eq.f32.partialorder %v2356, 0.0
        %v2555 = vand.u32 %v2356, 2147483648
        %v2556 = vsel %vm2554, %v2555, %v2553
        %v2557 = vrsqrt.pop %v2357
        %v2558 = vmul.f32 %v2357, %v2557
        %vm2559 = vcmp.eq.f32.partialorder %v2357, inf
        %v2560 = vsel %vm2559, %v2357, %v2558
        %vm2561 = vcmp.eq.f32.partialorder %v2357, 0.0
        %v2562 = vand.u32 %v2357, 2147483648
        %v2563 = vsel %vm2561, %v2562, %v2560
        %v2564 = vrsqrt.pop %v2358
        %v2565 = vmul.f32 %v2358, %v2564
        %vm2566 = vcmp.eq.f32.partialorder %v2358, inf
        %v2567 = vsel %vm2566, %v2358, %v2565
        %vm2568 = vcmp.eq.f32.partialorder %v2358, 0.0
        %v2569 = vand.u32 %v2358, 2147483648
        %v2570 = vsel %vm2568, %v2569, %v2567
        %v2571 = vrsqrt.pop %v2359
        %v2572 = vmul.f32 %v2359, %v2571
        %vm2573 = vcmp.eq.f32.partialorder %v2359, inf
        %v2574 = vsel %vm2573, %v2359, %v2572
        %vm2575 = vcmp.eq.f32.partialorder %v2359, 0.0
        %v2576 = vand.u32 %v2359, 2147483648
        %v2577 = vsel %vm2575, %v2576, %v2574
        %v2578 = vrsqrt.pop %v2360
        %v2579 = vmul.f32 %v2360, %v2578
        %vm2580 = vcmp.eq.f32.partialorder %v2360, inf
        %v2581 = vsel %vm2580, %v2360, %v2579
        %vm2582 = vcmp.eq.f32.partialorder %v2360, 0.0
        %v2583 = vand.u32 %v2360, 2147483648
        %v2584 = vsel %vm2582, %v2583, %v2581
        %v2585 = vadd.f32 %v903, %v2224
        %v2586 = vadd.f32 %v906, %v2224
        %v2587 = vadd.f32 %v909, %v2224
        %v2588 = vadd.f32 %v912, %v2224
        %v2589 = vadd.f32 %v915, %v2224
        %v2590 = vadd.f32 %v918, %v2224
        %v2591 = vadd.f32 %v921, %v2224
        %v2592 = vadd.f32 %v924, %v2224
        %v2593 = vadd.f32 %v927, %v2224
        %v2594 = vadd.f32 %v930, %v2224
        %v2595 = vadd.f32 %v933, %v2224
        %v2596 = vadd.f32 %v936, %v2224
        %v2597 = vadd.f32 %v939, %v2224
        %v2598 = vadd.f32 %v942, %v2224
        %v2599 = vadd.f32 %v945, %v2224
        %v2600 = vadd.f32 %v948, %v2224
        %v2601 = vadd.f32 %v951, %v2230
        %v2602 = vadd.f32 %v954, %v2230
        %v2603 = vadd.f32 %v957, %v2230
        %v2604 = vadd.f32 %v960, %v2230
        %v2605 = vadd.f32 %v963, %v2230
        %v2606 = vadd.f32 %v966, %v2230
        %v2607 = vadd.f32 %v969, %v2230
        %v2608 = vadd.f32 %v972, %v2230
        %v2609 = vadd.f32 %v975, %v2230
        %v2610 = vadd.f32 %v978, %v2230
        %v2611 = vadd.f32 %v981, %v2230
        %v2612 = vadd.f32 %v984, %v2230
        %v2613 = vadd.f32 %v987, %v2230
        %v2614 = vadd.f32 %v990, %v2230
        %v2615 = vadd.f32 %v993, %v2230
        %v2616 = vadd.f32 %v996, %v2230
        %v2617 = vmul.f32 %v1544, 2.0
        %v2618 = vmul.f32 %v1549, 2.0
        %v2619 = vmul.f32 %v1554, 2.0
        %v2620 = vmul.f32 %v1559, 2.0
        %v2621 = vmul.f32 %v1564, 2.0
        %v2622 = vmul.f32 %v1569, 2.0
        %v2623 = vmul.f32 %v1574, 2.0
        %v2624 = vmul.f32 %v1579, 2.0
        %v2625 = vmul.f32 %v1584, 2.0
        %v2626 = vmul.f32 %v1589, 2.0
        %v2627 = vmul.f32 %v1594, 2.0
        %v2628 = vmul.f32 %v1599, 2.0
        %v2629 = vmul.f32 %v1604, 2.0
        %v2630 = vmul.f32 %v1609, 2.0
        %v2631 = vmul.f32 %v1614, 2.0
        %v2632 = vmul.f32 %v1619, 2.0
        %v2633 = vmul.f32 %v1913, 2.0
        %v2634 = vmul.f32 %v1918, 2.0
        %v2635 = vmul.f32 %v1923, 2.0
        %v2636 = vmul.f32 %v1928, 2.0
        %v2637 = vmul.f32 %v1933, 2.0
        %v2638 = vmul.f32 %v1938, 2.0
        %v2639 = vmul.f32 %v1943, 2.0
        %v2640 = vmul.f32 %v1948, 2.0
        %v2641 = vmul.f32 %v1953, 2.0
        %v2642 = vmul.f32 %v1958, 2.0
        %v2643 = vmul.f32 %v1963, 2.0
        %v2644 = vmul.f32 %v1968, 2.0
        %v2645 = vmul.f32 %v1973, 2.0
        %v2646 = vmul.f32 %v1978, 2.0
        %v2647 = vmul.f32 %v1983, 2.0
        %v2648 = vmul.f32 %v1988, 2.0
        %v2649 = vsub.f32 %v2585, %v2617
        %v2650 = vsub.f32 %v2586, %v2618
        %v2651 = vsub.f32 %v2587, %v2619
        %v2652 = vsub.f32 %v2588, %v2620
        %v2653 = vsub.f32 %v2589, %v2621
        %v2654 = vsub.f32 %v2590, %v2622
        %v2655 = vsub.f32 %v2591, %v2623
        %v2656 = vsub.f32 %v2592, %v2624
        %v2657 = vsub.f32 %v2593, %v2625
        %v2658 = vsub.f32 %v2594, %v2626
        %v2659 = vsub.f32 %v2595, %v2627
        %v2660 = vsub.f32 %v2596, %v2628
        %v2661 = vsub.f32 %v2597, %v2629
        %v2662 = vsub.f32 %v2598, %v2630
        %v2663 = vsub.f32 %v2599, %v2631
        %v2664 = vsub.f32 %v2600, %v2632
        %v2665 = vsub.f32 %v2601, %v2633
        %v2666 = vsub.f32 %v2602, %v2634
        %v2667 = vsub.f32 %v2603, %v2635
        %v2668 = vsub.f32 %v2604, %v2636
        %v2669 = vsub.f32 %v2605, %v2637
        %v2670 = vsub.f32 %v2606, %v2638
        %v2671 = vsub.f32 %v2607, %v2639
        %v2672 = vsub.f32 %v2608, %v2640
        %v2673 = vsub.f32 %v2609, %v2641
        %v2674 = vsub.f32 %v2610, %v2642
        %v2675 = vsub.f32 %v2611, %v2643
        %v2676 = vsub.f32 %v2612, %v2644
        %v2677 = vsub.f32 %v2613, %v2645
        %v2678 = vsub.f32 %v2614, %v2646
        %v2679 = vsub.f32 %v2615, %v2647
        %v2680 = vsub.f32 %v2616, %v2648
        %v2681 = vmax.f32 %v2649, 0.0
        %v2682 = vmax.f32 %v2650, 0.0
        %v2683 = vmax.f32 %v2651, 0.0
        %v2684 = vmax.f32 %v2652, 0.0
        %v2685 = vmax.f32 %v2653, 0.0
        %v2686 = vmax.f32 %v2654, 0.0
        %v2687 = vmax.f32 %v2655, 0.0
        %v2688 = vmax.f32 %v2656, 0.0
        %v2689 = vmax.f32 %v2657, 0.0
        %v2690 = vmax.f32 %v2658, 0.0
        %v2691 = vmax.f32 %v2659, 0.0
        %v2692 = vmax.f32 %v2660, 0.0
        %v2693 = vmax.f32 %v2661, 0.0
        %v2694 = vmax.f32 %v2662, 0.0
        %v2695 = vmax.f32 %v2663, 0.0
        %v2696 = vmax.f32 %v2664, 0.0
        %v2697 = vmax.f32 %v2665, 0.0
        %v2698 = vmax.f32 %v2666, 0.0
        %v2699 = vmax.f32 %v2667, 0.0
        %v2700 = vmax.f32 %v2668, 0.0
        %v2701 = vmax.f32 %v2669, 0.0
        %v2702 = vmax.f32 %v2670, 0.0
        %v2703 = vmax.f32 %v2671, 0.0
        %v2704 = vmax.f32 %v2672, 0.0
        %v2705 = vmax.f32 %v2673, 0.0
        %v2706 = vmax.f32 %v2674, 0.0
        %v2707 = vmax.f32 %v2675, 0.0
        %v2708 = vmax.f32 %v2676, 0.0
        %v2709 = vmax.f32 %v2677, 0.0
        %v2710 = vmax.f32 %v2678, 0.0
        %v2711 = vmax.f32 %v2679, 0.0
        %v2712 = vmax.f32 %v2680, 0.0
        %v2713 = vrsqrt.pop %v2681
        %v2714 = vmul.f32 %v2681, %v2713
        %vm2715 = vcmp.eq.f32.partialorder %v2681, inf
        %v2716 = vsel %vm2715, %v2681, %v2714
        %vm2717 = vcmp.eq.f32.partialorder %v2681, 0.0
        %v2718 = vand.u32 %v2681, 2147483648
        %v2719 = vsel %vm2717, %v2718, %v2716
        %v2720 = vrsqrt.pop %v2682
        %v2721 = vmul.f32 %v2682, %v2720
        %vm2722 = vcmp.eq.f32.partialorder %v2682, inf
        %v2723 = vsel %vm2722, %v2682, %v2721
        %vm2724 = vcmp.eq.f32.partialorder %v2682, 0.0
        %v2725 = vand.u32 %v2682, 2147483648
        %v2726 = vsel %vm2724, %v2725, %v2723
        %v2727 = vrsqrt.pop %v2683
        %v2728 = vmul.f32 %v2683, %v2727
        %vm2729 = vcmp.eq.f32.partialorder %v2683, inf
        %v2730 = vsel %vm2729, %v2683, %v2728
        %vm2731 = vcmp.eq.f32.partialorder %v2683, 0.0
        %v2732 = vand.u32 %v2683, 2147483648
        %v2733 = vsel %vm2731, %v2732, %v2730
        %v2734 = vrsqrt.pop %v2684
        %v2735 = vmul.f32 %v2684, %v2734
        %vm2736 = vcmp.eq.f32.partialorder %v2684, inf
        %v2737 = vsel %vm2736, %v2684, %v2735
        %vm2738 = vcmp.eq.f32.partialorder %v2684, 0.0
        %v2739 = vand.u32 %v2684, 2147483648
        %v2740 = vsel %vm2738, %v2739, %v2737
        %v2741 = vrsqrt.pop %v2685
        %v2742 = vmul.f32 %v2685, %v2741
        %vm2743 = vcmp.eq.f32.partialorder %v2685, inf
        %v2744 = vsel %vm2743, %v2685, %v2742
        %vm2745 = vcmp.eq.f32.partialorder %v2685, 0.0
        %v2746 = vand.u32 %v2685, 2147483648
        %v2747 = vsel %vm2745, %v2746, %v2744
        %v2748 = vrsqrt.pop %v2686
        %v2749 = vmul.f32 %v2686, %v2748
        %vm2750 = vcmp.eq.f32.partialorder %v2686, inf
        %v2751 = vsel %vm2750, %v2686, %v2749
        %vm2752 = vcmp.eq.f32.partialorder %v2686, 0.0
        %v2753 = vand.u32 %v2686, 2147483648
        %v2754 = vsel %vm2752, %v2753, %v2751
        %v2755 = vrsqrt.pop %v2687
        %v2756 = vmul.f32 %v2687, %v2755
        %vm2757 = vcmp.eq.f32.partialorder %v2687, inf
        %v2758 = vsel %vm2757, %v2687, %v2756
        %vm2759 = vcmp.eq.f32.partialorder %v2687, 0.0
        %v2760 = vand.u32 %v2687, 2147483648
        %v2761 = vsel %vm2759, %v2760, %v2758
        %v2762 = vrsqrt.pop %v2688
        %v2763 = vmul.f32 %v2688, %v2762
        %vm2764 = vcmp.eq.f32.partialorder %v2688, inf
        %v2765 = vsel %vm2764, %v2688, %v2763
        %vm2766 = vcmp.eq.f32.partialorder %v2688, 0.0
        %v2767 = vand.u32 %v2688, 2147483648
        %v2768 = vsel %vm2766, %v2767, %v2765
        %v2769 = vrsqrt.pop %v2689
        %v2770 = vmul.f32 %v2689, %v2769
        %vm2771 = vcmp.eq.f32.partialorder %v2689, inf
        %v2772 = vsel %vm2771, %v2689, %v2770
        %vm2773 = vcmp.eq.f32.partialorder %v2689, 0.0
        %v2774 = vand.u32 %v2689, 2147483648
        %v2775 = vsel %vm2773, %v2774, %v2772
        %v2776 = vrsqrt.pop %v2690
        %v2777 = vmul.f32 %v2690, %v2776
        %vm2778 = vcmp.eq.f32.partialorder %v2690, inf
        %v2779 = vsel %vm2778, %v2690, %v2777
        %vm2780 = vcmp.eq.f32.partialorder %v2690, 0.0
        %v2781 = vand.u32 %v2690, 2147483648
        %v2782 = vsel %vm2780, %v2781, %v2779
        %v2783 = vrsqrt.pop %v2691
        %v2784 = vmul.f32 %v2691, %v2783
        %vm2785 = vcmp.eq.f32.partialorder %v2691, inf
        %v2786 = vsel %vm2785, %v2691, %v2784
        %vm2787 = vcmp.eq.f32.partialorder %v2691, 0.0
        %v2788 = vand.u32 %v2691, 2147483648
        %v2789 = vsel %vm2787, %v2788, %v2786
        %v2790 = vrsqrt.pop %v2692
        %v2791 = vmul.f32 %v2692, %v2790
        %vm2792 = vcmp.eq.f32.partialorder %v2692, inf
        %v2793 = vsel %vm2792, %v2692, %v2791
        %vm2794 = vcmp.eq.f32.partialorder %v2692, 0.0
        %v2795 = vand.u32 %v2692, 2147483648
        %v2796 = vsel %vm2794, %v2795, %v2793
        %v2797 = vrsqrt.pop %v2693
        %v2798 = vmul.f32 %v2693, %v2797
        %vm2799 = vcmp.eq.f32.partialorder %v2693, inf
        %v2800 = vsel %vm2799, %v2693, %v2798
        %vm2801 = vcmp.eq.f32.partialorder %v2693, 0.0
        %v2802 = vand.u32 %v2693, 2147483648
        %v2803 = vsel %vm2801, %v2802, %v2800
        %v2804 = vrsqrt.pop %v2694
        %v2805 = vmul.f32 %v2694, %v2804
        %vm2806 = vcmp.eq.f32.partialorder %v2694, inf
        %v2807 = vsel %vm2806, %v2694, %v2805
        %vm2808 = vcmp.eq.f32.partialorder %v2694, 0.0
        %v2809 = vand.u32 %v2694, 2147483648
        %v2810 = vsel %vm2808, %v2809, %v2807
        %v2811 = vrsqrt.pop %v2695
        %v2812 = vmul.f32 %v2695, %v2811
        %vm2813 = vcmp.eq.f32.partialorder %v2695, inf
        %v2814 = vsel %vm2813, %v2695, %v2812
        %vm2815 = vcmp.eq.f32.partialorder %v2695, 0.0
        %v2816 = vand.u32 %v2695, 2147483648
        %v2817 = vsel %vm2815, %v2816, %v2814
        %v2818 = vrsqrt.pop %v2696
        %v2819 = vmul.f32 %v2696, %v2818
        %vm2820 = vcmp.eq.f32.partialorder %v2696, inf
        %v2821 = vsel %vm2820, %v2696, %v2819
        %vm2822 = vcmp.eq.f32.partialorder %v2696, 0.0
        %v2823 = vand.u32 %v2696, 2147483648
        %v2824 = vsel %vm2822, %v2823, %v2821
        %v2825 = vrsqrt.pop %v2697
        %v2826 = vmul.f32 %v2697, %v2825
        %vm2827 = vcmp.eq.f32.partialorder %v2697, inf
        %v2828 = vsel %vm2827, %v2697, %v2826
        %vm2829 = vcmp.eq.f32.partialorder %v2697, 0.0
        %v2830 = vand.u32 %v2697, 2147483648
        %v2831 = vsel %vm2829, %v2830, %v2828
        %v2832 = vrsqrt.pop %v2698
        %v2833 = vmul.f32 %v2698, %v2832
        %vm2834 = vcmp.eq.f32.partialorder %v2698, inf
        %v2835 = vsel %vm2834, %v2698, %v2833
        %vm2836 = vcmp.eq.f32.partialorder %v2698, 0.0
        %v2837 = vand.u32 %v2698, 2147483648
        %v2838 = vsel %vm2836, %v2837, %v2835
        %v2839 = vrsqrt.pop %v2699
        %v2840 = vmul.f32 %v2699, %v2839
        %vm2841 = vcmp.eq.f32.partialorder %v2699, inf
        %v2842 = vsel %vm2841, %v2699, %v2840
        %vm2843 = vcmp.eq.f32.partialorder %v2699, 0.0
        %v2844 = vand.u32 %v2699, 2147483648
        %v2845 = vsel %vm2843, %v2844, %v2842
        %v2846 = vrsqrt.pop %v2700
        %v2847 = vmul.f32 %v2700, %v2846
        %vm2848 = vcmp.eq.f32.partialorder %v2700, inf
        %v2849 = vsel %vm2848, %v2700, %v2847
        %vm2850 = vcmp.eq.f32.partialorder %v2700, 0.0
        %v2851 = vand.u32 %v2700, 2147483648
        %v2852 = vsel %vm2850, %v2851, %v2849
        %v2853 = vrsqrt.pop %v2701
        %v2854 = vmul.f32 %v2701, %v2853
        %vm2855 = vcmp.eq.f32.partialorder %v2701, inf
        %v2856 = vsel %vm2855, %v2701, %v2854
        %vm2857 = vcmp.eq.f32.partialorder %v2701, 0.0
        %v2858 = vand.u32 %v2701, 2147483648
        %v2859 = vsel %vm2857, %v2858, %v2856
        %v2860 = vrsqrt.pop %v2702
        %v2861 = vmul.f32 %v2702, %v2860
        %vm2862 = vcmp.eq.f32.partialorder %v2702, inf
        %v2863 = vsel %vm2862, %v2702, %v2861
        %vm2864 = vcmp.eq.f32.partialorder %v2702, 0.0
        %v2865 = vand.u32 %v2702, 2147483648
        %v2866 = vsel %vm2864, %v2865, %v2863
        %v2867 = vrsqrt.pop %v2703
        %v2868 = vmul.f32 %v2703, %v2867
        %vm2869 = vcmp.eq.f32.partialorder %v2703, inf
        %v2870 = vsel %vm2869, %v2703, %v2868
        %vm2871 = vcmp.eq.f32.partialorder %v2703, 0.0
        %v2872 = vand.u32 %v2703, 2147483648
        %v2873 = vsel %vm2871, %v2872, %v2870
        %v2874 = vrsqrt.pop %v2704
        %v2875 = vmul.f32 %v2704, %v2874
        %vm2876 = vcmp.eq.f32.partialorder %v2704, inf
        %v2877 = vsel %vm2876, %v2704, %v2875
        %vm2878 = vcmp.eq.f32.partialorder %v2704, 0.0
        %v2879 = vand.u32 %v2704, 2147483648
        %v2880 = vsel %vm2878, %v2879, %v2877
        %v2881 = vrsqrt.pop %v2705
        %v2882 = vmul.f32 %v2705, %v2881
        %vm2883 = vcmp.eq.f32.partialorder %v2705, inf
        %v2884 = vsel %vm2883, %v2705, %v2882
        %vm2885 = vcmp.eq.f32.partialorder %v2705, 0.0
        %v2886 = vand.u32 %v2705, 2147483648
        %v2887 = vsel %vm2885, %v2886, %v2884
        %v2888 = vrsqrt.pop %v2706
        %v2889 = vmul.f32 %v2706, %v2888
        %vm2890 = vcmp.eq.f32.partialorder %v2706, inf
        %v2891 = vsel %vm2890, %v2706, %v2889
        %vm2892 = vcmp.eq.f32.partialorder %v2706, 0.0
        %v2893 = vand.u32 %v2706, 2147483648
        %v2894 = vsel %vm2892, %v2893, %v2891
        %v2895 = vrsqrt.pop %v2707
        %v2896 = vmul.f32 %v2707, %v2895
        %vm2897 = vcmp.eq.f32.partialorder %v2707, inf
        %v2898 = vsel %vm2897, %v2707, %v2896
        %vm2899 = vcmp.eq.f32.partialorder %v2707, 0.0
        %v2900 = vand.u32 %v2707, 2147483648
        %v2901 = vsel %vm2899, %v2900, %v2898
        %v2902 = vrsqrt.pop %v2708
        %v2903 = vmul.f32 %v2708, %v2902
        %vm2904 = vcmp.eq.f32.partialorder %v2708, inf
        %v2905 = vsel %vm2904, %v2708, %v2903
        %vm2906 = vcmp.eq.f32.partialorder %v2708, 0.0
        %v2907 = vand.u32 %v2708, 2147483648
        %v2908 = vsel %vm2906, %v2907, %v2905
        %v2909 = vrsqrt.pop %v2709
        %v2910 = vmul.f32 %v2709, %v2909
        %vm2911 = vcmp.eq.f32.partialorder %v2709, inf
        %v2912 = vsel %vm2911, %v2709, %v2910
        %vm2913 = vcmp.eq.f32.partialorder %v2709, 0.0
        %v2914 = vand.u32 %v2709, 2147483648
        %v2915 = vsel %vm2913, %v2914, %v2912
        %v2916 = vrsqrt.pop %v2710
        %v2917 = vmul.f32 %v2710, %v2916
        %vm2918 = vcmp.eq.f32.partialorder %v2710, inf
        %v2919 = vsel %vm2918, %v2710, %v2917
        %vm2920 = vcmp.eq.f32.partialorder %v2710, 0.0
        %v2921 = vand.u32 %v2710, 2147483648
        %v2922 = vsel %vm2920, %v2921, %v2919
        %v2923 = vrsqrt.pop %v2711
        %v2924 = vmul.f32 %v2711, %v2923
        %vm2925 = vcmp.eq.f32.partialorder %v2711, inf
        %v2926 = vsel %vm2925, %v2711, %v2924
        %vm2927 = vcmp.eq.f32.partialorder %v2711, 0.0
        %v2928 = vand.u32 %v2711, 2147483648
        %v2929 = vsel %vm2927, %v2928, %v2926
        %v2930 = vrsqrt.pop %v2712
        %v2931 = vmul.f32 %v2712, %v2930
        %vm2932 = vcmp.eq.f32.partialorder %v2712, inf
        %v2933 = vsel %vm2932, %v2712, %v2931
        %vm2934 = vcmp.eq.f32.partialorder %v2712, 0.0
        %v2935 = vand.u32 %v2712, 2147483648
        %v2936 = vsel %vm2934, %v2935, %v2933
        %v2937 = vsub.f32 %v2367, %v2719
        %v2938 = vsub.f32 %v2374, %v2726
        %v2939 = vsub.f32 %v2381, %v2733
        %v2940 = vsub.f32 %v2388, %v2740
        %v2941 = vsub.f32 %v2395, %v2747
        %v2942 = vsub.f32 %v2402, %v2754
        %v2943 = vsub.f32 %v2409, %v2761
        %v2944 = vsub.f32 %v2416, %v2768
        %v2945 = vsub.f32 %v2423, %v2775
        %v2946 = vsub.f32 %v2430, %v2782
        %v2947 = vsub.f32 %v2437, %v2789
        %v2948 = vsub.f32 %v2444, %v2796
        %v2949 = vsub.f32 %v2451, %v2803
        %v2950 = vsub.f32 %v2458, %v2810
        %v2951 = vsub.f32 %v2465, %v2817
        %v2952 = vsub.f32 %v2472, %v2824
        %v2953 = vsub.f32 %v2479, %v2831
        %v2954 = vsub.f32 %v2486, %v2838
        %v2955 = vsub.f32 %v2493, %v2845
        %v2956 = vsub.f32 %v2500, %v2852
        %v2957 = vsub.f32 %v2507, %v2859
        %v2958 = vsub.f32 %v2514, %v2866
        %v2959 = vsub.f32 %v2521, %v2873
        %v2960 = vsub.f32 %v2528, %v2880
        %v2961 = vsub.f32 %v2535, %v2887
        %v2962 = vsub.f32 %v2542, %v2894
        %v2963 = vsub.f32 %v2549, %v2901
        %v2964 = vsub.f32 %v2556, %v2908
        %v2965 = vsub.f32 %v2563, %v2915
        %v2966 = vsub.f32 %v2570, %v2922
        %v2967 = vsub.f32 %v2577, %v2929
        %v2968 = vsub.f32 %v2584, %v2936
        %v2969 = vand.u32 2147483647, %v2937
        %v2970 = vand.u32 2147483647, %v2938
        %v2971 = vand.u32 2147483647, %v2939
        %v2972 = vand.u32 2147483647, %v2940
        %v2973 = vand.u32 2147483647, %v2941
        %v2974 = vand.u32 2147483647, %v2942
        %v2975 = vand.u32 2147483647, %v2943
        %v2976 = vand.u32 2147483647, %v2944
        %v2977 = vand.u32 2147483647, %v2945
        %v2978 = vand.u32 2147483647, %v2946
        %v2979 = vand.u32 2147483647, %v2947
        %v2980 = vand.u32 2147483647, %v2948
        %v2981 = vand.u32 2147483647, %v2949
        %v2982 = vand.u32 2147483647, %v2950
        %v2983 = vand.u32 2147483647, %v2951
        %v2984 = vand.u32 2147483647, %v2952
        %v2985 = vand.u32 2147483647, %v2953
        %v2986 = vand.u32 2147483647, %v2954
        %v2987 = vand.u32 2147483647, %v2955
        %v2988 = vand.u32 2147483647, %v2956
        %v2989 = vand.u32 2147483647, %v2957
        %v2990 = vand.u32 2147483647, %v2958
        %v2991 = vand.u32 2147483647, %v2959
        %v2992 = vand.u32 2147483647, %v2960
        %v2993 = vand.u32 2147483647, %v2961
        %v2994 = vand.u32 2147483647, %v2962
        %v2995 = vand.u32 2147483647, %v2963
        %v2996 = vand.u32 2147483647, %v2964
        %v2997 = vand.u32 2147483647, %v2965
        %v2998 = vand.u32 2147483647, %v2966
        %v2999 = vand.u32 2147483647, %v2967
        %v3000 = vand.u32 2147483647, %v2968
        %v3001 = vadd.f32 %v2969, %v2985
        %v3002 = vadd.f32 %v2970, %v2986
        %v3003 = vadd.f32 %v2971, %v2987
        %v3004 = vadd.f32 %v2972, %v2988
        %v3005 = vadd.f32 %v2973, %v2989
        %v3006 = vadd.f32 %v2974, %v2990
        %v3007 = vadd.f32 %v2975, %v2991
        %v3008 = vadd.f32 %v2976, %v2992
        %v3009 = vadd.f32 %v2977, %v2993
        %v3010 = vadd.f32 %v2978, %v2994
        %v3011 = vadd.f32 %v2979, %v2995
        %v3012 = vadd.f32 %v2980, %v2996
        %v3013 = vadd.f32 %v2981, %v2997
        %v3014 = vadd.f32 %v2982, %v2998
        %v3015 = vadd.f32 %v2983, %v2999
        %v3016 = vadd.f32 %v2984, %v3000
        %v3017 = vadd.f32 %v3001, 0.0
        %v3018 = vadd.f32 %v3017, %v3002
        %v3019 = vadd.f32 %v3018, %v3003
        %v3020 = vadd.f32 %v3019, %v3004
        %v3021 = vadd.f32 %v3020, %v3005
        %v3022 = vadd.f32 %v3021, %v3006
        %v3023 = vadd.f32 %v3022, %v3007
        %v3024 = vadd.f32 %v3023, %v3008
        %v3025 = vadd.f32 %v3024, %v3009
        %v3026 = vadd.f32 %v3025, %v3010
        %v3027 = vadd.f32 %v3026, %v3011
        %v3028 = vadd.f32 %v3027, %v3012
        %v3029 = vadd.f32 %v3028, %v3013
        %v3030 = vadd.f32 %v3029, %v3014
        %v3031 = vadd.f32 %v3030, %v3015
        %v3032 = vadd.f32 %v3031, %v3016
        %v3033 = vld [vmem:[%s750] sm:$0xff]
        %v3034 = vadd.f32 %v3033, %v3032
        %3035 = vst [vmem:[%s750] sm:$0xff] %v3034
        // Predicated region
        $region151: #{tpu_custom_call.1} parent=133 // pred_check
          %p3036 = pneg %p765
        $region152: #{tpu_custom_call.1} parent=133 // pred_check_branch
          %3038 = sbr.rel (%p3036) target = $region154
        $region153: #{tpu_custom_call.1} parent=133 // pred_region
          %v3039 = vsub.f32 %v772, %v804
          %v3040 = vsub.f32 %v773, %v805
          %v3041 = vsub.f32 %v774, %v806
          %v3042 = vsub.f32 %v775, %v807
          %v3043 = vsub.f32 %v776, %v808
          %v3044 = vsub.f32 %v777, %v809
          %v3045 = vsub.f32 %v778, %v810
          %v3046 = vsub.f32 %v779, %v811
          %v3047 = vsub.f32 %v780, %v812
          %v3048 = vsub.f32 %v781, %v813
          %v3049 = vsub.f32 %v782, %v814
          %v3050 = vsub.f32 %v783, %v815
          %v3051 = vsub.f32 %v784, %v816
          %v3052 = vsub.f32 %v785, %v817
          %v3053 = vsub.f32 %v786, %v818
          %v3054 = vsub.f32 %v787, %v819
          %v3055 = vsub.f32 %v788, %v820
          %v3056 = vsub.f32 %v789, %v821
          %v3057 = vsub.f32 %v790, %v822
          %v3058 = vsub.f32 %v791, %v823
          %v3059 = vsub.f32 %v792, %v824
          %v3060 = vsub.f32 %v793, %v825
          %v3061 = vsub.f32 %v794, %v826
          %v3062 = vsub.f32 %v795, %v827
          %v3063 = vsub.f32 %v796, %v828
          %v3064 = vsub.f32 %v797, %v829
          %v3065 = vsub.f32 %v798, %v830
          %v3066 = vsub.f32 %v799, %v831
          %v3067 = vsub.f32 %v800, %v832
          %v3068 = vsub.f32 %v801, %v833
          %v3069 = vsub.f32 %v802, %v834
          %v3070 = vsub.f32 %v803, %v835
          %v3071 = vand.u32 2147483647, %v3039
          %v3072 = vand.u32 2147483647, %v3040
          %v3073 = vand.u32 2147483647, %v3041
          %v3074 = vand.u32 2147483647, %v3042
          %v3075 = vand.u32 2147483647, %v3043
          %v3076 = vand.u32 2147483647, %v3044
          %v3077 = vand.u32 2147483647, %v3045
          %v3078 = vand.u32 2147483647, %v3046
          %v3079 = vand.u32 2147483647, %v3047
          %v3080 = vand.u32 2147483647, %v3048
          %v3081 = vand.u32 2147483647, %v3049
          %v3082 = vand.u32 2147483647, %v3050
          %v3083 = vand.u32 2147483647, %v3051
          %v3084 = vand.u32 2147483647, %v3052
          %v3085 = vand.u32 2147483647, %v3053
          %v3086 = vand.u32 2147483647, %v3054
          %v3087 = vand.u32 2147483647, %v3055
          %v3088 = vand.u32 2147483647, %v3056
          %v3089 = vand.u32 2147483647, %v3057
          %v3090 = vand.u32 2147483647, %v3058
          %v3091 = vand.u32 2147483647, %v3059
          %v3092 = vand.u32 2147483647, %v3060
          %v3093 = vand.u32 2147483647, %v3061
          %v3094 = vand.u32 2147483647, %v3062
          %v3095 = vand.u32 2147483647, %v3063
          %v3096 = vand.u32 2147483647, %v3064
          %v3097 = vand.u32 2147483647, %v3065
          %v3098 = vand.u32 2147483647, %v3066
          %v3099 = vand.u32 2147483647, %v3067
          %v3100 = vand.u32 2147483647, %v3068
          %v3101 = vand.u32 2147483647, %v3069
          %v3102 = vand.u32 2147483647, %v3070
          %v3103 = vsel %vm900, %v3071, 0.0
          %v3104 = vsel %vm900, %v3087, 0.0
          %v3105 = vadd.f32 %v3103, %v3104
          %v3106 = vsel %vm900, %v3072, 0.0
          %v3107 = vsel %vm900, %v3088, 0.0
          %v3108 = vadd.f32 %v3106, %v3107
          %v3109 = vsel %vm900, %v3073, 0.0
          %v3110 = vsel %vm900, %v3089, 0.0
          %v3111 = vadd.f32 %v3109, %v3110
          %v3112 = vsel %vm900, %v3074, 0.0
          %v3113 = vsel %vm900, %v3090, 0.0
          %v3114 = vadd.f32 %v3112, %v3113
          %v3115 = vsel %vm900, %v3075, 0.0
          %v3116 = vsel %vm900, %v3091, 0.0
          %v3117 = vadd.f32 %v3115, %v3116
          %v3118 = vsel %vm900, %v3076, 0.0
          %v3119 = vsel %vm900, %v3092, 0.0
          %v3120 = vadd.f32 %v3118, %v3119
          %v3121 = vsel %vm900, %v3077, 0.0
          %v3122 = vsel %vm900, %v3093, 0.0
          %v3123 = vadd.f32 %v3121, %v3122
          %v3124 = vsel %vm900, %v3078, 0.0
          %v3125 = vsel %vm900, %v3094, 0.0
          %v3126 = vadd.f32 %v3124, %v3125
          %v3127 = vsel %vm900, %v3079, 0.0
          %v3128 = vsel %vm900, %v3095, 0.0
          %v3129 = vadd.f32 %v3127, %v3128
          %v3130 = vsel %vm900, %v3080, 0.0
          %v3131 = vsel %vm900, %v3096, 0.0
          %v3132 = vadd.f32 %v3130, %v3131
          %v3133 = vsel %vm900, %v3081, 0.0
          %v3134 = vsel %vm900, %v3097, 0.0
          %v3135 = vadd.f32 %v3133, %v3134
          %v3136 = vsel %vm900, %v3082, 0.0
          %v3137 = vsel %vm900, %v3098, 0.0
          %v3138 = vadd.f32 %v3136, %v3137
          %v3139 = vsel %vm900, %v3083, 0.0
          %v3140 = vsel %vm900, %v3099, 0.0
          %v3141 = vadd.f32 %v3139, %v3140
          %v3142 = vsel %vm900, %v3084, 0.0
          %v3143 = vsel %vm900, %v3100, 0.0
          %v3144 = vadd.f32 %v3142, %v3143
          %v3145 = vsel %vm900, %v3085, 0.0
          %v3146 = vsel %vm900, %v3101, 0.0
          %v3147 = vadd.f32 %v3145, %v3146
          %v3148 = vsel %vm900, %v3086, 0.0
          %v3149 = vsel %vm900, %v3102, 0.0
          %v3150 = vadd.f32 %v3148, %v3149
          %v3151 = vlaneseq
          %v3152 = vshrl.u32 %v3151, 7
          %vm3153 = vcmp.eq.s32.totalorder %v3152, 0
          %vm3154 = vcmp.eq.s32.totalorder %v2024, 0
          %vm3155 = vmand %vm3153, %vm3154
          %v3156 = vsel %vm900, %v3105, 0.0
          %v3157 = vsel %vm900, %v3108, 0.0
          %v3158 = vadd.f32 %v3156, %v3157
          %v3159 = vsel %vm900, %v3111, 0.0
          %v3160 = vadd.f32 %v3158, %v3159
          %v3161 = vsel %vm900, %v3114, 0.0
          %v3162 = vadd.f32 %v3160, %v3161
          %v3163 = vsel %vm900, %v3117, 0.0
          %v3164 = vadd.f32 %v3162, %v3163
          %v3165 = vsel %vm900, %v3120, 0.0
          %v3166 = vadd.f32 %v3164, %v3165
          %v3167 = vsel %vm900, %v3123, 0.0
          %v3168 = vadd.f32 %v3166, %v3167
          %v3169 = vsel %vm900, %v3126, 0.0
          %v3170 = vadd.f32 %v3168, %v3169
          %v3171 = vsel %vm900, %v3129, 0.0
          %v3172 = vadd.f32 %v3170, %v3171
          %v3173 = vsel %vm900, %v3132, 0.0
          %v3174 = vadd.f32 %v3172, %v3173
          %v3175 = vsel %vm900, %v3135, 0.0
          %v3176 = vadd.f32 %v3174, %v3175
          %v3177 = vsel %vm900, %v3138, 0.0
          %v3178 = vadd.f32 %v3176, %v3177
          %v3179 = vsel %vm900, %v3141, 0.0
          %v3180 = vadd.f32 %v3178, %v3179
          %v3181 = vsel %vm900, %v3144, 0.0
          %v3182 = vadd.f32 %v3180, %v3181
          %v3183 = vsel %vm900, %v3147, 0.0
          %v3184 = vadd.f32 %v3182, %v3183
          %v3185 = vsel %vm900, %v3150, 0.0
          %v3186 = vadd.f32 %v3184, %v3185
          %3187 = vadd.xlane.f32.xlu0 %v3186
          %v3188 = vpop.xlane.xlu0 %3187
          %v3189 = vrot.slane %v3188, 4
          %v3190 = vadd.f32 %v3188, %v3189
          %v3191 = vrot.slane %v3190, 2
          %v3192 = vadd.f32 %v3190, %v3191
          %v3193 = vrot.slane %v3192, 1
          %v3194 = vadd.f32 %v3192, %v3193
          %s3195 = vtos %v3194
          %v3196 = vstv %s3195
          %v3197 = vsel %vm3155, %v3196, 0.0
          %v3198 = vld [vmem:[%s757] sm:$0xff]
          %v3199 = vadd.f32 %v3198, %v3197
          %3200 = vst [vmem:[%s757] sm:$0xff] %v3199
        $region154: #{tpu_custom_call.1} parent=133 // pred_fallthru
          _
        %s3201 = sand.u32 %s133, 1
        %s3202 = scalar_lea.sflag [#allocation6], %s3201
        %s3203 = sand.u32 %s133, 1
        %s3204 = smul.addr %s3203, 8
        %s3205 = scalar_lea.vmem [#allocation5], %s3204
        %s3206 = sand.u32 %s159, 1
        %s3207 = scalar_lea.sflag [#allocation8], %s3206
        %s3208 = sand.u32 %s159, 1
        %s3209 = smul.addr %s3208, 8
        %s3210 = scalar_lea.vmem [#allocation7], %s3209
        // Predicated region
        $region155: #{tpu_custom_call.1} parent=133 // pred_check
          %p3211 = pneg %p143
        $region156: #{tpu_custom_call.1} parent=133 // pred_check_branch
          %3213 = sbr.rel (%p3211) target = $region158
        $region157: #{tpu_custom_call.1} parent=133 // pred_region
          %s3215 = ssub.s32 128, 128
          %3216 = vsyncadd %s3202, %s3215
          %s3217 = smul.addr %s27, 128
          %s3218 = scalar_lea.hbm %s3, %s3217
          %s3220 = sshll.u32 %s3205, 4
          %s3221 = int_to_ptr.vmem [resolvable:$true] %s3220
          %3223 = dma.vmem_to_hbm [thread:$0]  %s3221, 128, %s3218, %s3202
        $region158: #{tpu_custom_call.1} parent=133 // pred_fallthru
          _
        // Predicated region
        $region159: #{tpu_custom_call.1} parent=133 // pred_check
          %p3224 = pneg %p169
        $region160: #{tpu_custom_call.1} parent=133 // pred_check_branch
          %3226 = sbr.rel (%p3224) target = $region162
        $region161: #{tpu_custom_call.1} parent=133 // pred_region
          %s3228 = ssub.s32 128, 128
          %3229 = vsyncadd %s3207, %s3228
          %s3230 = smul.addr %s27, 128
          %s3231 = scalar_lea.hbm %s4, %s3230
          %s3233 = sshll.u32 %s3210, 4
          %s3234 = int_to_ptr.vmem [resolvable:$true] %s3233
          %3236 = dma.vmem_to_hbm [thread:$0]  %s3234, 128, %s3231, %s3207
        $region162: #{tpu_custom_call.1} parent=133 // pred_fallthru
          _
      $region134: #{tpu_custom_call.1} parent=5 // pred_fallthru
        _
      %p3237 = scmp.le.s32.totalorder 2, %s17
      // Predicated region
      $region163: #{tpu_custom_call.1} parent=5 // pred_check
        %p3238 = pneg %p3237
      $region164: #{tpu_custom_call.1} parent=5 // pred_check_branch
        %3240 = sbr.rel (%p3238) target = $region166
      $region165: #{tpu_custom_call.1} parent=5 // pred_region
        %s3241 = ssub.s32 %s17, 2
        // Predicated region
        $region167: #{tpu_custom_call.1} parent=165 // pred_check
          %p3242 = pneg %p149
        $region168: #{tpu_custom_call.1} parent=165 // pred_check_branch
          %3244 = sbr.rel (%p3242) target = $region170
        $region169: #{tpu_custom_call.1} parent=165 // pred_region
          %s3245 = sand.u32 %s134, 1
          %s3246 = scalar_lea.sflag [#allocation6], %s3245
          %s3247 = sand.u32 %s134, 1
          %s3248 = smul.addr %s3247, 8
          %s3249 = scalar_lea.vmem [#allocation5], %s3248
          %3250 = dma.done %s3246, 128
        $region170: #{tpu_custom_call.1} parent=165 // pred_fallthru
          _
        // Predicated region
        $region171: #{tpu_custom_call.1} parent=165 // pred_check
          %p3251 = pneg %p175
        $region172: #{tpu_custom_call.1} parent=165 // pred_check_branch
          %3253 = sbr.rel (%p3251) target = $region174
        $region173: #{tpu_custom_call.1} parent=165 // pred_region
          %s3254 = sand.u32 %s160, 1
          %s3255 = scalar_lea.sflag [#allocation8], %s3254
          %s3256 = sand.u32 %s160, 1
          %s3257 = smul.addr %s3256, 8
          %s3258 = scalar_lea.vmem [#allocation7], %s3257
          %3259 = dma.done %s3255, 128
        $region174: #{tpu_custom_call.1} parent=165 // pred_fallthru
          _
      $region166: #{tpu_custom_call.1} parent=5 // pred_fallthru
        _
    $region6: #{tpu_custom_call.1} parent=1 // loop_footer
      %s21 = sadd.s32 1, %s17
    $region7: #{tpu_custom_call.1} parent=1 // loop_footer_branch
      %16 = sbr.rel target = $region3
    $region8: #{tpu_custom_call.1} parent=1 // loop_exit
      _
    %3260 = vsyncpa [#allocation6], 1
    %s3261 = scalar_lea.sflag [#allocation6], 1
    %3262 = vsyncpa %s3261, 1
    %3263 = vsyncpa [#allocation8], 1
    %s3264 = scalar_lea.sflag [#allocation8], 1
    %3265 = vsyncpa %s3264, 1

</llo_original>
